<compile_context>
chip_gen: v7x
topology: tpu7x:2x2x1
jax: 0.10.0
libtpu: 0.0.40
codegen_flags: <defaults>
</compile_context>

<pallas_src>
import jax
import jax.numpy as jnp
import numpy as np
from jax import lax
from jax.experimental import pallas as pl
from jax.experimental.pallas import tpu as pltpu


# ----------------------------- fused Pallas kernel ---------------------------

def lenet_fused_kernel(xp_ref, a1_ref, b1_ref, a2_ref, b2_ref,
                       wf1_ref, bf1_ref, wf2_ref, bf2_ref, wf3_ref, bf3_ref,
                       o_ref):
    """Entire Net forward for one image, fully VMEM/vreg resident.

    xp_ref : (1, 4, 8, 96)  input rows split by (row mod 4); per-row layout (w, c)
    a1_ref : (5, 96, 256)   conv1 banded weights (one per kernel row ky); output
                            columns = [even pooled-w block | odd block], each 128
    b1_ref : (1, 128)       conv1 bias tiled over pooled w (channels padded 6->8)
    a2_ref : (5, 128, 256)  conv2 banded weights (rows = h1 column space, padded)
    b2_ref : (1, 128)       conv2 bias tiled over pooled w
    wf1_ref: (5, 128, 128)  fc1 weights, one slab per pooled-H row; torch (C,H,W)
                            flatten order folded in; padded to 128
    wf2_ref, wf3_ref: (128, 128); biases (1, 128); fc3 columns >= 10 are padding
    o_ref  : (1, 1, 128)    logits (first 10 lanes valid)
    """
    f32 = jnp.float32

    # ---- stage 1: conv1 as banded matmuls; 2x2 maxpool folded into row phases
    # (lhs row-phase split) + weight column-parity blocks; relu after the pool.
    def conv1_rows(t):                       # conv1 output rows 4v + t, v in [0,7)
        acc = None
        for ky in range(5):
            p, q = (t + ky) % 4, (t + ky) // 4
            lhs = xp_ref[0, p, q:q + 7, :]                     # (7, 96)
            term = jnp.dot(lhs, a1_ref[ky], preferred_element_type=f32)
            acc = term if acc is None else acc + term
        return acc                                             # (7, 256)

    c0, c1, c2, c3 = conv1_rows(0), conv1_rows(1), conv1_rows(2), conv1_rows(3)
    he = jnp.maximum(c0, c1)                 # rows (4v, 4v+1)  -> h1 row 2v
    ho = jnp.maximum(c2, c3)                 # rows (4v+2,4v+3) -> h1 row 2v+1
    b1 = b1_ref[...]
    h1e = jnp.maximum(jnp.maximum(he[:, :128], he[:, 128:]) + b1, 0.0)   # (7, 128)
    h1o = jnp.maximum(jnp.maximum(ho[:, :128], ho[:, 128:]) + b1, 0.0)   # (7, 128)
    h1 = (h1e, h1o)                          # h1 rows split by parity

    # ---- stage 2: conv2 + pool + relu, same scheme
    def conv2_rows(r):                       # conv2 output rows 2u + r, u in [0,5)
        acc = None
        for ky in range(5):
            p, q = (r + ky) % 2, (r + ky) // 2
            lhs = h1[p][q:q + 5, :]                            # (5, 128)
            term = jnp.dot(lhs, a2_ref[ky], preferred_element_type=f32)
            acc = term if acc is None else acc + term
        return acc                                             # (5, 256)

    d0, d1 = conv2_rows(0), conv2_rows(1)
    g = jnp.maximum(d0, d1)
    h2 = jnp.maximum(jnp.maximum(g[:, :128], g[:, 128:]) + b2_ref[...], 0.0)  # (5, 128)

    # ---- MLP: flatten folded into wf1's row layout (one slab per pooled-H row)
    acc = None
    for h in range(5):
        term = jnp.dot(h2[h:h + 1, :], wf1_ref[h], preferred_element_type=f32)
        acc = term if acc is None else acc + term              # (1, 128)
    z = jnp.maximum(acc + bf1_ref[...], 0.0)
    z = jnp.maximum(jnp.dot(z, wf2_ref[...], preferred_element_type=f32)
                    + bf2_ref[...], 0.0)
    z = jnp.dot(z, wf3_ref[...], preferred_element_type=f32) + bf3_ref[...]
    o_ref[0] = z


# ------------------------------ pallas_call wrapper ---------------------------

def lenet_fused(xp, kparams):
    B = xp.shape[0]

    def full_spec(arr):
        return pl.BlockSpec(arr.shape, lambda i: (0,) * arr.ndim)

    out = pl.pallas_call(
        lenet_fused_kernel,
        out_shape=jax.ShapeDtypeStruct((B, 1, 128), jnp.float32),
        grid=(B,),
        in_specs=[pl.BlockSpec((1, 4, 8, 96), lambda i: (i, 0, 0, 0))]
                 + [full_spec(a) for a in kparams],
        out_specs=pl.BlockSpec((1, 1, 128), lambda i: (i, 0, 0)),
        compiler_params=pltpu.CompilerParams(
            dimension_semantics=("parallel",)),
    )(xp, *kparams)
    return out[:, 0, :]


# ------------------------------ weight preparation ----------------------------

def _pool_band(in_w, pooled_w, group):
    """Static selector: E[kx, x, s*group + m] = 1 iff x == 2*m + s + kx."""
    E = np.zeros((5, in_w, 2 * group), np.float32)
    for kx in range(5):
        for m in range(pooled_w):
            for s in range(2):
                E[kx, 2 * m + s + kx, s * group + m] = 1.0
    return jnp.asarray(E)


def prepare_kernel_params(params):
    w1, b1, w2, b2, wf1, bf1, wf2, bf2, wf3, bf3 = params
    # conv weights (torch OIHW); pad conv1 cout 6->8 and conv2 cin 6->8.
    w1p = jnp.pad(w1, ((0, 2), (0, 0), (0, 0), (0, 0)))          # (8, 3, 5, 5)
    w2p = jnp.pad(w2, ((0, 0), (0, 2), (0, 0), (0, 0)))          # (16, 8, 5, 5)
    # banded matrices: A[ky][x*Cin+c, (s*group+m)*Cout+f] = W[f, c, ky, x-(2m+s)]
    E1 = _pool_band(32, 14, 16)                                  # (5, 32, 32)
    E2 = _pool_band(14, 5, 8)                                    # (5, 14, 16)
    a1 = jnp.einsum('kxJ,fcyk->yxcJf', E1, w1p).reshape(5, 96, 256)
    a2 = jnp.einsum('kxJ,fcyk->yxcJf', E2, w2p).reshape(5, 112, 256)
    a2 = jnp.pad(a2, ((0, 0), (0, 16), (0, 0)))                  # rows -> 128
    b1r = jnp.pad(jnp.tile(jnp.pad(b1, (0, 2)), 14), (0, 16)).reshape(1, 128)
    b2r = jnp.pad(jnp.tile(b2, 5), (0, 48)).reshape(1, 128)
    # fc1: rows are torch flatten order c*25 + h*5 + w -> regroup to [h][w*16 + c]
    wf1r = wf1.reshape(16, 5, 5, 120).transpose(1, 2, 0, 3).reshape(5, 80, 120)
    wf1r = jnp.pad(wf1r, ((0, 0), (0, 48), (0, 8)))              # (5, 128, 128)
    bf1p = jnp.pad(bf1, (0, 8)).reshape(1, 128)
    wf2p = jnp.pad(wf2, ((0, 8), (0, 44)))                       # (128, 128)
    bf2p = jnp.pad(bf2, (0, 44)).reshape(1, 128)
    wf3p = jnp.pad(wf3, ((0, 44), (0, 118)))                     # (128, 128)
    bf3p = jnp.pad(bf3, (0, 118)).reshape(1, 128)
    return (a1, b1r, a2, b2r, wf1r, bf1p, wf2p, bf2p, wf3p, bf3p)


# ------------------------------ forward wrapper -------------------------------

def net_forward(x_nchw, params):
    B = x_nchw.shape[0]
    kparams = prepare_kernel_params(params)
    # NCHW -> per-image 2-D (H, W*C) layout; split rows by (row mod 4) so that the
    # kernel's conv/pool row phases are contiguous slices (same bytes as the input).
    x2d = jnp.transpose(x_nchw, (0, 2, 3, 1)).reshape(B, 32, 96)
    xp = x2d.reshape(B, 8, 4, 96).transpose(0, 2, 1, 3)          # (B, 4, 8, 96)
    logits = lenet_fused(xp, kparams)                            # (B, 128)
    return logits[:, :10]


# ------------------------------ parameters ------------------------------------

def init_params(key):
    ks = jax.random.split(key, 10)

    def u(k, shape, fan_in):
        bound = 1.0 / np.sqrt(fan_in)
        return jax.random.uniform(k, shape, jnp.float32, -bound, bound)

    w1 = u(ks[0], (6, 3, 5, 5), 3 * 25);   b1 = u(ks[1], (6,), 3 * 25)
    w2 = u(ks[2], (16, 6, 5, 5), 6 * 25);  b2 = u(ks[3], (16,), 6 * 25)
    wf1 = u(ks[4], (400, 120), 400);       bf1 = u(ks[5], (120,), 400)
    wf2 = u(ks[6], (120, 84), 120);        bf2 = u(ks[7], (84,), 120)
    wf3 = u(ks[8], (84, 10), 84);          bf3 = u(ks[9], (10,), 84)
    return (w1, b1, w2, b2, wf1, bf1, wf2, bf2, wf3, bf3)


# ------------------------------ pure-JAX reference ----------------------------

def reference_forward(x_nchw, params):
    w1, b1, w2, b2, wf1, bf1, wf2, bf2, wf3, bf3 = params
    W1 = jnp.transpose(w1, (2, 3, 1, 0))       # OIHW -> HWIO
    W2 = jnp.transpose(w2, (2, 3, 1, 0))

    def conv(x, W):
        return lax.conv_general_dilated(x, W, (1, 1), "VALID",
                                        dimension_numbers=("NCHW", "HWIO", "NCHW"))

    def pool(x):
        return lax.reduce_window(x, -jnp.inf, lax.max, (1, 1, 2, 2), (1, 1, 2, 2), "VALID")

    h = pool(jax.nn.relu(conv(x_nchw, W1) + b1.reshape(1, 6, 1, 1)))
    h = pool(jax.nn.relu(conv(h, W2) + b2.reshape(1, 16, 1, 1)))
    h = h.reshape(h.shape[0], -1)              # NCHW flatten = (C, H, W) order
    h = jax.nn.relu(h @ wf1 + bf1)
    h = jax.nn.relu(h @ wf2 + bf2)
    return h @ wf3 + bf3


# ------------------------------ main -------------------------------------------

if __name__ == "__main__":
    key = jax.random.PRNGKey(0)
    pkey, xkey = jax.random.split(key)
    params = init_params(pkey)
    x = jax.random.normal(xkey, (2, 3, 32, 32), jnp.float32)  # NCHW, like PyTorch

    out = jax.jit(net_forward)(x, params)
    out = jax.block_until_ready(out)

    assert out.shape == (2, 10)
    assert bool(jnp.all(jnp.isfinite(out)))
    ref = reference_forward(x, params)
    np.testing.assert_allclose(np.asarray(out), np.asarray(ref), rtol=2e-2, atol=2e-3)
    print("KERNEL_OK")
</pallas_src>

<mosaic_0001>
module attributes {stable_mosaic.version = 11 : i64} {
  func.func @lenet_fused_kernel(%arg0: i32, %arg1: memref<1x4x8x96xf32, #tpu.memory_space<vmem>>, %arg2: memref<5x96x256xf32, #tpu.memory_space<vmem>>, %arg3: memref<1x128xf32, #tpu.memory_space<vmem>>, %arg4: memref<5x128x256xf32, #tpu.memory_space<vmem>>, %arg5: memref<1x128xf32, #tpu.memory_space<vmem>>, %arg6: memref<5x128x128xf32, #tpu.memory_space<vmem>>, %arg7: memref<1x128xf32, #tpu.memory_space<vmem>>, %arg8: memref<128x128xf32, #tpu.memory_space<vmem>>, %arg9: memref<1x128xf32, #tpu.memory_space<vmem>>, %arg10: memref<128x128xf32, #tpu.memory_space<vmem>>, %arg11: memref<1x128xf32, #tpu.memory_space<vmem>>, %arg12: memref<1x1x128xf32, #tpu.memory_space<vmem>>) attributes {dimension_semantics = [#tpu.dimension_semantics<parallel>], iteration_bounds = array<i64: 2>, scalar_prefetch = 0 : i64, scratch_operands = 0 : i64, tpu.core_type = #tpu.core_type<tc>, window_params = [{transform_indices = @transform_0, window_bounds = array<i64: 1, 4, 8, 96>}, {pipeline_mode = #tpu.pipeline_mode<synchronous>, transform_indices = @transform_1, window_bounds = array<i64: 5, 96, 256>}, {pipeline_mode = #tpu.pipeline_mode<synchronous>, transform_indices = @transform_2, window_bounds = array<i64: 1, 128>}, {pipeline_mode = #tpu.pipeline_mode<synchronous>, transform_indices = @transform_3, window_bounds = array<i64: 5, 128, 256>}, {pipeline_mode = #tpu.pipeline_mode<synchronous>, transform_indices = @transform_4, window_bounds = array<i64: 1, 128>}, {pipeline_mode = #tpu.pipeline_mode<synchronous>, transform_indices = @transform_5, window_bounds = array<i64: 5, 128, 128>}, {pipeline_mode = #tpu.pipeline_mode<synchronous>, transform_indices = @transform_6, window_bounds = array<i64: 1, 128>}, {pipeline_mode = #tpu.pipeline_mode<synchronous>, transform_indices = @transform_7, window_bounds = array<i64: 128, 128>}, {pipeline_mode = #tpu.pipeline_mode<synchronous>, transform_indices = @transform_8, window_bounds = array<i64: 1, 128>}, {pipeline_mode = #tpu.pipeline_mode<synchronous>, transform_indices = @transform_9, window_bounds = array<i64: 128, 128>}, {pipeline_mode = #tpu.pipeline_mode<synchronous>, transform_indices = @transform_10, window_bounds = array<i64: 1, 128>}, {transform_indices = @transform_11, window_bounds = array<i64: 1, 1, 128>}]} {
    %c0 = arith.constant 0 : index
    %c0_0 = arith.constant 0 : index
    %c0_1 = arith.constant 0 : index
    %c0_2 = arith.constant 0 : index
    %0 = vector.load %arg1[%c0, %c0_0, %c0_1, %c0_2] : memref<1x4x8x96xf32, #tpu.memory_space<vmem>>, vector<1x1x7x96xf32>
    %1 = vector.shape_cast %0 : vector<1x1x7x96xf32> to vector<7x96xf32>
    %c0_3 = arith.constant 0 : index
    %c0_4 = arith.constant 0 : index
    %c0_5 = arith.constant 0 : index
    %2 = vector.load %arg2[%c0_3, %c0_4, %c0_5] : memref<5x96x256xf32, #tpu.memory_space<vmem>>, vector<1x96x256xf32>
    %3 = vector.shape_cast %2 : vector<1x96x256xf32> to vector<96x256xf32>
    %cst = arith.constant dense<0.000000e+00> : vector<7x256xf32>
    %4 = tpu.matmul %1, %3, %cst {dimension_numbers = #tpu.dot_dimension_numbers<[1], [0], [0], [1], [0, 0, 1, 1], [], []>} : vector<7x96xf32>, vector<96x256xf32>, vector<7x256xf32> -> vector<7x256xf32>
    %c0_6 = arith.constant 0 : index
    %c1 = arith.constant 1 : index
    %c0_7 = arith.constant 0 : index
    %c0_8 = arith.constant 0 : index
    %5 = vector.load %arg1[%c0_6, %c1, %c0_7, %c0_8] : memref<1x4x8x96xf32, #tpu.memory_space<vmem>>, vector<1x1x7x96xf32>
    %6 = vector.shape_cast %5 : vector<1x1x7x96xf32> to vector<7x96xf32>
    %c1_9 = arith.constant 1 : index
    %c0_10 = arith.constant 0 : index
    %c0_11 = arith.constant 0 : index
    %7 = vector.load %arg2[%c1_9, %c0_10, %c0_11] : memref<5x96x256xf32, #tpu.memory_space<vmem>>, vector<1x96x256xf32>
    %8 = vector.shape_cast %7 : vector<1x96x256xf32> to vector<96x256xf32>
    %cst_12 = arith.constant dense<0.000000e+00> : vector<7x256xf32>
    %9 = tpu.matmul %6, %8, %cst_12 {dimension_numbers = #tpu.dot_dimension_numbers<[1], [0], [0], [1], [0, 0, 1, 1], [], []>} : vector<7x96xf32>, vector<96x256xf32>, vector<7x256xf32> -> vector<7x256xf32>
    %10 = arith.addf %4, %9 : vector<7x256xf32>
    %c0_13 = arith.constant 0 : index
    %c2 = arith.constant 2 : index
    %c0_14 = arith.constant 0 : index
    %c0_15 = arith.constant 0 : index
    %11 = vector.load %arg1[%c0_13, %c2, %c0_14, %c0_15] : memref<1x4x8x96xf32, #tpu.memory_space<vmem>>, vector<1x1x7x96xf32>
    %12 = vector.shape_cast %11 : vector<1x1x7x96xf32> to vector<7x96xf32>
    %c2_16 = arith.constant 2 : index
    %c0_17 = arith.constant 0 : index
    %c0_18 = arith.constant 0 : index
    %13 = vector.load %arg2[%c2_16, %c0_17, %c0_18] : memref<5x96x256xf32, #tpu.memory_space<vmem>>, vector<1x96x256xf32>
    %14 = vector.shape_cast %13 : vector<1x96x256xf32> to vector<96x256xf32>
    %cst_19 = arith.constant dense<0.000000e+00> : vector<7x256xf32>
    %15 = tpu.matmul %12, %14, %cst_19 {dimension_numbers = #tpu.dot_dimension_numbers<[1], [0], [0], [1], [0, 0, 1, 1], [], []>} : vector<7x96xf32>, vector<96x256xf32>, vector<7x256xf32> -> vector<7x256xf32>
    %16 = arith.addf %10, %15 : vector<7x256xf32>
    %c0_20 = arith.constant 0 : index
    %c3 = arith.constant 3 : index
    %c0_21 = arith.constant 0 : index
    %c0_22 = arith.constant 0 : index
    %17 = vector.load %arg1[%c0_20, %c3, %c0_21, %c0_22] : memref<1x4x8x96xf32, #tpu.memory_space<vmem>>, vector<1x1x7x96xf32>
    %18 = vector.shape_cast %17 : vector<1x1x7x96xf32> to vector<7x96xf32>
    %c3_23 = arith.constant 3 : index
    %c0_24 = arith.constant 0 : index
    %c0_25 = arith.constant 0 : index
    %19 = vector.load %arg2[%c3_23, %c0_24, %c0_25] : memref<5x96x256xf32, #tpu.memory_space<vmem>>, vector<1x96x256xf32>
    %20 = vector.shape_cast %19 : vector<1x96x256xf32> to vector<96x256xf32>
    %cst_26 = arith.constant dense<0.000000e+00> : vector<7x256xf32>
    %21 = tpu.matmul %18, %20, %cst_26 {dimension_numbers = #tpu.dot_dimension_numbers<[1], [0], [0], [1], [0, 0, 1, 1], [], []>} : vector<7x96xf32>, vector<96x256xf32>, vector<7x256xf32> -> vector<7x256xf32>
    %22 = arith.addf %16, %21 : vector<7x256xf32>
    %c0_27 = arith.constant 0 : index
    %c0_28 = arith.constant 0 : index
    %c1_29 = arith.constant 1 : index
    %c0_30 = arith.constant 0 : index
    %23 = vector.load %arg1[%c0_27, %c0_28, %c1_29, %c0_30] : memref<1x4x8x96xf32, #tpu.memory_space<vmem>>, vector<1x1x7x96xf32>
    %24 = vector.shape_cast %23 : vector<1x1x7x96xf32> to vector<7x96xf32>
    %c4 = arith.constant 4 : index
    %c0_31 = arith.constant 0 : index
    %c0_32 = arith.constant 0 : index
    %25 = vector.load %arg2[%c4, %c0_31, %c0_32] : memref<5x96x256xf32, #tpu.memory_space<vmem>>, vector<1x96x256xf32>
    %26 = vector.shape_cast %25 : vector<1x96x256xf32> to vector<96x256xf32>
    %cst_33 = arith.constant dense<0.000000e+00> : vector<7x256xf32>
    %27 = tpu.matmul %24, %26, %cst_33 {dimension_numbers = #tpu.dot_dimension_numbers<[1], [0], [0], [1], [0, 0, 1, 1], [], []>} : vector<7x96xf32>, vector<96x256xf32>, vector<7x256xf32> -> vector<7x256xf32>
    %28 = arith.addf %22, %27 : vector<7x256xf32>
    %c0_34 = arith.constant 0 : index
    %c1_35 = arith.constant 1 : index
    %c0_36 = arith.constant 0 : index
    %c0_37 = arith.constant 0 : index
    %29 = vector.load %arg1[%c0_34, %c1_35, %c0_36, %c0_37] : memref<1x4x8x96xf32, #tpu.memory_space<vmem>>, vector<1x1x7x96xf32>
    %30 = vector.shape_cast %29 : vector<1x1x7x96xf32> to vector<7x96xf32>
    %c0_38 = arith.constant 0 : index
    %c0_39 = arith.constant 0 : index
    %c0_40 = arith.constant 0 : index
    %31 = vector.load %arg2[%c0_38, %c0_39, %c0_40] : memref<5x96x256xf32, #tpu.memory_space<vmem>>, vector<1x96x256xf32>
    %32 = vector.shape_cast %31 : vector<1x96x256xf32> to vector<96x256xf32>
    %cst_41 = arith.constant dense<0.000000e+00> : vector<7x256xf32>
    %33 = tpu.matmul %30, %32, %cst_41 {dimension_numbers = #tpu.dot_dimension_numbers<[1], [0], [0], [1], [0, 0, 1, 1], [], []>} : vector<7x96xf32>, vector<96x256xf32>, vector<7x256xf32> -> vector<7x256xf32>
    %c0_42 = arith.constant 0 : index
    %c2_43 = arith.constant 2 : index
    %c0_44 = arith.constant 0 : index
    %c0_45 = arith.constant 0 : index
    %34 = vector.load %arg1[%c0_42, %c2_43, %c0_44, %c0_45] : memref<1x4x8x96xf32, #tpu.memory_space<vmem>>, vector<1x1x7x96xf32>
    %35 = vector.shape_cast %34 : vector<1x1x7x96xf32> to vector<7x96xf32>
    %c1_46 = arith.constant 1 : index
    %c0_47 = arith.constant 0 : index
    %c0_48 = arith.constant 0 : index
    %36 = vector.load %arg2[%c1_46, %c0_47, %c0_48] : memref<5x96x256xf32, #tpu.memory_space<vmem>>, vector<1x96x256xf32>
    %37 = vector.shape_cast %36 : vector<1x96x256xf32> to vector<96x256xf32>
    %cst_49 = arith.constant dense<0.000000e+00> : vector<7x256xf32>
    %38 = tpu.matmul %35, %37, %cst_49 {dimension_numbers = #tpu.dot_dimension_numbers<[1], [0], [0], [1], [0, 0, 1, 1], [], []>} : vector<7x96xf32>, vector<96x256xf32>, vector<7x256xf32> -> vector<7x256xf32>
    %39 = arith.addf %33, %38 : vector<7x256xf32>
    %c0_50 = arith.constant 0 : index
    %c3_51 = arith.constant 3 : index
    %c0_52 = arith.constant 0 : index
    %c0_53 = arith.constant 0 : index
    %40 = vector.load %arg1[%c0_50, %c3_51, %c0_52, %c0_53] : memref<1x4x8x96xf32, #tpu.memory_space<vmem>>, vector<1x1x7x96xf32>
    %41 = vector.shape_cast %40 : vector<1x1x7x96xf32> to vector<7x96xf32>
    %c2_54 = arith.constant 2 : index
    %c0_55 = arith.constant 0 : index
    %c0_56 = arith.constant 0 : index
    %42 = vector.load %arg2[%c2_54, %c0_55, %c0_56] : memref<5x96x256xf32, #tpu.memory_space<vmem>>, vector<1x96x256xf32>
    %43 = vector.shape_cast %42 : vector<1x96x256xf32> to vector<96x256xf32>
    %cst_57 = arith.constant dense<0.000000e+00> : vector<7x256xf32>
    %44 = tpu.matmul %41, %43, %cst_57 {dimension_numbers = #tpu.dot_dimension_numbers<[1], [0], [0], [1], [0, 0, 1, 1], [], []>} : vector<7x96xf32>, vector<96x256xf32>, vector<7x256xf32> -> vector<7x256xf32>
    %45 = arith.addf %39, %44 : vector<7x256xf32>
    %c0_58 = arith.constant 0 : index
    %c0_59 = arith.constant 0 : index
    %c1_60 = arith.constant 1 : index
    %c0_61 = arith.constant 0 : index
    %46 = vector.load %arg1[%c0_58, %c0_59, %c1_60, %c0_61] : memref<1x4x8x96xf32, #tpu.memory_space<vmem>>, vector<1x1x7x96xf32>
    %47 = vector.shape_cast %46 : vector<1x1x7x96xf32> to vector<7x96xf32>
    %c3_62 = arith.constant 3 : index
    %c0_63 = arith.constant 0 : index
    %c0_64 = arith.constant 0 : index
    %48 = vector.load %arg2[%c3_62, %c0_63, %c0_64] : memref<5x96x256xf32, #tpu.memory_space<vmem>>, vector<1x96x256xf32>
    %49 = vector.shape_cast %48 : vector<1x96x256xf32> to vector<96x256xf32>
    %cst_65 = arith.constant dense<0.000000e+00> : vector<7x256xf32>
    %50 = tpu.matmul %47, %49, %cst_65 {dimension_numbers = #tpu.dot_dimension_numbers<[1], [0], [0], [1], [0, 0, 1, 1], [], []>} : vector<7x96xf32>, vector<96x256xf32>, vector<7x256xf32> -> vector<7x256xf32>
    %51 = arith.addf %45, %50 : vector<7x256xf32>
    %c0_66 = arith.constant 0 : index
    %c1_67 = arith.constant 1 : index
    %c1_68 = arith.constant 1 : index
    %c0_69 = arith.constant 0 : index
    %52 = vector.load %arg1[%c0_66, %c1_67, %c1_68, %c0_69] : memref<1x4x8x96xf32, #tpu.memory_space<vmem>>, vector<1x1x7x96xf32>
    %53 = vector.shape_cast %52 : vector<1x1x7x96xf32> to vector<7x96xf32>
    %c4_70 = arith.constant 4 : index
    %c0_71 = arith.constant 0 : index
    %c0_72 = arith.constant 0 : index
    %54 = vector.load %arg2[%c4_70, %c0_71, %c0_72] : memref<5x96x256xf32, #tpu.memory_space<vmem>>, vector<1x96x256xf32>
    %55 = vector.shape_cast %54 : vector<1x96x256xf32> to vector<96x256xf32>
    %cst_73 = arith.constant dense<0.000000e+00> : vector<7x256xf32>
    %56 = tpu.matmul %53, %55, %cst_73 {dimension_numbers = #tpu.dot_dimension_numbers<[1], [0], [0], [1], [0, 0, 1, 1], [], []>} : vector<7x96xf32>, vector<96x256xf32>, vector<7x256xf32> -> vector<7x256xf32>
    %57 = arith.addf %51, %56 : vector<7x256xf32>
    %c0_74 = arith.constant 0 : index
    %c2_75 = arith.constant 2 : index
    %c0_76 = arith.constant 0 : index
    %c0_77 = arith.constant 0 : index
    %58 = vector.load %arg1[%c0_74, %c2_75, %c0_76, %c0_77] : memref<1x4x8x96xf32, #tpu.memory_space<vmem>>, vector<1x1x7x96xf32>
    %59 = vector.shape_cast %58 : vector<1x1x7x96xf32> to vector<7x96xf32>
    %c0_78 = arith.constant 0 : index
    %c0_79 = arith.constant 0 : index
    %c0_80 = arith.constant 0 : index
    %60 = vector.load %arg2[%c0_78, %c0_79, %c0_80] : memref<5x96x256xf32, #tpu.memory_space<vmem>>, vector<1x96x256xf32>
    %61 = vector.shape_cast %60 : vector<1x96x256xf32> to vector<96x256xf32>
    %cst_81 = arith.constant dense<0.000000e+00> : vector<7x256xf32>
    %62 = tpu.matmul %59, %61, %cst_81 {dimension_numbers = #tpu.dot_dimension_numbers<[1], [0], [0], [1], [0, 0, 1, 1], [], []>} : vector<7x96xf32>, vector<96x256xf32>, vector<7x256xf32> -> vector<7x256xf32>
    %c0_82 = arith.constant 0 : index
    %c3_83 = arith.constant 3 : index
    %c0_84 = arith.constant 0 : index
    %c0_85 = arith.constant 0 : index
    %63 = vector.load %arg1[%c0_82, %c3_83, %c0_84, %c0_85] : memref<1x4x8x96xf32, #tpu.memory_space<vmem>>, vector<1x1x7x96xf32>
    %64 = vector.shape_cast %63 : vector<1x1x7x96xf32> to vector<7x96xf32>
    %c1_86 = arith.constant 1 : index
    %c0_87 = arith.constant 0 : index
    %c0_88 = arith.constant 0 : index
    %65 = vector.load %arg2[%c1_86, %c0_87, %c0_88] : memref<5x96x256xf32, #tpu.memory_space<vmem>>, vector<1x96x256xf32>
    %66 = vector.shape_cast %65 : vector<1x96x256xf32> to vector<96x256xf32>
    %cst_89 = arith.constant dense<0.000000e+00> : vector<7x256xf32>
    %67 = tpu.matmul %64, %66, %cst_89 {dimension_numbers = #tpu.dot_dimension_numbers<[1], [0], [0], [1], [0, 0, 1, 1], [], []>} : vector<7x96xf32>, vector<96x256xf32>, vector<7x256xf32> -> vector<7x256xf32>
    %68 = arith.addf %62, %67 : vector<7x256xf32>
    %c0_90 = arith.constant 0 : index
    %c0_91 = arith.constant 0 : index
    %c1_92 = arith.constant 1 : index
    %c0_93 = arith.constant 0 : index
    %69 = vector.load %arg1[%c0_90, %c0_91, %c1_92, %c0_93] : memref<1x4x8x96xf32, #tpu.memory_space<vmem>>, vector<1x1x7x96xf32>
    %70 = vector.shape_cast %69 : vector<1x1x7x96xf32> to vector<7x96xf32>
    %c2_94 = arith.constant 2 : index
    %c0_95 = arith.constant 0 : index
    %c0_96 = arith.constant 0 : index
    %71 = vector.load %arg2[%c2_94, %c0_95, %c0_96] : memref<5x96x256xf32, #tpu.memory_space<vmem>>, vector<1x96x256xf32>
    %72 = vector.shape_cast %71 : vector<1x96x256xf32> to vector<96x256xf32>
    %cst_97 = arith.constant dense<0.000000e+00> : vector<7x256xf32>
    %73 = tpu.matmul %70, %72, %cst_97 {dimension_numbers = #tpu.dot_dimension_numbers<[1], [0], [0], [1], [0, 0, 1, 1], [], []>} : vector<7x96xf32>, vector<96x256xf32>, vector<7x256xf32> -> vector<7x256xf32>
    %74 = arith.addf %68, %73 : vector<7x256xf32>
    %c0_98 = arith.constant 0 : index
    %c1_99 = arith.constant 1 : index
    %c1_100 = arith.constant 1 : index
    %c0_101 = arith.constant 0 : index
    %75 = vector.load %arg1[%c0_98, %c1_99, %c1_100, %c0_101] : memref<1x4x8x96xf32, #tpu.memory_space<vmem>>, vector<1x1x7x96xf32>
    %76 = vector.shape_cast %75 : vector<1x1x7x96xf32> to vector<7x96xf32>
    %c3_102 = arith.constant 3 : index
    %c0_103 = arith.constant 0 : index
    %c0_104 = arith.constant 0 : index
    %77 = vector.load %arg2[%c3_102, %c0_103, %c0_104] : memref<5x96x256xf32, #tpu.memory_space<vmem>>, vector<1x96x256xf32>
    %78 = vector.shape_cast %77 : vector<1x96x256xf32> to vector<96x256xf32>
    %cst_105 = arith.constant dense<0.000000e+00> : vector<7x256xf32>
    %79 = tpu.matmul %76, %78, %cst_105 {dimension_numbers = #tpu.dot_dimension_numbers<[1], [0], [0], [1], [0, 0, 1, 1], [], []>} : vector<7x96xf32>, vector<96x256xf32>, vector<7x256xf32> -> vector<7x256xf32>
    %80 = arith.addf %74, %79 : vector<7x256xf32>
    %c0_106 = arith.constant 0 : index
    %c2_107 = arith.constant 2 : index
    %c1_108 = arith.constant 1 : index
    %c0_109 = arith.constant 0 : index
    %81 = vector.load %arg1[%c0_106, %c2_107, %c1_108, %c0_109] : memref<1x4x8x96xf32, #tpu.memory_space<vmem>>, vector<1x1x7x96xf32>
    %82 = vector.shape_cast %81 : vector<1x1x7x96xf32> to vector<7x96xf32>
    %c4_110 = arith.constant 4 : index
    %c0_111 = arith.constant 0 : index
    %c0_112 = arith.constant 0 : index
    %83 = vector.load %arg2[%c4_110, %c0_111, %c0_112] : memref<5x96x256xf32, #tpu.memory_space<vmem>>, vector<1x96x256xf32>
    %84 = vector.shape_cast %83 : vector<1x96x256xf32> to vector<96x256xf32>
    %cst_113 = arith.constant dense<0.000000e+00> : vector<7x256xf32>
    %85 = tpu.matmul %82, %84, %cst_113 {dimension_numbers = #tpu.dot_dimension_numbers<[1], [0], [0], [1], [0, 0, 1, 1], [], []>} : vector<7x96xf32>, vector<96x256xf32>, vector<7x256xf32> -> vector<7x256xf32>
    %86 = arith.addf %80, %85 : vector<7x256xf32>
    %c0_114 = arith.constant 0 : index
    %c3_115 = arith.constant 3 : index
    %c0_116 = arith.constant 0 : index
    %c0_117 = arith.constant 0 : index
    %87 = vector.load %arg1[%c0_114, %c3_115, %c0_116, %c0_117] : memref<1x4x8x96xf32, #tpu.memory_space<vmem>>, vector<1x1x7x96xf32>
    %88 = vector.shape_cast %87 : vector<1x1x7x96xf32> to vector<7x96xf32>
    %c0_118 = arith.constant 0 : index
    %c0_119 = arith.constant 0 : index
    %c0_120 = arith.constant 0 : index
    %89 = vector.load %arg2[%c0_118, %c0_119, %c0_120] : memref<5x96x256xf32, #tpu.memory_space<vmem>>, vector<1x96x256xf32>
    %90 = vector.shape_cast %89 : vector<1x96x256xf32> to vector<96x256xf32>
    %cst_121 = arith.constant dense<0.000000e+00> : vector<7x256xf32>
    %91 = tpu.matmul %88, %90, %cst_121 {dimension_numbers = #tpu.dot_dimension_numbers<[1], [0], [0], [1], [0, 0, 1, 1], [], []>} : vector<7x96xf32>, vector<96x256xf32>, vector<7x256xf32> -> vector<7x256xf32>
    %c0_122 = arith.constant 0 : index
    %c0_123 = arith.constant 0 : index
    %c1_124 = arith.constant 1 : index
    %c0_125 = arith.constant 0 : index
    %92 = vector.load %arg1[%c0_122, %c0_123, %c1_124, %c0_125] : memref<1x4x8x96xf32, #tpu.memory_space<vmem>>, vector<1x1x7x96xf32>
    %93 = vector.shape_cast %92 : vector<1x1x7x96xf32> to vector<7x96xf32>
    %c1_126 = arith.constant 1 : index
    %c0_127 = arith.constant 0 : index
    %c0_128 = arith.constant 0 : index
    %94 = vector.load %arg2[%c1_126, %c0_127, %c0_128] : memref<5x96x256xf32, #tpu.memory_space<vmem>>, vector<1x96x256xf32>
    %95 = vector.shape_cast %94 : vector<1x96x256xf32> to vector<96x256xf32>
    %cst_129 = arith.constant dense<0.000000e+00> : vector<7x256xf32>
    %96 = tpu.matmul %93, %95, %cst_129 {dimension_numbers = #tpu.dot_dimension_numbers<[1], [0], [0], [1], [0, 0, 1, 1], [], []>} : vector<7x96xf32>, vector<96x256xf32>, vector<7x256xf32> -> vector<7x256xf32>
    %97 = arith.addf %91, %96 : vector<7x256xf32>
    %c0_130 = arith.constant 0 : index
    %c1_131 = arith.constant 1 : index
    %c1_132 = arith.constant 1 : index
    %c0_133 = arith.constant 0 : index
    %98 = vector.load %arg1[%c0_130, %c1_131, %c1_132, %c0_133] : memref<1x4x8x96xf32, #tpu.memory_space<vmem>>, vector<1x1x7x96xf32>
    %99 = vector.shape_cast %98 : vector<1x1x7x96xf32> to vector<7x96xf32>
    %c2_134 = arith.constant 2 : index
    %c0_135 = arith.constant 0 : index
    %c0_136 = arith.constant 0 : index
    %100 = vector.load %arg2[%c2_134, %c0_135, %c0_136] : memref<5x96x256xf32, #tpu.memory_space<vmem>>, vector<1x96x256xf32>
    %101 = vector.shape_cast %100 : vector<1x96x256xf32> to vector<96x256xf32>
    %cst_137 = arith.constant dense<0.000000e+00> : vector<7x256xf32>
    %102 = tpu.matmul %99, %101, %cst_137 {dimension_numbers = #tpu.dot_dimension_numbers<[1], [0], [0], [1], [0, 0, 1, 1], [], []>} : vector<7x96xf32>, vector<96x256xf32>, vector<7x256xf32> -> vector<7x256xf32>
    %103 = arith.addf %97, %102 : vector<7x256xf32>
    %c0_138 = arith.constant 0 : index
    %c2_139 = arith.constant 2 : index
    %c1_140 = arith.constant 1 : index
    %c0_141 = arith.constant 0 : index
    %104 = vector.load %arg1[%c0_138, %c2_139, %c1_140, %c0_141] : memref<1x4x8x96xf32, #tpu.memory_space<vmem>>, vector<1x1x7x96xf32>
    %105 = vector.shape_cast %104 : vector<1x1x7x96xf32> to vector<7x96xf32>
    %c3_142 = arith.constant 3 : index
    %c0_143 = arith.constant 0 : index
    %c0_144 = arith.constant 0 : index
    %106 = vector.load %arg2[%c3_142, %c0_143, %c0_144] : memref<5x96x256xf32, #tpu.memory_space<vmem>>, vector<1x96x256xf32>
    %107 = vector.shape_cast %106 : vector<1x96x256xf32> to vector<96x256xf32>
    %cst_145 = arith.constant dense<0.000000e+00> : vector<7x256xf32>
    %108 = tpu.matmul %105, %107, %cst_145 {dimension_numbers = #tpu.dot_dimension_numbers<[1], [0], [0], [1], [0, 0, 1, 1], [], []>} : vector<7x96xf32>, vector<96x256xf32>, vector<7x256xf32> -> vector<7x256xf32>
    %109 = arith.addf %103, %108 : vector<7x256xf32>
    %c0_146 = arith.constant 0 : index
    %c3_147 = arith.constant 3 : index
    %c1_148 = arith.constant 1 : index
    %c0_149 = arith.constant 0 : index
    %110 = vector.load %arg1[%c0_146, %c3_147, %c1_148, %c0_149] : memref<1x4x8x96xf32, #tpu.memory_space<vmem>>, vector<1x1x7x96xf32>
    %111 = vector.shape_cast %110 : vector<1x1x7x96xf32> to vector<7x96xf32>
    %c4_150 = arith.constant 4 : index
    %c0_151 = arith.constant 0 : index
    %c0_152 = arith.constant 0 : index
    %112 = vector.load %arg2[%c4_150, %c0_151, %c0_152] : memref<5x96x256xf32, #tpu.memory_space<vmem>>, vector<1x96x256xf32>
    %113 = vector.shape_cast %112 : vector<1x96x256xf32> to vector<96x256xf32>
    %cst_153 = arith.constant dense<0.000000e+00> : vector<7x256xf32>
    %114 = tpu.matmul %111, %113, %cst_153 {dimension_numbers = #tpu.dot_dimension_numbers<[1], [0], [0], [1], [0, 0, 1, 1], [], []>} : vector<7x96xf32>, vector<96x256xf32>, vector<7x256xf32> -> vector<7x256xf32>
    %115 = arith.addf %109, %114 : vector<7x256xf32>
    %116 = arith.maximumf %28, %57 : vector<7x256xf32>
    %117 = arith.maximumf %86, %115 : vector<7x256xf32>
    %c0_154 = arith.constant 0 : index
    %c0_155 = arith.constant 0 : index
    %118 = vector.load %arg3[%c0_154, %c0_155] : memref<1x128xf32, #tpu.memory_space<vmem>>, vector<1x128xf32>
    %119 = vector.extract_strided_slice %116 {offsets = [0, 0], sizes = [7, 128], strides = [1, 1]} : vector<7x256xf32> to vector<7x128xf32>
    %120 = vector.extract_strided_slice %116 {offsets = [0, 128], sizes = [7, 128], strides = [1, 1]} : vector<7x256xf32> to vector<7x128xf32>
    %121 = arith.maximumf %119, %120 : vector<7x128xf32>
    %122 = vector.broadcast %118 : vector<1x128xf32> to vector<7x128xf32>
    %123 = arith.addf %121, %122 : vector<7x128xf32>
    %cst_156 = arith.constant 0.000000e+00 : f32
    %124 = vector.broadcast %cst_156 : f32 to vector<7x128xf32>
    %125 = arith.maximumf %123, %124 : vector<7x128xf32>
    %126 = vector.extract_strided_slice %117 {offsets = [0, 0], sizes = [7, 128], strides = [1, 1]} : vector<7x256xf32> to vector<7x128xf32>
    %127 = vector.extract_strided_slice %117 {offsets = [0, 128], sizes = [7, 128], strides = [1, 1]} : vector<7x256xf32> to vector<7x128xf32>
    %128 = arith.maximumf %126, %127 : vector<7x128xf32>
    %129 = vector.broadcast %118 : vector<1x128xf32> to vector<7x128xf32>
    %130 = arith.addf %128, %129 : vector<7x128xf32>
    %cst_157 = arith.constant 0.000000e+00 : f32
    %131 = vector.broadcast %cst_157 : f32 to vector<7x128xf32>
    %132 = arith.maximumf %130, %131 : vector<7x128xf32>
    %133 = vector.extract_strided_slice %125 {offsets = [0, 0], sizes = [5, 128], strides = [1, 1]} : vector<7x128xf32> to vector<5x128xf32>
    %c0_158 = arith.constant 0 : index
    %c0_159 = arith.constant 0 : index
    %c0_160 = arith.constant 0 : index
    %134 = vector.load %arg4[%c0_158, %c0_159, %c0_160] : memref<5x128x256xf32, #tpu.memory_space<vmem>>, vector<1x128x256xf32>
    %135 = vector.shape_cast %134 : vector<1x128x256xf32> to vector<128x256xf32>
    %cst_161 = arith.constant dense<0.000000e+00> : vector<5x256xf32>
    %136 = tpu.matmul %133, %135, %cst_161 {dimension_numbers = #tpu.dot_dimension_numbers<[1], [0], [0], [1], [0, 0, 1, 1], [], []>} : vector<5x128xf32>, vector<128x256xf32>, vector<5x256xf32> -> vector<5x256xf32>
    %137 = vector.extract_strided_slice %132 {offsets = [0, 0], sizes = [5, 128], strides = [1, 1]} : vector<7x128xf32> to vector<5x128xf32>
    %c1_162 = arith.constant 1 : index
    %c0_163 = arith.constant 0 : index
    %c0_164 = arith.constant 0 : index
    %138 = vector.load %arg4[%c1_162, %c0_163, %c0_164] : memref<5x128x256xf32, #tpu.memory_space<vmem>>, vector<1x128x256xf32>
    %139 = vector.shape_cast %138 : vector<1x128x256xf32> to vector<128x256xf32>
    %cst_165 = arith.constant dense<0.000000e+00> : vector<5x256xf32>
    %140 = tpu.matmul %137, %139, %cst_165 {dimension_numbers = #tpu.dot_dimension_numbers<[1], [0], [0], [1], [0, 0, 1, 1], [], []>} : vector<5x128xf32>, vector<128x256xf32>, vector<5x256xf32> -> vector<5x256xf32>
    %141 = arith.addf %136, %140 : vector<5x256xf32>
    %142 = vector.extract_strided_slice %125 {offsets = [1, 0], sizes = [5, 128], strides = [1, 1]} : vector<7x128xf32> to vector<5x128xf32>
    %c2_166 = arith.constant 2 : index
    %c0_167 = arith.constant 0 : index
    %c0_168 = arith.constant 0 : index
    %143 = vector.load %arg4[%c2_166, %c0_167, %c0_168] : memref<5x128x256xf32, #tpu.memory_space<vmem>>, vector<1x128x256xf32>
    %144 = vector.shape_cast %143 : vector<1x128x256xf32> to vector<128x256xf32>
    %cst_169 = arith.constant dense<0.000000e+00> : vector<5x256xf32>
    %145 = tpu.matmul %142, %144, %cst_169 {dimension_numbers = #tpu.dot_dimension_numbers<[1], [0], [0], [1], [0, 0, 1, 1], [], []>} : vector<5x128xf32>, vector<128x256xf32>, vector<5x256xf32> -> vector<5x256xf32>
    %146 = arith.addf %141, %145 : vector<5x256xf32>
    %147 = vector.extract_strided_slice %132 {offsets = [1, 0], sizes = [5, 128], strides = [1, 1]} : vector<7x128xf32> to vector<5x128xf32>
    %c3_170 = arith.constant 3 : index
    %c0_171 = arith.constant 0 : index
    %c0_172 = arith.constant 0 : index
    %148 = vector.load %arg4[%c3_170, %c0_171, %c0_172] : memref<5x128x256xf32, #tpu.memory_space<vmem>>, vector<1x128x256xf32>
    %149 = vector.shape_cast %148 : vector<1x128x256xf32> to vector<128x256xf32>
    %cst_173 = arith.constant dense<0.000000e+00> : vector<5x256xf32>
    %150 = tpu.matmul %147, %149, %cst_173 {dimension_numbers = #tpu.dot_dimension_numbers<[1], [0], [0], [1], [0, 0, 1, 1], [], []>} : vector<5x128xf32>, vector<128x256xf32>, vector<5x256xf32> -> vector<5x256xf32>
    %151 = arith.addf %146, %150 : vector<5x256xf32>
    %152 = vector.extract_strided_slice %125 {offsets = [2, 0], sizes = [5, 128], strides = [1, 1]} : vector<7x128xf32> to vector<5x128xf32>
    %c4_174 = arith.constant 4 : index
    %c0_175 = arith.constant 0 : index
    %c0_176 = arith.constant 0 : index
    %153 = vector.load %arg4[%c4_174, %c0_175, %c0_176] : memref<5x128x256xf32, #tpu.memory_space<vmem>>, vector<1x128x256xf32>
    %154 = vector.shape_cast %153 : vector<1x128x256xf32> to vector<128x256xf32>
    %cst_177 = arith.constant dense<0.000000e+00> : vector<5x256xf32>
    %155 = tpu.matmul %152, %154, %cst_177 {dimension_numbers = #tpu.dot_dimension_numbers<[1], [0], [0], [1], [0, 0, 1, 1], [], []>} : vector<5x128xf32>, vector<128x256xf32>, vector<5x256xf32> -> vector<5x256xf32>
    %156 = arith.addf %151, %155 : vector<5x256xf32>
    %157 = vector.extract_strided_slice %132 {offsets = [0, 0], sizes = [5, 128], strides = [1, 1]} : vector<7x128xf32> to vector<5x128xf32>
    %c0_178 = arith.constant 0 : index
    %c0_179 = arith.constant 0 : index
    %c0_180 = arith.constant 0 : index
    %158 = vector.load %arg4[%c0_178, %c0_179, %c0_180] : memref<5x128x256xf32, #tpu.memory_space<vmem>>, vector<1x128x256xf32>
    %159 = vector.shape_cast %158 : vector<1x128x256xf32> to vector<128x256xf32>
    %cst_181 = arith.constant dense<0.000000e+00> : vector<5x256xf32>
    %160 = tpu.matmul %157, %159, %cst_181 {dimension_numbers = #tpu.dot_dimension_numbers<[1], [0], [0], [1], [0, 0, 1, 1], [], []>} : vector<5x128xf32>, vector<128x256xf32>, vector<5x256xf32> -> vector<5x256xf32>
    %161 = vector.extract_strided_slice %125 {offsets = [1, 0], sizes = [5, 128], strides = [1, 1]} : vector<7x128xf32> to vector<5x128xf32>
    %c1_182 = arith.constant 1 : index
    %c0_183 = arith.constant 0 : index
    %c0_184 = arith.constant 0 : index
    %162 = vector.load %arg4[%c1_182, %c0_183, %c0_184] : memref<5x128x256xf32, #tpu.memory_space<vmem>>, vector<1x128x256xf32>
    %163 = vector.shape_cast %162 : vector<1x128x256xf32> to vector<128x256xf32>
    %cst_185 = arith.constant dense<0.000000e+00> : vector<5x256xf32>
    %164 = tpu.matmul %161, %163, %cst_185 {dimension_numbers = #tpu.dot_dimension_numbers<[1], [0], [0], [1], [0, 0, 1, 1], [], []>} : vector<5x128xf32>, vector<128x256xf32>, vector<5x256xf32> -> vector<5x256xf32>
    %165 = arith.addf %160, %164 : vector<5x256xf32>
    %166 = vector.extract_strided_slice %132 {offsets = [1, 0], sizes = [5, 128], strides = [1, 1]} : vector<7x128xf32> to vector<5x128xf32>
    %c2_186 = arith.constant 2 : index
    %c0_187 = arith.constant 0 : index
    %c0_188 = arith.constant 0 : index
    %167 = vector.load %arg4[%c2_186, %c0_187, %c0_188] : memref<5x128x256xf32, #tpu.memory_space<vmem>>, vector<1x128x256xf32>
    %168 = vector.shape_cast %167 : vector<1x128x256xf32> to vector<128x256xf32>
    %cst_189 = arith.constant dense<0.000000e+00> : vector<5x256xf32>
    %169 = tpu.matmul %166, %168, %cst_189 {dimension_numbers = #tpu.dot_dimension_numbers<[1], [0], [0], [1], [0, 0, 1, 1], [], []>} : vector<5x128xf32>, vector<128x256xf32>, vector<5x256xf32> -> vector<5x256xf32>
    %170 = arith.addf %165, %169 : vector<5x256xf32>
    %171 = vector.extract_strided_slice %125 {offsets = [2, 0], sizes = [5, 128], strides = [1, 1]} : vector<7x128xf32> to vector<5x128xf32>
    %c3_190 = arith.constant 3 : index
    %c0_191 = arith.constant 0 : index
    %c0_192 = arith.constant 0 : index
    %172 = vector.load %arg4[%c3_190, %c0_191, %c0_192] : memref<5x128x256xf32, #tpu.memory_space<vmem>>, vector<1x128x256xf32>
    %173 = vector.shape_cast %172 : vector<1x128x256xf32> to vector<128x256xf32>
    %cst_193 = arith.constant dense<0.000000e+00> : vector<5x256xf32>
    %174 = tpu.matmul %171, %173, %cst_193 {dimension_numbers = #tpu.dot_dimension_numbers<[1], [0], [0], [1], [0, 0, 1, 1], [], []>} : vector<5x128xf32>, vector<128x256xf32>, vector<5x256xf32> -> vector<5x256xf32>
    %175 = arith.addf %170, %174 : vector<5x256xf32>
    %176 = vector.extract_strided_slice %132 {offsets = [2, 0], sizes = [5, 128], strides = [1, 1]} : vector<7x128xf32> to vector<5x128xf32>
    %c4_194 = arith.constant 4 : index
    %c0_195 = arith.constant 0 : index
    %c0_196 = arith.constant 0 : index
    %177 = vector.load %arg4[%c4_194, %c0_195, %c0_196] : memref<5x128x256xf32, #tpu.memory_space<vmem>>, vector<1x128x256xf32>
    %178 = vector.shape_cast %177 : vector<1x128x256xf32> to vector<128x256xf32>
    %cst_197 = arith.constant dense<0.000000e+00> : vector<5x256xf32>
    %179 = tpu.matmul %176, %178, %cst_197 {dimension_numbers = #tpu.dot_dimension_numbers<[1], [0], [0], [1], [0, 0, 1, 1], [], []>} : vector<5x128xf32>, vector<128x256xf32>, vector<5x256xf32> -> vector<5x256xf32>
    %180 = arith.addf %175, %179 : vector<5x256xf32>
    %181 = arith.maximumf %156, %180 : vector<5x256xf32>
    %182 = vector.extract_strided_slice %181 {offsets = [0, 0], sizes = [5, 128], strides = [1, 1]} : vector<5x256xf32> to vector<5x128xf32>
    %183 = vector.extract_strided_slice %181 {offsets = [0, 128], sizes = [5, 128], strides = [1, 1]} : vector<5x256xf32> to vector<5x128xf32>
    %184 = arith.maximumf %182, %183 : vector<5x128xf32>
    %c0_198 = arith.constant 0 : index
    %c0_199 = arith.constant 0 : index
    %185 = vector.load %arg5[%c0_198, %c0_199] : memref<1x128xf32, #tpu.memory_space<vmem>>, vector<1x128xf32>
    %186 = vector.broadcast %185 : vector<1x128xf32> to vector<5x128xf32>
    %187 = arith.addf %184, %186 : vector<5x128xf32>
    %cst_200 = arith.constant 0.000000e+00 : f32
    %188 = vector.broadcast %cst_200 : f32 to vector<5x128xf32>
    %189 = arith.maximumf %187, %188 : vector<5x128xf32>
    %190 = vector.extract_strided_slice %189 {offsets = [0, 0], sizes = [1, 128], strides = [1, 1]} : vector<5x128xf32> to vector<1x128xf32>
    %c0_201 = arith.constant 0 : index
    %c0_202 = arith.constant 0 : index
    %c0_203 = arith.constant 0 : index
    %191 = vector.load %arg6[%c0_201, %c0_202, %c0_203] : memref<5x128x128xf32, #tpu.memory_space<vmem>>, vector<1x128x128xf32>
    %192 = vector.shape_cast %191 : vector<1x128x128xf32> to vector<128x128xf32>
    %cst_204 = arith.constant dense<0.000000e+00> : vector<1x128xf32>
    %193 = tpu.matmul %190, %192, %cst_204 {dimension_numbers = #tpu.dot_dimension_numbers<[1], [0], [0], [1], [0, 0, 1, 1], [], []>} : vector<1x128xf32>, vector<128x128xf32>, vector<1x128xf32> -> vector<1x128xf32>
    %194 = vector.extract_strided_slice %189 {offsets = [1, 0], sizes = [1, 128], strides = [1, 1]} : vector<5x128xf32> to vector<1x128xf32>
    %c1_205 = arith.constant 1 : index
    %c0_206 = arith.constant 0 : index
    %c0_207 = arith.constant 0 : index
    %195 = vector.load %arg6[%c1_205, %c0_206, %c0_207] : memref<5x128x128xf32, #tpu.memory_space<vmem>>, vector<1x128x128xf32>
    %196 = vector.shape_cast %195 : vector<1x128x128xf32> to vector<128x128xf32>
    %cst_208 = arith.constant dense<0.000000e+00> : vector<1x128xf32>
    %197 = tpu.matmul %194, %196, %cst_208 {dimension_numbers = #tpu.dot_dimension_numbers<[1], [0], [0], [1], [0, 0, 1, 1], [], []>} : vector<1x128xf32>, vector<128x128xf32>, vector<1x128xf32> -> vector<1x128xf32>
    %198 = arith.addf %193, %197 : vector<1x128xf32>
    %199 = vector.extract_strided_slice %189 {offsets = [2, 0], sizes = [1, 128], strides = [1, 1]} : vector<5x128xf32> to vector<1x128xf32>
    %c2_209 = arith.constant 2 : index
    %c0_210 = arith.constant 0 : index
    %c0_211 = arith.constant 0 : index
    %200 = vector.load %arg6[%c2_209, %c0_210, %c0_211] : memref<5x128x128xf32, #tpu.memory_space<vmem>>, vector<1x128x128xf32>
    %201 = vector.shape_cast %200 : vector<1x128x128xf32> to vector<128x128xf32>
    %cst_212 = arith.constant dense<0.000000e+00> : vector<1x128xf32>
    %202 = tpu.matmul %199, %201, %cst_212 {dimension_numbers = #tpu.dot_dimension_numbers<[1], [0], [0], [1], [0, 0, 1, 1], [], []>} : vector<1x128xf32>, vector<128x128xf32>, vector<1x128xf32> -> vector<1x128xf32>
    %203 = arith.addf %198, %202 : vector<1x128xf32>
    %204 = vector.extract_strided_slice %189 {offsets = [3, 0], sizes = [1, 128], strides = [1, 1]} : vector<5x128xf32> to vector<1x128xf32>
    %c3_213 = arith.constant 3 : index
    %c0_214 = arith.constant 0 : index
    %c0_215 = arith.constant 0 : index
    %205 = vector.load %arg6[%c3_213, %c0_214, %c0_215] : memref<5x128x128xf32, #tpu.memory_space<vmem>>, vector<1x128x128xf32>
    %206 = vector.shape_cast %205 : vector<1x128x128xf32> to vector<128x128xf32>
    %cst_216 = arith.constant dense<0.000000e+00> : vector<1x128xf32>
    %207 = tpu.matmul %204, %206, %cst_216 {dimension_numbers = #tpu.dot_dimension_numbers<[1], [0], [0], [1], [0, 0, 1, 1], [], []>} : vector<1x128xf32>, vector<128x128xf32>, vector<1x128xf32> -> vector<1x128xf32>
    %208 = arith.addf %203, %207 : vector<1x128xf32>
    %209 = vector.extract_strided_slice %189 {offsets = [4, 0], sizes = [1, 128], strides = [1, 1]} : vector<5x128xf32> to vector<1x128xf32>
    %c4_217 = arith.constant 4 : index
    %c0_218 = arith.constant 0 : index
    %c0_219 = arith.constant 0 : index
    %210 = vector.load %arg6[%c4_217, %c0_218, %c0_219] : memref<5x128x128xf32, #tpu.memory_space<vmem>>, vector<1x128x128xf32>
    %211 = vector.shape_cast %210 : vector<1x128x128xf32> to vector<128x128xf32>
    %cst_220 = arith.constant dense<0.000000e+00> : vector<1x128xf32>
    %212 = tpu.matmul %209, %211, %cst_220 {dimension_numbers = #tpu.dot_dimension_numbers<[1], [0], [0], [1], [0, 0, 1, 1], [], []>} : vector<1x128xf32>, vector<128x128xf32>, vector<1x128xf32> -> vector<1x128xf32>
    %213 = arith.addf %208, %212 : vector<1x128xf32>
    %c0_221 = arith.constant 0 : index
    %c0_222 = arith.constant 0 : index
    %214 = vector.load %arg7[%c0_221, %c0_222] : memref<1x128xf32, #tpu.memory_space<vmem>>, vector<1x128xf32>
    %215 = arith.addf %213, %214 : vector<1x128xf32>
    %cst_223 = arith.constant 0.000000e+00 : f32
    %216 = vector.broadcast %cst_223 : f32 to vector<1x128xf32>
    %217 = arith.maximumf %215, %216 : vector<1x128xf32>
    %c0_224 = arith.constant 0 : index
    %c0_225 = arith.constant 0 : index
    %218 = vector.load %arg8[%c0_224, %c0_225] : memref<128x128xf32, #tpu.memory_space<vmem>>, vector<128x128xf32>
    %cst_226 = arith.constant dense<0.000000e+00> : vector<1x128xf32>
    %219 = tpu.matmul %217, %218, %cst_226 {dimension_numbers = #tpu.dot_dimension_numbers<[1], [0], [0], [1], [0, 0, 1, 1], [], []>} : vector<1x128xf32>, vector<128x128xf32>, vector<1x128xf32> -> vector<1x128xf32>
    %c0_227 = arith.constant 0 : index
    %c0_228 = arith.constant 0 : index
    %220 = vector.load %arg9[%c0_227, %c0_228] : memref<1x128xf32, #tpu.memory_space<vmem>>, vector<1x128xf32>
    %221 = arith.addf %219, %220 : vector<1x128xf32>
    %cst_229 = arith.constant 0.000000e+00 : f32
    %222 = vector.broadcast %cst_229 : f32 to vector<1x128xf32>
    %223 = arith.maximumf %221, %222 : vector<1x128xf32>
    %c0_230 = arith.constant 0 : index
    %c0_231 = arith.constant 0 : index
    %224 = vector.load %arg10[%c0_230, %c0_231] : memref<128x128xf32, #tpu.memory_space<vmem>>, vector<128x128xf32>
    %cst_232 = arith.constant dense<0.000000e+00> : vector<1x128xf32>
    %225 = tpu.matmul %223, %224, %cst_232 {dimension_numbers = #tpu.dot_dimension_numbers<[1], [0], [0], [1], [0, 0, 1, 1], [], []>} : vector<1x128xf32>, vector<128x128xf32>, vector<1x128xf32> -> vector<1x128xf32>
    %c0_233 = arith.constant 0 : index
    %c0_234 = arith.constant 0 : index
    %226 = vector.load %arg11[%c0_233, %c0_234] : memref<1x128xf32, #tpu.memory_space<vmem>>, vector<1x128xf32>
    %227 = arith.addf %225, %226 : vector<1x128xf32>
    %c0_235 = arith.constant 0 : index
    %c0_236 = arith.constant 0 : index
    %c0_237 = arith.constant 0 : index
    %228 = vector.load %arg12[%c0_235, %c0_236, %c0_237] : memref<1x1x128xf32, #tpu.memory_space<vmem>>, vector<1x1x128xf32>
    %229 = vector.shape_cast %228 : vector<1x1x128xf32> to vector<1x128xf32>
    %230 = vector.shape_cast %227 : vector<1x128xf32> to vector<1x1x128xf32>
    tpu.vector_store %arg12[%c0_235, %c0_236, %c0_237], %230 {strides = array<i32>} : memref<1x1x128xf32, #tpu.memory_space<vmem>>, vector<1x1x128xf32>,
    return
  }
  func.func @transform_0(%arg0: i32) -> (i32, i32, i32, i32) {
    %c0_i32 = arith.constant 0 : i32
    %c0_i32_0 = arith.constant 0 : i32
    %c0_i32_1 = arith.constant 0 : i32
    %c0_i32_2 = arith.constant 0 : i32
    return %arg0, %c0_i32, %c0_i32_0, %c0_i32_1 : i32, i32, i32, i32
  }
  func.func @transform_1(%arg0: i32) -> (i32, i32, i32) {
    %c0_i32 = arith.constant 0 : i32
    %c0_i32_0 = arith.constant 0 : i32
    %c0_i32_1 = arith.constant 0 : i32
    %c0_i32_2 = arith.constant 0 : i32
    return %c0_i32, %c0_i32_0, %c0_i32_1 : i32, i32, i32
  }
  func.func @transform_2(%arg0: i32) -> (i32, i32) {
    %c0_i32 = arith.constant 0 : i32
    %c0_i32_0 = arith.constant 0 : i32
    %c0_i32_1 = arith.constant 0 : i32
    return %c0_i32, %c0_i32_0 : i32, i32
  }
  func.func @transform_3(%arg0: i32) -> (i32, i32, i32) {
    %c0_i32 = arith.constant 0 : i32
    %c0_i32_0 = arith.constant 0 : i32
    %c0_i32_1 = arith.constant 0 : i32
    %c0_i32_2 = arith.constant 0 : i32
    return %c0_i32, %c0_i32_0, %c0_i32_1 : i32, i32, i32
  }
  func.func @transform_4(%arg0: i32) -> (i32, i32) {
    %c0_i32 = arith.constant 0 : i32
    %c0_i32_0 = arith.constant 0 : i32
    %c0_i32_1 = arith.constant 0 : i32
    return %c0_i32, %c0_i32_0 : i32, i32
  }
  func.func @transform_5(%arg0: i32) -> (i32, i32, i32) {
    %c0_i32 = arith.constant 0 : i32
    %c0_i32_0 = arith.constant 0 : i32
    %c0_i32_1 = arith.constant 0 : i32
    %c0_i32_2 = arith.constant 0 : i32
    return %c0_i32, %c0_i32_0, %c0_i32_1 : i32, i32, i32
  }
  func.func @transform_6(%arg0: i32) -> (i32, i32) {
    %c0_i32 = arith.constant 0 : i32
    %c0_i32_0 = arith.constant 0 : i32
    %c0_i32_1 = arith.constant 0 : i32
    return %c0_i32, %c0_i32_0 : i32, i32
  }
  func.func @transform_7(%arg0: i32) -> (i32, i32) {
    %c0_i32 = arith.constant 0 : i32
    %c0_i32_0 = arith.constant 0 : i32
    %c0_i32_1 = arith.constant 0 : i32
    return %c0_i32, %c0_i32_0 : i32, i32
  }
  func.func @transform_8(%arg0: i32) -> (i32, i32) {
    %c0_i32 = arith.constant 0 : i32
    %c0_i32_0 = arith.constant 0 : i32
    %c0_i32_1 = arith.constant 0 : i32
    return %c0_i32, %c0_i32_0 : i32, i32
  }
  func.func @transform_9(%arg0: i32) -> (i32, i32) {
    %c0_i32 = arith.constant 0 : i32
    %c0_i32_0 = arith.constant 0 : i32
    %c0_i32_1 = arith.constant 0 : i32
    return %c0_i32, %c0_i32_0 : i32, i32
  }
  func.func @transform_10(%arg0: i32) -> (i32, i32) {
    %c0_i32 = arith.constant 0 : i32
    %c0_i32_0 = arith.constant 0 : i32
    %c0_i32_1 = arith.constant 0 : i32
    return %c0_i32, %c0_i32_0 : i32, i32
  }
  func.func @transform_11(%arg0: i32) -> (i32, i32, i32) {
    %c0_i32 = arith.constant 0 : i32
    %c0_i32_0 = arith.constant 0 : i32
    %c0_i32_1 = arith.constant 0 : i32
    return %arg0, %c0_i32, %c0_i32_0 : i32, i32, i32
  }
}

</mosaic_0001>

<llo_original>
// kernel: tile.13
$region0: #{tile.13}
  #allocation0 [shape = 's32[1]{0}', space=sflag, size = 0x4, scoped, tag = 'scoped memory for tile.13']
  %s0 = inlined_call_operand.vmem [shape: f32[8], index: 0, kind: input, shape index: {}]
  %s1 = inlined_call_operand.vmem [shape: f32[14,8], index: 1, kind: output, shape index: {}]
  // Predicated region
  $region2: #{tile.13} parent=0 // pred_check
    _
  $region3: #{tile.13} parent=0 // pred_check_branch
    %3 = sbr.rel (0) target = $region5
  $region4: #{tile.13} parent=0 // pred_region
    _
  $region5: #{tile.13} parent=0 // pred_fallthru
    _
  %v4 = vld [vmem:[%s0] ss:$0 sm:$0xff]
  %5 = vst [vmem:[%s1] sm:$0xff] %v4
  %s6 = scalar_lea.vmem %s1, 8
  %7 = vst [vmem:[%s6] sm:$0xff] %v4

// kernel: tile.14
$region0: #{tile.14}
  %s0 = inlined_call_operand.vmem [shape: f32[14,8], index: 0, kind: input, shape index: {}]
  %s1 = inlined_call_operand.vmem [shape: f32[112], index: 1, kind: output, shape index: {}]
  $region1: #{tile.14} parent=0
    #allocation0 [shape = 'u8[4096]{0}', space=vmem, size = 0x1000, scoped, tag = 'scoped mem for output reshape']
    %v2 = vld [vmem:[%s0] sm:$0x1]
    %vm3 = vcmask 64512
    %4 = vst.msk [vmem:[#allocation0] sm:$0x1] %vm3, %v2
    %s5 = scalar_lea.vmem %s0, 13
    %v6 = vld [vmem:[%s5] sm:$0x1]
    %7 = vrot.lane.b32.xlu0 %v6, 104
    %v8 = vpop.permute.xlu0 %7
    %vm9 = vcmask 917312
    %10 = vst.msk [vmem:[#allocation0] sm:$0x1] %vm9, %v8
    %s11 = scalar_lea.vmem %s0, 12
    %v12 = vld [vmem:[%s11] sm:$0x1]
    %13 = vrot.lane.b32.xlu0 %v12, 96
    %v14 = vpop.permute.xlu0 %13
    %vm15 = vcmask 851712
    %16 = vst.msk [vmem:[#allocation0] sm:$0x1] %vm15, %v14
    %s17 = scalar_lea.vmem %s0, 11
    %v18 = vld [vmem:[%s17] sm:$0x1]
    %19 = vrot.lane.b32.xlu0 %v18, 88
    %v20 = vpop.permute.xlu0 %19
    %vm21 = vcmask 786112
    %22 = vst.msk [vmem:[#allocation0] sm:$0x1] %vm21, %v20
    %s23 = scalar_lea.vmem %s0, 10
    %v24 = vld [vmem:[%s23] sm:$0x1]
    %25 = vrot.lane.b32.xlu0 %v24, 80
    %v26 = vpop.permute.xlu0 %25
    %vm27 = vcmask 720512
    %28 = vst.msk [vmem:[#allocation0] sm:$0x1] %vm27, %v26
    %s29 = scalar_lea.vmem %s0, 9
    %v30 = vld [vmem:[%s29] sm:$0x1]
    %31 = vrot.lane.b32.xlu0 %v30, 72
    %v32 = vpop.permute.xlu0 %31
    %vm33 = vcmask 654912
    %34 = vst.msk [vmem:[#allocation0] sm:$0x1] %vm33, %v32
    %s35 = scalar_lea.vmem %s0, 8
    %v36 = vld [vmem:[%s35] sm:$0x1]
    %37 = vrot.lane.b32.xlu0 %v36, 64
    %v38 = vpop.permute.xlu0 %37
    %vm39 = vcmask 589312
    %40 = vst.msk [vmem:[#allocation0] sm:$0x1] %vm39, %v38
    %s41 = scalar_lea.vmem %s0, 7
    %v42 = vld [vmem:[%s41] sm:$0x1]
    %43 = vrot.lane.b32.xlu0 %v42, 56
    %v44 = vpop.permute.xlu0 %43
    %vm45 = vcmask 523712
    %46 = vst.msk [vmem:[#allocation0] sm:$0x1] %vm45, %v44
    %s47 = scalar_lea.vmem %s0, 6
    %v48 = vld [vmem:[%s47] sm:$0x1]
    %49 = vrot.lane.b32.xlu0 %v48, 48
    %v50 = vpop.permute.xlu0 %49
    %vm51 = vcmask 458112
    %52 = vst.msk [vmem:[#allocation0] sm:$0x1] %vm51, %v50
    %s53 = scalar_lea.vmem %s0, 5
    %v54 = vld [vmem:[%s53] sm:$0x1]
    %55 = vrot.lane.b32.xlu0 %v54, 40
    %v56 = vpop.permute.xlu0 %55
    %vm57 = vcmask 392512
    %58 = vst.msk [vmem:[#allocation0] sm:$0x1] %vm57, %v56
    %s59 = scalar_lea.vmem %s0, 4
    %v60 = vld [vmem:[%s59] sm:$0x1]
    %61 = vrot.lane.b32.xlu0 %v60, 32
    %v62 = vpop.permute.xlu0 %61
    %vm63 = vcmask 326912
    %64 = vst.msk [vmem:[#allocation0] sm:$0x1] %vm63, %v62
    %s65 = scalar_lea.vmem %s0, 3
    %v66 = vld [vmem:[%s65] sm:$0x1]
    %67 = vrot.lane.b32.xlu0 %v66, 24
    %v68 = vpop.permute.xlu0 %67
    %vm69 = vcmask 261312
    %70 = vst.msk [vmem:[#allocation0] sm:$0x1] %vm69, %v68
    %s71 = scalar_lea.vmem %s0, 2
    %v72 = vld [vmem:[%s71] sm:$0x1]
    %73 = vrot.lane.b32.xlu0 %v72, 16
    %v74 = vpop.permute.xlu0 %73
    %vm75 = vcmask 195712
    %76 = vst.msk [vmem:[#allocation0] sm:$0x1] %vm75, %v74
    %s77 = scalar_lea.vmem %s0, 1
    %v78 = vld [vmem:[%s77] sm:$0x1]
    %79 = vrot.lane.b32.xlu0 %v78, 8
    %v80 = vpop.permute.xlu0 %79
    %vm81 = vcmask 130112
    %82 = vst.msk [vmem:[#allocation0] sm:$0x1] %vm81, %v80
    %s84 = sshllo.u32 0, 1
    %v86 = vld [vmem:[#allocation0] sm:%s84]
    %s87 = sshllo.u32 0, 1
    %88 = vst [vmem:[%s1] sm:%s87] %v86

// kernel: tile.18
$region0: #{tile.18}
  #allocation0 [shape = 's32[1]{0}', space=sflag, size = 0x4, scoped, tag = 'scoped memory for tile.18']
  %s0 = inlined_call_operand.vmem [shape: f32[16], index: 0, kind: input, shape index: {}]
  %s1 = inlined_call_operand.vmem [shape: f32[5,16], index: 1, kind: output, shape index: {}]
  // Predicated region
  $region2: #{tile.18} parent=0 // pred_check
    _
  $region3: #{tile.18} parent=0 // pred_check_branch
    %3 = sbr.rel (0) target = $region5
  $region4: #{tile.18} parent=0 // pred_region
    _
  $region5: #{tile.18} parent=0 // pred_fallthru
    _
  %v4 = vld [vmem:[%s0] ss:$0 sm:$0xff]
  %5 = vst [vmem:[%s1] sm:$0xff] %v4

// kernel: tile.19
$region0: #{tile.19}
  %s0 = inlined_call_operand.vmem [shape: f32[5,16], index: 0, kind: input, shape index: {}]
  %s1 = inlined_call_operand.vmem [shape: f32[80], index: 1, kind: output, shape index: {}]
  $region1: #{tile.19} parent=0
    #allocation0 [shape = 'u8[4096]{0}', space=vmem, size = 0x1000, scoped, tag = 'scoped mem for output reshape']
    %v2 = vld [vmem:[%s0] sm:$0x1]
    %vm3 = vcmask 130048
    %4 = vst.msk [vmem:[#allocation0] sm:$0x1] %vm3, %v2
    %s5 = scalar_lea.vmem %s0, 4
    %v6 = vld [vmem:[%s5] sm:$0x1]
    %7 = vrot.lane.b32.xlu0 %v6, 64
    %v8 = vpop.permute.xlu0 %7
    %vm9 = vcmask 654848
    %10 = vst.msk [vmem:[#allocation0] sm:$0x1] %vm9, %v8
    %s11 = scalar_lea.vmem %s0, 3
    %v12 = vld [vmem:[%s11] sm:$0x1]
    %13 = vrot.lane.b32.xlu0 %v12, 48
    %v14 = vpop.permute.xlu0 %13
    %vm15 = vcmask 523648
    %16 = vst.msk [vmem:[#allocation0] sm:$0x1] %vm15, %v14
    %s17 = scalar_lea.vmem %s0, 2
    %v18 = vld [vmem:[%s17] sm:$0x1]
    %19 = vrot.lane.b32.xlu0 %v18, 32
    %v20 = vpop.permute.xlu0 %19
    %vm21 = vcmask 392448
    %22 = vst.msk [vmem:[#allocation0] sm:$0x1] %vm21, %v20
    %s23 = scalar_lea.vmem %s0, 1
    %v24 = vld [vmem:[%s23] sm:$0x1]
    %25 = vrot.lane.b32.xlu0 %v24, 16
    %v26 = vpop.permute.xlu0 %25
    %vm27 = vcmask 261248
    %28 = vst.msk [vmem:[#allocation0] sm:$0x1] %vm27, %v26
    %s30 = sshllo.u32 0, 1
    %v32 = vld [vmem:[#allocation0] sm:%s30]
    %s33 = sshllo.u32 0, 1
    %34 = vst [vmem:[%s1] sm:%s33] %v32

// kernel: net_forward.1
$region0: #{net_forward.1}
  #allocation0 [shape = 'u32[]', space=smem, size = 0x4, offset = 0x4, fixed_abs, tag = 'smem constant byte address 0x4 - core index']
  #allocation1 [shape = 'u32[144,128]{1,0:T(1,128)}', space=vmem, size = 0x12000, scoped, tag = 'internal scratch']
  %s0 = inlined_call_operand.vmem [shape: f32[2,4,8,96], index: 0, kind: input, shape index: {}]
  %s1 = inlined_call_operand.vmem [shape: f32[5,96,256], index: 1, kind: input, shape index: {}]
  %s2 = inlined_call_operand.vmem [shape: f32[1,128], index: 2, kind: input, shape index: {}]
  %s3 = inlined_call_operand.vmem [shape: f32[5,128,256], index: 3, kind: input, shape index: {}]
  %s4 = inlined_call_operand.vmem [shape: f32[1,128], index: 4, kind: input, shape index: {}]
  %s5 = inlined_call_operand.vmem [shape: f32[5,128,128], index: 5, kind: input, shape index: {}]
  %s6 = inlined_call_operand.vmem [shape: f32[1,128], index: 6, kind: input, shape index: {}]
  %s7 = inlined_call_operand.vmem [shape: f32[128,128], index: 7, kind: input, shape index: {}]
  %s8 = inlined_call_operand.vmem [shape: f32[1,128], index: 8, kind: input, shape index: {}]
  %s9 = inlined_call_operand.vmem [shape: f32[128,128], index: 9, kind: input, shape index: {}]
  %s10 = inlined_call_operand.vmem [shape: f32[1,128], index: 10, kind: input, shape index: {}]
  %s11 = inlined_call_operand.hbm [shape: f32[2,1,128], index: 11, kind: output, shape index: {}]
  %s12 = sld [smem:[#allocation0]]
  $region77: #{net_forward.1} parent=0
    _
  %s14 = ssub.s32 1, %s12
  %s15 = scalar_select 0, %s14, %s12
  $region1: #{net_forward.1} parent=0
    #allocation2 [shape = 'u8[1024]{0}', space=vmem, size = 0x400, scoped, tag = 'output window, operand 0']
    #allocation3 [shape = 's32[2]{0}', space=sflag, size = 0x8, scoped, tag = 'scoped memory for net_forward.1']
    %16 = vsyncpa [#allocation3], 0
    %s17 = scalar_lea.sflag [#allocation3], 1
    %18 = vsyncpa %s17, 0
    loop: start=0, step=1, limit=4
    $region2: #{net_forward.1} parent=1 // loop_pre_header
      _
    $region3: #{net_forward.1} parent=1 // loop_header
      %s20 = sphi 0, %s24
      %p21 = scmp.ge.s32.totalorder %s20, 4
      %s30 = sphi 0, %s32
      %s33 = sphi 0, %s30
      %s34 = sphi 0, %s33
      %s50 = sphi 0, %s34
      %s54 = sphi 0, %s54
      %s56 = sphi 0, %s54
      %s57 = sphi 0, %s56
      %s71 = sphi 0, %s57
      %s75 = sphi 0, %s75
      %s77 = sphi 0, %s75
      %s78 = sphi 0, %s77
      %s92 = sphi 0, %s78
      %s96 = sphi 0, %s96
      %s98 = sphi 0, %s96
      %s99 = sphi 0, %s98
      %s113 = sphi 0, %s99
      %s117 = sphi 0, %s117
      %s119 = sphi 0, %s117
      %s120 = sphi 0, %s119
      %s134 = sphi 0, %s120
      %s138 = sphi 0, %s138
      %s140 = sphi 0, %s138
      %s141 = sphi 0, %s140
      %s155 = sphi 0, %s141
      %s159 = sphi 0, %s159
      %s161 = sphi 0, %s159
      %s162 = sphi 0, %s161
      %s176 = sphi 0, %s162
      %s180 = sphi 0, %s180
      %s182 = sphi 0, %s180
      %s183 = sphi 0, %s182
      %s197 = sphi 0, %s183
      %s201 = sphi 0, %s201
      %s203 = sphi 0, %s201
      %s204 = sphi 0, %s203
      %s218 = sphi 0, %s204
      %s222 = sphi 0, %s222
      %s224 = sphi 0, %s222
      %s225 = sphi 0, %s224
      %s239 = sphi 0, %s225
      %s243 = sphi 0, %s243
      %s245 = sphi 0, %s243
      %s246 = sphi 0, %s245
      %s260 = sphi 0, %s246
      %s266 = sphi 0, %s268
      %s269 = sphi 0, %s266
      %s270 = sphi 0, %s269
      %s286 = sphi 0, %s270
    $region4: #{net_forward.1} parent=1 // loop_header_branch
      %23 = sbr.rel (%p21) target = $region8
    $region5: #{net_forward.1} parent=1 // loop_body
      %s25 = ssub.s32 %s20, 1
      %s26 = ssub.s32 %s20, 2
      %s27 = sadd.s32 %s20, 1
      %s28 = ssub.s32 %s20, %s27
      %p29 = scmp.eq.s32.totalorder %s28, 0
      %s31 = sadd.s32 %s30, 1
      %s32 = scalar_select %p29, %s30, %s31
      %p35 = pneg %p29
      %p36 = scmp.eq.s32.totalorder %s20, 1
      %p37 = por %p35, %p36
      %p38 = scmp.ne.s32.totalorder %s30, %s33
      %p39 = scmp.eq.s32.totalorder %s20, 0
      %p40 = por %p38, %p39
      %p41 = scmp.ne.s32.totalorder %s30, %s33
      %p42 = scmp.eq.s32.totalorder %s25, 1
      %p43 = por %p41, %p42
      %p44 = scmp.ne.s32.totalorder %s33, %s34
      %p45 = scmp.eq.s32.totalorder %s25, 0
      %p46 = por %p44, %p45
      %p47 = scmp.ne.s32.totalorder %s33, %s34
      %p48 = scmp.eq.s32.totalorder %s26, 1
      %p49 = por %p47, %p48
      %p51 = scmp.ne.s32.totalorder %s34, %s50
      %p52 = scmp.eq.s32.totalorder %s26, 0
      %p53 = por %p51, %p52
      %s55 = sadd.s32 %s54, 1
      %p58 = scmp.eq.s32.totalorder %s20, 1
      %p59 = scmp.ne.s32.totalorder %s54, %s56
      %p60 = scmp.eq.s32.totalorder %s20, 0
      %p61 = por %p59, %p60
      %p62 = scmp.ne.s32.totalorder %s54, %s56
      %p63 = scmp.eq.s32.totalorder %s25, 1
      %p64 = por %p62, %p63
      %p65 = scmp.ne.s32.totalorder %s56, %s57
      %p66 = scmp.eq.s32.totalorder %s25, 0
      %p67 = por %p65, %p66
      %p68 = scmp.ne.s32.totalorder %s56, %s57
      %p69 = scmp.eq.s32.totalorder %s26, 1
      %p70 = por %p68, %p69
      %p72 = scmp.ne.s32.totalorder %s57, %s71
      %p73 = scmp.eq.s32.totalorder %s26, 0
      %p74 = por %p72, %p73
      %s76 = sadd.s32 %s75, 1
      %p79 = scmp.eq.s32.totalorder %s20, 1
      %p80 = scmp.ne.s32.totalorder %s75, %s77
      %p81 = scmp.eq.s32.totalorder %s20, 0
      %p82 = por %p80, %p81
      %p83 = scmp.ne.s32.totalorder %s75, %s77
      %p84 = scmp.eq.s32.totalorder %s25, 1
      %p85 = por %p83, %p84
      %p86 = scmp.ne.s32.totalorder %s77, %s78
      %p87 = scmp.eq.s32.totalorder %s25, 0
      %p88 = por %p86, %p87
      %p89 = scmp.ne.s32.totalorder %s77, %s78
      %p90 = scmp.eq.s32.totalorder %s26, 1
      %p91 = por %p89, %p90
      %p93 = scmp.ne.s32.totalorder %s78, %s92
      %p94 = scmp.eq.s32.totalorder %s26, 0
      %p95 = por %p93, %p94
      %s97 = sadd.s32 %s96, 1
      %p100 = scmp.eq.s32.totalorder %s20, 1
      %p101 = scmp.ne.s32.totalorder %s96, %s98
      %p102 = scmp.eq.s32.totalorder %s20, 0
      %p103 = por %p101, %p102
      %p104 = scmp.ne.s32.totalorder %s96, %s98
      %p105 = scmp.eq.s32.totalorder %s25, 1
      %p106 = por %p104, %p105
      %p107 = scmp.ne.s32.totalorder %s98, %s99
      %p108 = scmp.eq.s32.totalorder %s25, 0
      %p109 = por %p107, %p108
      %p110 = scmp.ne.s32.totalorder %s98, %s99
      %p111 = scmp.eq.s32.totalorder %s26, 1
      %p112 = por %p110, %p111
      %p114 = scmp.ne.s32.totalorder %s99, %s113
      %p115 = scmp.eq.s32.totalorder %s26, 0
      %p116 = por %p114, %p115
      %s118 = sadd.s32 %s117, 1
      %p121 = scmp.eq.s32.totalorder %s20, 1
      %p122 = scmp.ne.s32.totalorder %s117, %s119
      %p123 = scmp.eq.s32.totalorder %s20, 0
      %p124 = por %p122, %p123
      %p125 = scmp.ne.s32.totalorder %s117, %s119
      %p126 = scmp.eq.s32.totalorder %s25, 1
      %p127 = por %p125, %p126
      %p128 = scmp.ne.s32.totalorder %s119, %s120
      %p129 = scmp.eq.s32.totalorder %s25, 0
      %p130 = por %p128, %p129
      %p131 = scmp.ne.s32.totalorder %s119, %s120
      %p132 = scmp.eq.s32.totalorder %s26, 1
      %p133 = por %p131, %p132
      %p135 = scmp.ne.s32.totalorder %s120, %s134
      %p136 = scmp.eq.s32.totalorder %s26, 0
      %p137 = por %p135, %p136
      %s139 = sadd.s32 %s138, 1
      %p142 = scmp.eq.s32.totalorder %s20, 1
      %p143 = scmp.ne.s32.totalorder %s138, %s140
      %p144 = scmp.eq.s32.totalorder %s20, 0
      %p145 = por %p143, %p144
      %p146 = scmp.ne.s32.totalorder %s138, %s140
      %p147 = scmp.eq.s32.totalorder %s25, 1
      %p148 = por %p146, %p147
      %p149 = scmp.ne.s32.totalorder %s140, %s141
      %p150 = scmp.eq.s32.totalorder %s25, 0
      %p151 = por %p149, %p150
      %p152 = scmp.ne.s32.totalorder %s140, %s141
      %p153 = scmp.eq.s32.totalorder %s26, 1
      %p154 = por %p152, %p153
      %p156 = scmp.ne.s32.totalorder %s141, %s155
      %p157 = scmp.eq.s32.totalorder %s26, 0
      %p158 = por %p156, %p157
      %s160 = sadd.s32 %s159, 1
      %p163 = scmp.eq.s32.totalorder %s20, 1
      %p164 = scmp.ne.s32.totalorder %s159, %s161
      %p165 = scmp.eq.s32.totalorder %s20, 0
      %p166 = por %p164, %p165
      %p167 = scmp.ne.s32.totalorder %s159, %s161
      %p168 = scmp.eq.s32.totalorder %s25, 1
      %p169 = por %p167, %p168
      %p170 = scmp.ne.s32.totalorder %s161, %s162
      %p171 = scmp.eq.s32.totalorder %s25, 0
      %p172 = por %p170, %p171
      %p173 = scmp.ne.s32.totalorder %s161, %s162
      %p174 = scmp.eq.s32.totalorder %s26, 1
      %p175 = por %p173, %p174
      %p177 = scmp.ne.s32.totalorder %s162, %s176
      %p178 = scmp.eq.s32.totalorder %s26, 0
      %p179 = por %p177, %p178
      %s181 = sadd.s32 %s180, 1
      %p184 = scmp.eq.s32.totalorder %s20, 1
      %p185 = scmp.ne.s32.totalorder %s180, %s182
      %p186 = scmp.eq.s32.totalorder %s20, 0
      %p187 = por %p185, %p186
      %p188 = scmp.ne.s32.totalorder %s180, %s182
      %p189 = scmp.eq.s32.totalorder %s25, 1
      %p190 = por %p188, %p189
      %p191 = scmp.ne.s32.totalorder %s182, %s183
      %p192 = scmp.eq.s32.totalorder %s25, 0
      %p193 = por %p191, %p192
      %p194 = scmp.ne.s32.totalorder %s182, %s183
      %p195 = scmp.eq.s32.totalorder %s26, 1
      %p196 = por %p194, %p195
      %p198 = scmp.ne.s32.totalorder %s183, %s197
      %p199 = scmp.eq.s32.totalorder %s26, 0
      %p200 = por %p198, %p199
      %s202 = sadd.s32 %s201, 1
      %p205 = scmp.eq.s32.totalorder %s20, 1
      %p206 = scmp.ne.s32.totalorder %s201, %s203
      %p207 = scmp.eq.s32.totalorder %s20, 0
      %p208 = por %p206, %p207
      %p209 = scmp.ne.s32.totalorder %s201, %s203
      %p210 = scmp.eq.s32.totalorder %s25, 1
      %p211 = por %p209, %p210
      %p212 = scmp.ne.s32.totalorder %s203, %s204
      %p213 = scmp.eq.s32.totalorder %s25, 0
      %p214 = por %p212, %p213
      %p215 = scmp.ne.s32.totalorder %s203, %s204
      %p216 = scmp.eq.s32.totalorder %s26, 1
      %p217 = por %p215, %p216
      %p219 = scmp.ne.s32.totalorder %s204, %s218
      %p220 = scmp.eq.s32.totalorder %s26, 0
      %p221 = por %p219, %p220
      %s223 = sadd.s32 %s222, 1
      %p226 = scmp.eq.s32.totalorder %s20, 1
      %p227 = scmp.ne.s32.totalorder %s222, %s224
      %p228 = scmp.eq.s32.totalorder %s20, 0
      %p229 = por %p227, %p228
      %p230 = scmp.ne.s32.totalorder %s222, %s224
      %p231 = scmp.eq.s32.totalorder %s25, 1
      %p232 = por %p230, %p231
      %p233 = scmp.ne.s32.totalorder %s224, %s225
      %p234 = scmp.eq.s32.totalorder %s25, 0
      %p235 = por %p233, %p234
      %p236 = scmp.ne.s32.totalorder %s224, %s225
      %p237 = scmp.eq.s32.totalorder %s26, 1
      %p238 = por %p236, %p237
      %p240 = scmp.ne.s32.totalorder %s225, %s239
      %p241 = scmp.eq.s32.totalorder %s26, 0
      %p242 = por %p240, %p241
      %s244 = sadd.s32 %s243, 1
      %p247 = scmp.eq.s32.totalorder %s20, 1
      %p248 = scmp.ne.s32.totalorder %s243, %s245
      %p249 = scmp.eq.s32.totalorder %s20, 0
      %p250 = por %p248, %p249
      %p251 = scmp.ne.s32.totalorder %s243, %s245
      %p252 = scmp.eq.s32.totalorder %s25, 1
      %p253 = por %p251, %p252
      %p254 = scmp.ne.s32.totalorder %s245, %s246
      %p255 = scmp.eq.s32.totalorder %s25, 0
      %p256 = por %p254, %p255
      %p257 = scmp.ne.s32.totalorder %s245, %s246
      %p258 = scmp.eq.s32.totalorder %s26, 1
      %p259 = por %p257, %p258
      %p261 = scmp.ne.s32.totalorder %s246, %s260
      %p262 = scmp.eq.s32.totalorder %s26, 0
      %p263 = por %p261, %p262
      %s264 = ssub.s32 %s20, %s27
      %p265 = scmp.eq.s32.totalorder %s264, 0
      %s267 = sadd.s32 %s266, 1
      %s268 = scalar_select %p265, %s266, %s267
      %p271 = pneg %p265
      %p272 = scmp.eq.s32.totalorder %s20, 1
      %p273 = por %p271, %p272
      %p274 = scmp.ne.s32.totalorder %s266, %s269
      %p275 = scmp.eq.s32.totalorder %s20, 0
      %p276 = por %p274, %p275
      %p277 = scmp.ne.s32.totalorder %s266, %s269
      %p278 = scmp.eq.s32.totalorder %s25, 1
      %p279 = por %p277, %p278
      %p280 = scmp.ne.s32.totalorder %s269, %s270
      %p281 = scmp.eq.s32.totalorder %s25, 0
      %p282 = por %p280, %p281
      %p283 = scmp.ne.s32.totalorder %s269, %s270
      %p284 = scmp.eq.s32.totalorder %s26, 1
      %p285 = por %p283, %p284
      %p287 = scmp.ne.s32.totalorder %s270, %s286
      %p288 = scmp.eq.s32.totalorder %s26, 0
      %p289 = por %p287, %p288
      %p290 = scmp.le.s32.totalorder 1, %s20
      %p291 = scmp.lt.s32.totalorder %s20, 3
      %p292 = pnand %p290, %p291
      %p293 = pneg %p292
      // Predicated region
      $region9: #{net_forward.1} parent=5 // pred_check
        _
      $region10: #{net_forward.1} parent=5 // pred_check_branch
        %295 = sbr.rel (%p292) target = $region12
      $region11: #{net_forward.1} parent=5 // pred_region
        %s296 = ssub.s32 %s20, 1
        // Predicated region
        $region13: #{net_forward.1} parent=11 // pred_check
          %p297 = pneg %p67
        $region14: #{net_forward.1} parent=11 // pred_check_branch
          %299 = sbr.rel (%p297) target = $region16
        $region15: #{net_forward.1} parent=11 // pred_region
          _
        $region16: #{net_forward.1} parent=11 // pred_fallthru
          _
        // Predicated region
        $region17: #{net_forward.1} parent=11 // pred_check
          %p300 = pneg %p88
        $region18: #{net_forward.1} parent=11 // pred_check_branch
          %302 = sbr.rel (%p300) target = $region20
        $region19: #{net_forward.1} parent=11 // pred_region
          _
        $region20: #{net_forward.1} parent=11 // pred_fallthru
          _
        // Predicated region
        $region21: #{net_forward.1} parent=11 // pred_check
          %p303 = pneg %p109
        $region22: #{net_forward.1} parent=11 // pred_check_branch
          %305 = sbr.rel (%p303) target = $region24
        $region23: #{net_forward.1} parent=11 // pred_region
          _
        $region24: #{net_forward.1} parent=11 // pred_fallthru
          _
        // Predicated region
        $region25: #{net_forward.1} parent=11 // pred_check
          %p306 = pneg %p130
        $region26: #{net_forward.1} parent=11 // pred_check_branch
          %308 = sbr.rel (%p306) target = $region28
        $region27: #{net_forward.1} parent=11 // pred_region
          _
        $region28: #{net_forward.1} parent=11 // pred_fallthru
          _
        // Predicated region
        $region29: #{net_forward.1} parent=11 // pred_check
          %p309 = pneg %p151
        $region30: #{net_forward.1} parent=11 // pred_check_branch
          %311 = sbr.rel (%p309) target = $region32
        $region31: #{net_forward.1} parent=11 // pred_region
          _
        $region32: #{net_forward.1} parent=11 // pred_fallthru
          _
        // Predicated region
        $region33: #{net_forward.1} parent=11 // pred_check
          %p312 = pneg %p172
        $region34: #{net_forward.1} parent=11 // pred_check_branch
          %314 = sbr.rel (%p312) target = $region36
        $region35: #{net_forward.1} parent=11 // pred_region
          _
        $region36: #{net_forward.1} parent=11 // pred_fallthru
          _
        // Predicated region
        $region37: #{net_forward.1} parent=11 // pred_check
          %p315 = pneg %p193
        $region38: #{net_forward.1} parent=11 // pred_check_branch
          %317 = sbr.rel (%p315) target = $region40
        $region39: #{net_forward.1} parent=11 // pred_region
          _
        $region40: #{net_forward.1} parent=11 // pred_fallthru
          _
        // Predicated region
        $region41: #{net_forward.1} parent=11 // pred_check
          %p318 = pneg %p214
        $region42: #{net_forward.1} parent=11 // pred_check_branch
          %320 = sbr.rel (%p318) target = $region44
        $region43: #{net_forward.1} parent=11 // pred_region
          _
        $region44: #{net_forward.1} parent=11 // pred_fallthru
          _
        // Predicated region
        $region45: #{net_forward.1} parent=11 // pred_check
          %p321 = pneg %p235
        $region46: #{net_forward.1} parent=11 // pred_check_branch
          %323 = sbr.rel (%p321) target = $region48
        $region47: #{net_forward.1} parent=11 // pred_region
          _
        $region48: #{net_forward.1} parent=11 // pred_fallthru
          _
        // Predicated region
        $region49: #{net_forward.1} parent=11 // pred_check
          %p324 = pneg %p256
        $region50: #{net_forward.1} parent=11 // pred_check_branch
          %326 = sbr.rel (%p324) target = $region52
        $region51: #{net_forward.1} parent=11 // pred_region
          _
        $region52: #{net_forward.1} parent=11 // pred_fallthru
          _
      $region12: #{net_forward.1} parent=5 // pred_fallthru
        _
      %p327 = scmp.lt.s32.totalorder %s20, 2
      // Predicated region
      $region53: #{net_forward.1} parent=5 // pred_check
        %p328 = pneg %p327
      $region54: #{net_forward.1} parent=5 // pred_check_branch
        %330 = sbr.rel (%p328) target = $region56
      $region55: #{net_forward.1} parent=5 // pred_region
        // Predicated region
        $region57: #{net_forward.1} parent=55 // pred_check
          %p331 = pneg %p40
        $region58: #{net_forward.1} parent=55 // pred_check_branch
          %333 = sbr.rel (%p331) target = $region60
        $region59: #{net_forward.1} parent=55 // pred_region
          %p334 = scmp.lt.s32.totalorder %s20, 1
          %s335 = scalar_select %p334, %s20, 1
          %s336 = smul.addr %s335, 4
          %s337 = smul.addr %s336, 8
          %s338 = scalar_lea.vmem %s0, %s337
        $region60: #{net_forward.1} parent=55 // pred_fallthru
          _
      $region56: #{net_forward.1} parent=5 // pred_fallthru
        _
      %p339 = scmp.le.s32.totalorder 1, %s20
      %p340 = scmp.lt.s32.totalorder %s20, 3
      %p341 = pnand %p339, %p340
      %p342 = pneg %p341
      // Predicated region
      $region61: #{net_forward.1} parent=5 // pred_check
        _
      $region62: #{net_forward.1} parent=5 // pred_check_branch
        %344 = sbr.rel (%p341) target = $region64
      $region63: #{net_forward.1} parent=5 // pred_region
        %s345 = ssub.s32 %s20, 1
        %p346 = scmp.lt.s32.totalorder %s25, 1
        %s347 = scalar_select %p346, %s25, 1
        %s348 = smul.addr %s347, 4
        %s349 = smul.addr %s348, 8
        %s350 = scalar_lea.vmem %s0, %s349
        %p351 = pneg %p46
        %p352 = pneg %p43
        %p353 = pneg %p67
        %p354 = pneg %p64
        %p355 = pneg %p88
        %p356 = pneg %p85
        %p357 = pneg %p109
        %p358 = pneg %p106
        %p359 = pneg %p130
        %p360 = pneg %p127
        %p361 = pneg %p151
        %p362 = pneg %p148
        %p363 = pneg %p172
        %p364 = pneg %p169
        %p365 = pneg %p193
        %p366 = pneg %p190
        %p367 = pneg %p214
        %p368 = pneg %p211
        %p369 = pneg %p235
        %p370 = pneg %p232
        %p371 = pneg %p256
        %p372 = pneg %p253
        %p373 = pneg %p282
        %p374 = pneg %p279
        %s375 = sand.u32 %s269, 1
        %s376 = scalar_lea.sflag [#allocation3], %s375
        %s377 = sand.u32 %s269, 1
        %s378 = scalar_lea.vmem [#allocation2], %s377
        %p379 = scmp.lt.s32.totalorder %s25, 1
        %s380 = scalar_select %p379, %s25, 1
        %s381 = smul.addr %s380, 4
        %s382 = smul.addr %s381, 8
        %s383 = scalar_lea.vmem %s0, %s382
        %v384 = vld [vmem:[%s383] sm:$0x7f]
        %v385 = vld [vmem:[%s1] sm:$0xff]
        %v386 = vld [vmem:[%s1 + $0x8] sm:$0xff]
        %v387 = vld [vmem:[%s1 + $0x10] sm:$0xff]
        %v388 = vld [vmem:[%s1 + $0x18] sm:$0xff]
        %v389 = vld [vmem:[%s1 + $0x20] sm:$0xff]
        %v390 = vld [vmem:[%s1 + $0x28] sm:$0xff]
        %v391 = vld [vmem:[%s1 + $0x30] sm:$0xff]
        %v392 = vld [vmem:[%s1 + $0x38] sm:$0xff]
        %v393 = vld [vmem:[%s1 + $0x40] sm:$0xff]
        %v394 = vld [vmem:[%s1 + $0x48] sm:$0xff]
        %v395 = vld [vmem:[%s1 + $0x50] sm:$0xff]
        %v396 = vld [vmem:[%s1 + $0x58] sm:$0xff]
        %v397 = vld [vmem:[%s1 + $0x60] sm:$0xff]
        %v398 = vld [vmem:[%s1 + $0x68] sm:$0xff]
        %v399 = vld [vmem:[%s1 + $0x70] sm:$0xff]
        %v400 = vld [vmem:[%s1 + $0x78] sm:$0xff]
        %v401 = vld [vmem:[%s1 + $0x80] sm:$0xff]
        %v402 = vld [vmem:[%s1 + $0x88] sm:$0xff]
        %v403 = vld [vmem:[%s1 + $0x90] sm:$0xff]
        %v404 = vld [vmem:[%s1 + $0x98] sm:$0xff]
        %v405 = vld [vmem:[%s1 + $0xa0] sm:$0xff]
        %v406 = vld [vmem:[%s1 + $0xa8] sm:$0xff]
        %v407 = vld [vmem:[%s1 + $0xb0] sm:$0xff]
        %v408 = vld [vmem:[%s1 + $0xb8] sm:$0xff]
        %s409 = scalar_lea.vmem %s383, 8
        %v410 = vld [vmem:[%s409] sm:$0x7f]
        %s411 = scalar_lea.vmem %s1, 192
        %v412 = vld [vmem:[%s411] sm:$0xff]
        %v413 = vld [vmem:[%s411 + $0x8] sm:$0xff]
        %v414 = vld [vmem:[%s411 + $0x10] sm:$0xff]
        %v415 = vld [vmem:[%s411 + $0x18] sm:$0xff]
        %v416 = vld [vmem:[%s411 + $0x20] sm:$0xff]
        %v417 = vld [vmem:[%s411 + $0x28] sm:$0xff]
        %v418 = vld [vmem:[%s411 + $0x30] sm:$0xff]
        %v419 = vld [vmem:[%s411 + $0x38] sm:$0xff]
        %v420 = vld [vmem:[%s411 + $0x40] sm:$0xff]
        %v421 = vld [vmem:[%s411 + $0x48] sm:$0xff]
        %v422 = vld [vmem:[%s411 + $0x50] sm:$0xff]
        %v423 = vld [vmem:[%s411 + $0x58] sm:$0xff]
        %v424 = vld [vmem:[%s411 + $0x60] sm:$0xff]
        %v425 = vld [vmem:[%s411 + $0x68] sm:$0xff]
        %v426 = vld [vmem:[%s411 + $0x70] sm:$0xff]
        %v427 = vld [vmem:[%s411 + $0x78] sm:$0xff]
        %v428 = vld [vmem:[%s411 + $0x80] sm:$0xff]
        %v429 = vld [vmem:[%s411 + $0x88] sm:$0xff]
        %v430 = vld [vmem:[%s411 + $0x90] sm:$0xff]
        %v431 = vld [vmem:[%s411 + $0x98] sm:$0xff]
        %v432 = vld [vmem:[%s411 + $0xa0] sm:$0xff]
        %v433 = vld [vmem:[%s411 + $0xa8] sm:$0xff]
        %v434 = vld [vmem:[%s411 + $0xb0] sm:$0xff]
        %v435 = vld [vmem:[%s411 + $0xb8] sm:$0xff]
        %vm436 = vcmask 785408
        %v438 = vsel %vm436, %v410, 0
        %440 = vmatprep.subr.mxu0 %v413
        %441 = vmatpush1.msra.mxu0 %v412
        %442 = vmatprep.subr.mxu0 %v415
        %443 = vmatpush1.msra.mxu0 %v414
        %444 = vmatprep.subr.mxu0 %v417
        %445 = vmatpush1.msra.mxu0 %v416
        %446 = vmatprep.subr.mxu0 %v419
        %447 = vmatpush1.msra.mxu0 %v418
        %448 = vmatprep.subr.mxu0 %v421
        %449 = vmatpush1.msra.mxu0 %v420
        %450 = vmatprep.subr.mxu0 %v423
        %451 = vmatpush1.msra.mxu0 %v422
        %452 = vmatprep.subr.mxu0 %v425
        %453 = vmatpush1.msra.mxu0 %v424
        %454 = vmatprep.subr.mxu0 %v427
        %455 = vmatpush1.msra.mxu0 %v426
        %456 = vmatprep.subr.mxu0 %v429
        %457 = vmatpush1.msra.mxu0 %v428
        %458 = vmatprep.subr.mxu0 %v431
        %459 = vmatpush1.msra.mxu0 %v430
        %460 = vmatprep.subr.mxu0 %v433
        %461 = vmatpush1.msra.mxu0 %v432
        %462 = vmatprep.subr.mxu0 %v435
        %463 = vmatpush1.msra.mxu0 %v434
        %464 = vmatprep.subr.mxu0 0.0
        %465 = vmatpush1.msra.mxu0 0.0
        %466 = vmatprep.subr.mxu0 0.0
        %467 = vmatpush1.msra.mxu0 0.0
        %468 = vmatprep.subr.mxu0 0.0
        %469 = vmatpush1.msra.mxu0 0.0
        %470 = vmatprep.subr.mxu0 0.0
        %471 = vmatpush1.msra.mxu0 0.0
        %472 = vmatprep.subr.mxu0 0.0
        %473 = vmatpush1.msra.mxu0 0.0
        %474 = vmatprep.subr.mxu0 0.0
        %475 = vmatpush1.msra.mxu0 0.0
        %476 = vmatprep.subr.mxu0 0.0
        %477 = vmatpush1.msra.mxu0 0.0
        %478 = vmatprep.subr.mxu0 0.0
        %479 = vmatpush1.msra.mxu0 0.0
        %480 = vmatprep.subr.mxu0 0.0
        %481 = vmatpush1.msra.mxu0 0.0
        %482 = vmatprep.subr.mxu0 0.0
        %483 = vmatpush1.msra.mxu0 0.0
        %484 = vmatprep.subr.mxu0 0.0
        %485 = vmatpush1.msra.mxu0 0.0
        %486 = vmatprep.subr.mxu0 0.0
        %487 = vmatpush1.msra.mxu0 0.0
        %488 = vmatprep.subr.mxu0 0.0
        %489 = vmatpush1.msra.mxu0 0.0
        %490 = vmatprep.subr.mxu0 0.0
        %491 = vmatpush1.msra.mxu0 0.0
        %492 = vmatprep.subr.mxu0 0.0
        %493 = vmatpush1.msra.mxu0 0.0
        %494 = vmatprep.subr.mxu0 0.0
        %495 = vmatpush1.msra.mxu0 0.0
        %496 = vmatprep.subr.mxu0 0.0
        %497 = vmatpush1.msra.mxu0 0.0
        %498 = vmatprep.subr.mxu0 0.0
        %499 = vmatpush1.msra.mxu0 0.0
        %500 = vmatprep.subr.mxu0 0.0
        %501 = vmatpush1.msra.mxu0 0.0
        %502 = vmatprep.subr.mxu0 0.0
        %503 = vmatpush1.msra.mxu0 0.0
        %504 = vmatprep.mubr.f32.mxu0 0.0
        %505 = vmatmul.mubr.f32.gmra.mrb[0].mxu0 %v438
        %v506 = vpop.f32.mrb[0].mxu0
        %v507 = vadd.f32 0.0, %v506
        %v508 = vpop.f32.mrb[0].mxu0
        %v509 = vadd.f32 0.0, %v508
        %510 = vdwg.mxu0
        %v512 = vsel %vm436, %v384, 0
        %514 = vmatprep.subr.mxu0 %v386
        %515 = vmatpush1.msra.mxu0 %v385
        %516 = vmatprep.subr.mxu0 %v388
        %517 = vmatpush1.msra.mxu0 %v387
        %518 = vmatprep.subr.mxu0 %v390
        %519 = vmatpush1.msra.mxu0 %v389
        %520 = vmatprep.subr.mxu0 %v392
        %521 = vmatpush1.msra.mxu0 %v391
        %522 = vmatprep.subr.mxu0 %v394
        %523 = vmatpush1.msra.mxu0 %v393
        %524 = vmatprep.subr.mxu0 %v396
        %525 = vmatpush1.msra.mxu0 %v395
        %526 = vmatprep.subr.mxu0 %v398
        %527 = vmatpush1.msra.mxu0 %v397
        %528 = vmatprep.subr.mxu0 %v400
        %529 = vmatpush1.msra.mxu0 %v399
        %530 = vmatprep.subr.mxu0 %v402
        %531 = vmatpush1.msra.mxu0 %v401
        %532 = vmatprep.subr.mxu0 %v404
        %533 = vmatpush1.msra.mxu0 %v403
        %534 = vmatprep.subr.mxu0 %v406
        %535 = vmatpush1.msra.mxu0 %v405
        %536 = vmatprep.subr.mxu0 %v408
        %537 = vmatpush1.msra.mxu0 %v407
        %538 = vmatprep.subr.mxu0 0.0
        %539 = vmatpush1.msra.mxu0 0.0
        %540 = vmatprep.subr.mxu0 0.0
        %541 = vmatpush1.msra.mxu0 0.0
        %542 = vmatprep.subr.mxu0 0.0
        %543 = vmatpush1.msra.mxu0 0.0
        %544 = vmatprep.subr.mxu0 0.0
        %545 = vmatpush1.msra.mxu0 0.0
        %546 = vmatprep.subr.mxu0 0.0
        %547 = vmatpush1.msra.mxu0 0.0
        %548 = vmatprep.subr.mxu0 0.0
        %549 = vmatpush1.msra.mxu0 0.0
        %550 = vmatprep.subr.mxu0 0.0
        %551 = vmatpush1.msra.mxu0 0.0
        %552 = vmatprep.subr.mxu0 0.0
        %553 = vmatpush1.msra.mxu0 0.0
        %554 = vmatprep.subr.mxu0 0.0
        %555 = vmatpush1.msra.mxu0 0.0
        %556 = vmatprep.subr.mxu0 0.0
        %557 = vmatpush1.msra.mxu0 0.0
        %558 = vmatprep.subr.mxu0 0.0
        %559 = vmatpush1.msra.mxu0 0.0
        %560 = vmatprep.subr.mxu0 0.0
        %561 = vmatpush1.msra.mxu0 0.0
        %562 = vmatprep.subr.mxu0 0.0
        %563 = vmatpush1.msra.mxu0 0.0
        %564 = vmatprep.subr.mxu0 0.0
        %565 = vmatpush1.msra.mxu0 0.0
        %566 = vmatprep.subr.mxu0 0.0
        %567 = vmatpush1.msra.mxu0 0.0
        %568 = vmatprep.subr.mxu0 0.0
        %569 = vmatpush1.msra.mxu0 0.0
        %570 = vmatprep.subr.mxu0 0.0
        %571 = vmatpush1.msra.mxu0 0.0
        %572 = vmatprep.subr.mxu0 0.0
        %573 = vmatpush1.msra.mxu0 0.0
        %574 = vmatprep.subr.mxu0 0.0
        %575 = vmatpush1.msra.mxu0 0.0
        %576 = vmatprep.subr.mxu0 0.0
        %577 = vmatpush1.msra.mxu0 0.0
        %578 = vmatprep.mubr.f32.mxu0 0.0
        %579 = vmatmul.mubr.f32.gmra.mrb[0].mxu0 %v512
        %v580 = vpop.f32.mrb[0].mxu0
        %v581 = vadd.f32 %v507, %v580
        %v582 = vpop.f32.mrb[0].mxu0
        %v583 = vadd.f32 %v509, %v582
        %584 = vdwg.mxu0
        %s585 = scalar_lea.vmem %s383, 16
        %v586 = vld [vmem:[%s585] sm:$0x7f]
        %s587 = scalar_lea.vmem %s1, 384
        %v588 = vld [vmem:[%s587] sm:$0xff]
        %v589 = vld [vmem:[%s587 + $0x8] sm:$0xff]
        %v590 = vld [vmem:[%s587 + $0x10] sm:$0xff]
        %v591 = vld [vmem:[%s587 + $0x18] sm:$0xff]
        %v592 = vld [vmem:[%s587 + $0x20] sm:$0xff]
        %v593 = vld [vmem:[%s587 + $0x28] sm:$0xff]
        %v594 = vld [vmem:[%s587 + $0x30] sm:$0xff]
        %v595 = vld [vmem:[%s587 + $0x38] sm:$0xff]
        %v596 = vld [vmem:[%s587 + $0x40] sm:$0xff]
        %v597 = vld [vmem:[%s587 + $0x48] sm:$0xff]
        %v598 = vld [vmem:[%s587 + $0x50] sm:$0xff]
        %v599 = vld [vmem:[%s587 + $0x58] sm:$0xff]
        %v600 = vld [vmem:[%s587 + $0x60] sm:$0xff]
        %v601 = vld [vmem:[%s587 + $0x68] sm:$0xff]
        %v602 = vld [vmem:[%s587 + $0x70] sm:$0xff]
        %v603 = vld [vmem:[%s587 + $0x78] sm:$0xff]
        %v604 = vld [vmem:[%s587 + $0x80] sm:$0xff]
        %v605 = vld [vmem:[%s587 + $0x88] sm:$0xff]
        %v606 = vld [vmem:[%s587 + $0x90] sm:$0xff]
        %v607 = vld [vmem:[%s587 + $0x98] sm:$0xff]
        %v608 = vld [vmem:[%s587 + $0xa0] sm:$0xff]
        %v609 = vld [vmem:[%s587 + $0xa8] sm:$0xff]
        %v610 = vld [vmem:[%s587 + $0xb0] sm:$0xff]
        %v611 = vld [vmem:[%s587 + $0xb8] sm:$0xff]
        %v613 = vsel %vm436, %v586, 0
        %615 = vmatprep.subr.mxu0 %v589
        %616 = vmatpush1.msra.mxu0 %v588
        %617 = vmatprep.subr.mxu0 %v591
        %618 = vmatpush1.msra.mxu0 %v590
        %619 = vmatprep.subr.mxu0 %v593
        %620 = vmatpush1.msra.mxu0 %v592
        %621 = vmatprep.subr.mxu0 %v595
        %622 = vmatpush1.msra.mxu0 %v594
        %623 = vmatprep.subr.mxu0 %v597
        %624 = vmatpush1.msra.mxu0 %v596
        %625 = vmatprep.subr.mxu0 %v599
        %626 = vmatpush1.msra.mxu0 %v598
        %627 = vmatprep.subr.mxu0 %v601
        %628 = vmatpush1.msra.mxu0 %v600
        %629 = vmatprep.subr.mxu0 %v603
        %630 = vmatpush1.msra.mxu0 %v602
        %631 = vmatprep.subr.mxu0 %v605
        %632 = vmatpush1.msra.mxu0 %v604
        %633 = vmatprep.subr.mxu0 %v607
        %634 = vmatpush1.msra.mxu0 %v606
        %635 = vmatprep.subr.mxu0 %v609
        %636 = vmatpush1.msra.mxu0 %v608
        %637 = vmatprep.subr.mxu0 %v611
        %638 = vmatpush1.msra.mxu0 %v610
        %639 = vmatprep.subr.mxu0 0.0
        %640 = vmatpush1.msra.mxu0 0.0
        %641 = vmatprep.subr.mxu0 0.0
        %642 = vmatpush1.msra.mxu0 0.0
        %643 = vmatprep.subr.mxu0 0.0
        %644 = vmatpush1.msra.mxu0 0.0
        %645 = vmatprep.subr.mxu0 0.0
        %646 = vmatpush1.msra.mxu0 0.0
        %647 = vmatprep.subr.mxu0 0.0
        %648 = vmatpush1.msra.mxu0 0.0
        %649 = vmatprep.subr.mxu0 0.0
        %650 = vmatpush1.msra.mxu0 0.0
        %651 = vmatprep.subr.mxu0 0.0
        %652 = vmatpush1.msra.mxu0 0.0
        %653 = vmatprep.subr.mxu0 0.0
        %654 = vmatpush1.msra.mxu0 0.0
        %655 = vmatprep.subr.mxu0 0.0
        %656 = vmatpush1.msra.mxu0 0.0
        %657 = vmatprep.subr.mxu0 0.0
        %658 = vmatpush1.msra.mxu0 0.0
        %659 = vmatprep.subr.mxu0 0.0
        %660 = vmatpush1.msra.mxu0 0.0
        %661 = vmatprep.subr.mxu0 0.0
        %662 = vmatpush1.msra.mxu0 0.0
        %663 = vmatprep.subr.mxu0 0.0
        %664 = vmatpush1.msra.mxu0 0.0
        %665 = vmatprep.subr.mxu0 0.0
        %666 = vmatpush1.msra.mxu0 0.0
        %667 = vmatprep.subr.mxu0 0.0
        %668 = vmatpush1.msra.mxu0 0.0
        %669 = vmatprep.subr.mxu0 0.0
        %670 = vmatpush1.msra.mxu0 0.0
        %671 = vmatprep.subr.mxu0 0.0
        %672 = vmatpush1.msra.mxu0 0.0
        %673 = vmatprep.subr.mxu0 0.0
        %674 = vmatpush1.msra.mxu0 0.0
        %675 = vmatprep.subr.mxu0 0.0
        %676 = vmatpush1.msra.mxu0 0.0
        %677 = vmatprep.subr.mxu0 0.0
        %678 = vmatpush1.msra.mxu0 0.0
        %679 = vmatprep.mubr.f32.mxu0 0.0
        %680 = vmatmul.mubr.f32.gmra.mrb[0].mxu0 %v613
        %v681 = vpop.f32.mrb[0].mxu0
        %v682 = vadd.f32 0.0, %v681
        %v683 = vpop.f32.mrb[0].mxu0
        %v684 = vadd.f32 0.0, %v683
        %685 = vdwg.mxu0
        %v686 = vadd.f32 %v581, %v682
        %v687 = vadd.f32 %v583, %v684
        %s688 = scalar_lea.vmem %s383, 24
        %v689 = vld [vmem:[%s688] sm:$0x7f]
        %s690 = scalar_lea.vmem %s1, 576
        %v691 = vld [vmem:[%s690] sm:$0xff]
        %v692 = vld [vmem:[%s690 + $0x8] sm:$0xff]
        %v693 = vld [vmem:[%s690 + $0x10] sm:$0xff]
        %v694 = vld [vmem:[%s690 + $0x18] sm:$0xff]
        %v695 = vld [vmem:[%s690 + $0x20] sm:$0xff]
        %v696 = vld [vmem:[%s690 + $0x28] sm:$0xff]
        %v697 = vld [vmem:[%s690 + $0x30] sm:$0xff]
        %v698 = vld [vmem:[%s690 + $0x38] sm:$0xff]
        %v699 = vld [vmem:[%s690 + $0x40] sm:$0xff]
        %v700 = vld [vmem:[%s690 + $0x48] sm:$0xff]
        %v701 = vld [vmem:[%s690 + $0x50] sm:$0xff]
        %v702 = vld [vmem:[%s690 + $0x58] sm:$0xff]
        %v703 = vld [vmem:[%s690 + $0x60] sm:$0xff]
        %v704 = vld [vmem:[%s690 + $0x68] sm:$0xff]
        %v705 = vld [vmem:[%s690 + $0x70] sm:$0xff]
        %v706 = vld [vmem:[%s690 + $0x78] sm:$0xff]
        %v707 = vld [vmem:[%s690 + $0x80] sm:$0xff]
        %v708 = vld [vmem:[%s690 + $0x88] sm:$0xff]
        %v709 = vld [vmem:[%s690 + $0x90] sm:$0xff]
        %v710 = vld [vmem:[%s690 + $0x98] sm:$0xff]
        %v711 = vld [vmem:[%s690 + $0xa0] sm:$0xff]
        %v712 = vld [vmem:[%s690 + $0xa8] sm:$0xff]
        %v713 = vld [vmem:[%s690 + $0xb0] sm:$0xff]
        %v714 = vld [vmem:[%s690 + $0xb8] sm:$0xff]
        %v716 = vsel %vm436, %v689, 0
        %718 = vmatprep.subr.mxu0 %v692
        %719 = vmatpush1.msra.mxu0 %v691
        %720 = vmatprep.subr.mxu0 %v694
        %721 = vmatpush1.msra.mxu0 %v693
        %722 = vmatprep.subr.mxu0 %v696
        %723 = vmatpush1.msra.mxu0 %v695
        %724 = vmatprep.subr.mxu0 %v698
        %725 = vmatpush1.msra.mxu0 %v697
        %726 = vmatprep.subr.mxu0 %v700
        %727 = vmatpush1.msra.mxu0 %v699
        %728 = vmatprep.subr.mxu0 %v702
        %729 = vmatpush1.msra.mxu0 %v701
        %730 = vmatprep.subr.mxu0 %v704
        %731 = vmatpush1.msra.mxu0 %v703
        %732 = vmatprep.subr.mxu0 %v706
        %733 = vmatpush1.msra.mxu0 %v705
        %734 = vmatprep.subr.mxu0 %v708
        %735 = vmatpush1.msra.mxu0 %v707
        %736 = vmatprep.subr.mxu0 %v710
        %737 = vmatpush1.msra.mxu0 %v709
        %738 = vmatprep.subr.mxu0 %v712
        %739 = vmatpush1.msra.mxu0 %v711
        %740 = vmatprep.subr.mxu0 %v714
        %741 = vmatpush1.msra.mxu0 %v713
        %742 = vmatprep.subr.mxu0 0.0
        %743 = vmatpush1.msra.mxu0 0.0
        %744 = vmatprep.subr.mxu0 0.0
        %745 = vmatpush1.msra.mxu0 0.0
        %746 = vmatprep.subr.mxu0 0.0
        %747 = vmatpush1.msra.mxu0 0.0
        %748 = vmatprep.subr.mxu0 0.0
        %749 = vmatpush1.msra.mxu0 0.0
        %750 = vmatprep.subr.mxu0 0.0
        %751 = vmatpush1.msra.mxu0 0.0
        %752 = vmatprep.subr.mxu0 0.0
        %753 = vmatpush1.msra.mxu0 0.0
        %754 = vmatprep.subr.mxu0 0.0
        %755 = vmatpush1.msra.mxu0 0.0
        %756 = vmatprep.subr.mxu0 0.0
        %757 = vmatpush1.msra.mxu0 0.0
        %758 = vmatprep.subr.mxu0 0.0
        %759 = vmatpush1.msra.mxu0 0.0
        %760 = vmatprep.subr.mxu0 0.0
        %761 = vmatpush1.msra.mxu0 0.0
        %762 = vmatprep.subr.mxu0 0.0
        %763 = vmatpush1.msra.mxu0 0.0
        %764 = vmatprep.subr.mxu0 0.0
        %765 = vmatpush1.msra.mxu0 0.0
        %766 = vmatprep.subr.mxu0 0.0
        %767 = vmatpush1.msra.mxu0 0.0
        %768 = vmatprep.subr.mxu0 0.0
        %769 = vmatpush1.msra.mxu0 0.0
        %770 = vmatprep.subr.mxu0 0.0
        %771 = vmatpush1.msra.mxu0 0.0
        %772 = vmatprep.subr.mxu0 0.0
        %773 = vmatpush1.msra.mxu0 0.0
        %774 = vmatprep.subr.mxu0 0.0
        %775 = vmatpush1.msra.mxu0 0.0
        %776 = vmatprep.subr.mxu0 0.0
        %777 = vmatpush1.msra.mxu0 0.0
        %778 = vmatprep.subr.mxu0 0.0
        %779 = vmatpush1.msra.mxu0 0.0
        %780 = vmatprep.subr.mxu0 0.0
        %781 = vmatpush1.msra.mxu0 0.0
        %782 = vmatprep.mubr.f32.mxu0 0.0
        %783 = vmatmul.mubr.f32.gmra.mrb[0].mxu0 %v716
        %v784 = vpop.f32.mrb[0].mxu0
        %v785 = vadd.f32 0.0, %v784
        %v786 = vpop.f32.mrb[0].mxu0
        %v787 = vadd.f32 0.0, %v786
        %788 = vdwg.mxu0
        %v789 = vadd.f32 %v686, %v785
        %v790 = vadd.f32 %v687, %v787
        %v791 = vld [vmem:[%s383 + $0x1] sm:$0x7f]
        %s792 = scalar_lea.vmem %s1, 768
        %v793 = vld [vmem:[%s792] sm:$0xff]
        %v794 = vld [vmem:[%s792 + $0x8] sm:$0xff]
        %v795 = vld [vmem:[%s792 + $0x10] sm:$0xff]
        %v796 = vld [vmem:[%s792 + $0x18] sm:$0xff]
        %v797 = vld [vmem:[%s792 + $0x20] sm:$0xff]
        %v798 = vld [vmem:[%s792 + $0x28] sm:$0xff]
        %v799 = vld [vmem:[%s792 + $0x30] sm:$0xff]
        %v800 = vld [vmem:[%s792 + $0x38] sm:$0xff]
        %v801 = vld [vmem:[%s792 + $0x40] sm:$0xff]
        %v802 = vld [vmem:[%s792 + $0x48] sm:$0xff]
        %v803 = vld [vmem:[%s792 + $0x50] sm:$0xff]
        %v804 = vld [vmem:[%s792 + $0x58] sm:$0xff]
        %v805 = vld [vmem:[%s792 + $0x60] sm:$0xff]
        %v806 = vld [vmem:[%s792 + $0x68] sm:$0xff]
        %v807 = vld [vmem:[%s792 + $0x70] sm:$0xff]
        %v808 = vld [vmem:[%s792 + $0x78] sm:$0xff]
        %v809 = vld [vmem:[%s792 + $0x80] sm:$0xff]
        %v810 = vld [vmem:[%s792 + $0x88] sm:$0xff]
        %v811 = vld [vmem:[%s792 + $0x90] sm:$0xff]
        %v812 = vld [vmem:[%s792 + $0x98] sm:$0xff]
        %v813 = vld [vmem:[%s792 + $0xa0] sm:$0xff]
        %v814 = vld [vmem:[%s792 + $0xa8] sm:$0xff]
        %v815 = vld [vmem:[%s792 + $0xb0] sm:$0xff]
        %v816 = vld [vmem:[%s792 + $0xb8] sm:$0xff]
        %v818 = vsel %vm436, %v791, 0
        %820 = vmatprep.subr.mxu0 %v794
        %821 = vmatpush1.msra.mxu0 %v793
        %822 = vmatprep.subr.mxu0 %v796
        %823 = vmatpush1.msra.mxu0 %v795
        %824 = vmatprep.subr.mxu0 %v798
        %825 = vmatpush1.msra.mxu0 %v797
        %826 = vmatprep.subr.mxu0 %v800
        %827 = vmatpush1.msra.mxu0 %v799
        %828 = vmatprep.subr.mxu0 %v802
        %829 = vmatpush1.msra.mxu0 %v801
        %830 = vmatprep.subr.mxu0 %v804
        %831 = vmatpush1.msra.mxu0 %v803
        %832 = vmatprep.subr.mxu0 %v806
        %833 = vmatpush1.msra.mxu0 %v805
        %834 = vmatprep.subr.mxu0 %v808
        %835 = vmatpush1.msra.mxu0 %v807
        %836 = vmatprep.subr.mxu0 %v810
        %837 = vmatpush1.msra.mxu0 %v809
        %838 = vmatprep.subr.mxu0 %v812
        %839 = vmatpush1.msra.mxu0 %v811
        %840 = vmatprep.subr.mxu0 %v814
        %841 = vmatpush1.msra.mxu0 %v813
        %842 = vmatprep.subr.mxu0 %v816
        %843 = vmatpush1.msra.mxu0 %v815
        %844 = vmatprep.subr.mxu0 0.0
        %845 = vmatpush1.msra.mxu0 0.0
        %846 = vmatprep.subr.mxu0 0.0
        %847 = vmatpush1.msra.mxu0 0.0
        %848 = vmatprep.subr.mxu0 0.0
        %849 = vmatpush1.msra.mxu0 0.0
        %850 = vmatprep.subr.mxu0 0.0
        %851 = vmatpush1.msra.mxu0 0.0
        %852 = vmatprep.subr.mxu0 0.0
        %853 = vmatpush1.msra.mxu0 0.0
        %854 = vmatprep.subr.mxu0 0.0
        %855 = vmatpush1.msra.mxu0 0.0
        %856 = vmatprep.subr.mxu0 0.0
        %857 = vmatpush1.msra.mxu0 0.0
        %858 = vmatprep.subr.mxu0 0.0
        %859 = vmatpush1.msra.mxu0 0.0
        %860 = vmatprep.subr.mxu0 0.0
        %861 = vmatpush1.msra.mxu0 0.0
        %862 = vmatprep.subr.mxu0 0.0
        %863 = vmatpush1.msra.mxu0 0.0
        %864 = vmatprep.subr.mxu0 0.0
        %865 = vmatpush1.msra.mxu0 0.0
        %866 = vmatprep.subr.mxu0 0.0
        %867 = vmatpush1.msra.mxu0 0.0
        %868 = vmatprep.subr.mxu0 0.0
        %869 = vmatpush1.msra.mxu0 0.0
        %870 = vmatprep.subr.mxu0 0.0
        %871 = vmatpush1.msra.mxu0 0.0
        %872 = vmatprep.subr.mxu0 0.0
        %873 = vmatpush1.msra.mxu0 0.0
        %874 = vmatprep.subr.mxu0 0.0
        %875 = vmatpush1.msra.mxu0 0.0
        %876 = vmatprep.subr.mxu0 0.0
        %877 = vmatpush1.msra.mxu0 0.0
        %878 = vmatprep.subr.mxu0 0.0
        %879 = vmatpush1.msra.mxu0 0.0
        %880 = vmatprep.subr.mxu0 0.0
        %881 = vmatpush1.msra.mxu0 0.0
        %882 = vmatprep.subr.mxu0 0.0
        %883 = vmatpush1.msra.mxu0 0.0
        %884 = vmatprep.mubr.f32.mxu0 0.0
        %885 = vmatmul.mubr.f32.gmra.mrb[0].mxu0 %v818
        %v886 = vpop.f32.mrb[0].mxu0
        %v887 = vadd.f32 0.0, %v886
        %v888 = vpop.f32.mrb[0].mxu0
        %v889 = vadd.f32 0.0, %v888
        %890 = vdwg.mxu0
        %v891 = vadd.f32 %v789, %v887
        %v892 = vadd.f32 %v790, %v889
        %893 = vmatprep.subr.mxu0 %v413
        %894 = vmatpush1.msra.mxu0 %v412
        %895 = vmatprep.subr.mxu0 %v415
        %896 = vmatpush1.msra.mxu0 %v414
        %897 = vmatprep.subr.mxu0 %v417
        %898 = vmatpush1.msra.mxu0 %v416
        %899 = vmatprep.subr.mxu0 %v419
        %900 = vmatpush1.msra.mxu0 %v418
        %901 = vmatprep.subr.mxu0 %v421
        %902 = vmatpush1.msra.mxu0 %v420
        %903 = vmatprep.subr.mxu0 %v423
        %904 = vmatpush1.msra.mxu0 %v422
        %905 = vmatprep.subr.mxu0 %v425
        %906 = vmatpush1.msra.mxu0 %v424
        %907 = vmatprep.subr.mxu0 %v427
        %908 = vmatpush1.msra.mxu0 %v426
        %909 = vmatprep.subr.mxu0 %v429
        %910 = vmatpush1.msra.mxu0 %v428
        %911 = vmatprep.subr.mxu0 %v431
        %912 = vmatpush1.msra.mxu0 %v430
        %913 = vmatprep.subr.mxu0 %v433
        %914 = vmatpush1.msra.mxu0 %v432
        %915 = vmatprep.subr.mxu0 %v435
        %916 = vmatpush1.msra.mxu0 %v434
        %917 = vmatprep.subr.mxu0 0.0
        %918 = vmatpush1.msra.mxu0 0.0
        %919 = vmatprep.subr.mxu0 0.0
        %920 = vmatpush1.msra.mxu0 0.0
        %921 = vmatprep.subr.mxu0 0.0
        %922 = vmatpush1.msra.mxu0 0.0
        %923 = vmatprep.subr.mxu0 0.0
        %924 = vmatpush1.msra.mxu0 0.0
        %925 = vmatprep.subr.mxu0 0.0
        %926 = vmatpush1.msra.mxu0 0.0
        %927 = vmatprep.subr.mxu0 0.0
        %928 = vmatpush1.msra.mxu0 0.0
        %929 = vmatprep.subr.mxu0 0.0
        %930 = vmatpush1.msra.mxu0 0.0
        %931 = vmatprep.subr.mxu0 0.0
        %932 = vmatpush1.msra.mxu0 0.0
        %933 = vmatprep.subr.mxu0 0.0
        %934 = vmatpush1.msra.mxu0 0.0
        %935 = vmatprep.subr.mxu0 0.0
        %936 = vmatpush1.msra.mxu0 0.0
        %937 = vmatprep.subr.mxu0 0.0
        %938 = vmatpush1.msra.mxu0 0.0
        %939 = vmatprep.subr.mxu0 0.0
        %940 = vmatpush1.msra.mxu0 0.0
        %941 = vmatprep.subr.mxu0 0.0
        %942 = vmatpush1.msra.mxu0 0.0
        %943 = vmatprep.subr.mxu0 0.0
        %944 = vmatpush1.msra.mxu0 0.0
        %945 = vmatprep.subr.mxu0 0.0
        %946 = vmatpush1.msra.mxu0 0.0
        %947 = vmatprep.subr.mxu0 0.0
        %948 = vmatpush1.msra.mxu0 0.0
        %949 = vmatprep.subr.mxu0 0.0
        %950 = vmatpush1.msra.mxu0 0.0
        %951 = vmatprep.subr.mxu0 0.0
        %952 = vmatpush1.msra.mxu0 0.0
        %953 = vmatprep.subr.mxu0 0.0
        %954 = vmatpush1.msra.mxu0 0.0
        %955 = vmatprep.subr.mxu0 0.0
        %956 = vmatpush1.msra.mxu0 0.0
        %957 = vmatprep.mubr.f32.mxu0 0.0
        %958 = vmatmul.mubr.f32.gmra.mrb[0].mxu0 %v613
        %v959 = vpop.f32.mrb[0].mxu0
        %v960 = vadd.f32 0.0, %v959
        %v961 = vpop.f32.mrb[0].mxu0
        %v962 = vadd.f32 0.0, %v961
        %963 = vdwg.mxu0
        %964 = vmatprep.subr.mxu0 %v386
        %965 = vmatpush1.msra.mxu0 %v385
        %966 = vmatprep.subr.mxu0 %v388
        %967 = vmatpush1.msra.mxu0 %v387
        %968 = vmatprep.subr.mxu0 %v390
        %969 = vmatpush1.msra.mxu0 %v389
        %970 = vmatprep.subr.mxu0 %v392
        %971 = vmatpush1.msra.mxu0 %v391
        %972 = vmatprep.subr.mxu0 %v394
        %973 = vmatpush1.msra.mxu0 %v393
        %974 = vmatprep.subr.mxu0 %v396
        %975 = vmatpush1.msra.mxu0 %v395
        %976 = vmatprep.subr.mxu0 %v398
        %977 = vmatpush1.msra.mxu0 %v397
        %978 = vmatprep.subr.mxu0 %v400
        %979 = vmatpush1.msra.mxu0 %v399
        %980 = vmatprep.subr.mxu0 %v402
        %981 = vmatpush1.msra.mxu0 %v401
        %982 = vmatprep.subr.mxu0 %v404
        %983 = vmatpush1.msra.mxu0 %v403
        %984 = vmatprep.subr.mxu0 %v406
        %985 = vmatpush1.msra.mxu0 %v405
        %986 = vmatprep.subr.mxu0 %v408
        %987 = vmatpush1.msra.mxu0 %v407
        %988 = vmatprep.subr.mxu0 0.0
        %989 = vmatpush1.msra.mxu0 0.0
        %990 = vmatprep.subr.mxu0 0.0
        %991 = vmatpush1.msra.mxu0 0.0
        %992 = vmatprep.subr.mxu0 0.0
        %993 = vmatpush1.msra.mxu0 0.0
        %994 = vmatprep.subr.mxu0 0.0
        %995 = vmatpush1.msra.mxu0 0.0
        %996 = vmatprep.subr.mxu0 0.0
        %997 = vmatpush1.msra.mxu0 0.0
        %998 = vmatprep.subr.mxu0 0.0
        %999 = vmatpush1.msra.mxu0 0.0
        %1000 = vmatprep.subr.mxu0 0.0
        %1001 = vmatpush1.msra.mxu0 0.0
        %1002 = vmatprep.subr.mxu0 0.0
        %1003 = vmatpush1.msra.mxu0 0.0
        %1004 = vmatprep.subr.mxu0 0.0
        %1005 = vmatpush1.msra.mxu0 0.0
        %1006 = vmatprep.subr.mxu0 0.0
        %1007 = vmatpush1.msra.mxu0 0.0
        %1008 = vmatprep.subr.mxu0 0.0
        %1009 = vmatpush1.msra.mxu0 0.0
        %1010 = vmatprep.subr.mxu0 0.0
        %1011 = vmatpush1.msra.mxu0 0.0
        %1012 = vmatprep.subr.mxu0 0.0
        %1013 = vmatpush1.msra.mxu0 0.0
        %1014 = vmatprep.subr.mxu0 0.0
        %1015 = vmatpush1.msra.mxu0 0.0
        %1016 = vmatprep.subr.mxu0 0.0
        %1017 = vmatpush1.msra.mxu0 0.0
        %1018 = vmatprep.subr.mxu0 0.0
        %1019 = vmatpush1.msra.mxu0 0.0
        %1020 = vmatprep.subr.mxu0 0.0
        %1021 = vmatpush1.msra.mxu0 0.0
        %1022 = vmatprep.subr.mxu0 0.0
        %1023 = vmatpush1.msra.mxu0 0.0
        %1024 = vmatprep.subr.mxu0 0.0
        %1025 = vmatpush1.msra.mxu0 0.0
        %1026 = vmatprep.subr.mxu0 0.0
        %1027 = vmatpush1.msra.mxu0 0.0
        %1028 = vmatprep.mubr.f32.mxu0 0.0
        %1029 = vmatmul.mubr.f32.gmra.mrb[0].mxu0 %v438
        %v1030 = vpop.f32.mrb[0].mxu0
        %v1031 = vadd.f32 %v960, %v1030
        %v1032 = vpop.f32.mrb[0].mxu0
        %v1033 = vadd.f32 %v962, %v1032
        %1034 = vdwg.mxu0
        %1035 = vmatprep.subr.mxu0 %v589
        %1036 = vmatpush1.msra.mxu0 %v588
        %1037 = vmatprep.subr.mxu0 %v591
        %1038 = vmatpush1.msra.mxu0 %v590
        %1039 = vmatprep.subr.mxu0 %v593
        %1040 = vmatpush1.msra.mxu0 %v592
        %1041 = vmatprep.subr.mxu0 %v595
        %1042 = vmatpush1.msra.mxu0 %v594
        %1043 = vmatprep.subr.mxu0 %v597
        %1044 = vmatpush1.msra.mxu0 %v596
        %1045 = vmatprep.subr.mxu0 %v599
        %1046 = vmatpush1.msra.mxu0 %v598
        %1047 = vmatprep.subr.mxu0 %v601
        %1048 = vmatpush1.msra.mxu0 %v600
        %1049 = vmatprep.subr.mxu0 %v603
        %1050 = vmatpush1.msra.mxu0 %v602
        %1051 = vmatprep.subr.mxu0 %v605
        %1052 = vmatpush1.msra.mxu0 %v604
        %1053 = vmatprep.subr.mxu0 %v607
        %1054 = vmatpush1.msra.mxu0 %v606
        %1055 = vmatprep.subr.mxu0 %v609
        %1056 = vmatpush1.msra.mxu0 %v608
        %1057 = vmatprep.subr.mxu0 %v611
        %1058 = vmatpush1.msra.mxu0 %v610
        %1059 = vmatprep.subr.mxu0 0.0
        %1060 = vmatpush1.msra.mxu0 0.0
        %1061 = vmatprep.subr.mxu0 0.0
        %1062 = vmatpush1.msra.mxu0 0.0
        %1063 = vmatprep.subr.mxu0 0.0
        %1064 = vmatpush1.msra.mxu0 0.0
        %1065 = vmatprep.subr.mxu0 0.0
        %1066 = vmatpush1.msra.mxu0 0.0
        %1067 = vmatprep.subr.mxu0 0.0
        %1068 = vmatpush1.msra.mxu0 0.0
        %1069 = vmatprep.subr.mxu0 0.0
        %1070 = vmatpush1.msra.mxu0 0.0
        %1071 = vmatprep.subr.mxu0 0.0
        %1072 = vmatpush1.msra.mxu0 0.0
        %1073 = vmatprep.subr.mxu0 0.0
        %1074 = vmatpush1.msra.mxu0 0.0
        %1075 = vmatprep.subr.mxu0 0.0
        %1076 = vmatpush1.msra.mxu0 0.0
        %1077 = vmatprep.subr.mxu0 0.0
        %1078 = vmatpush1.msra.mxu0 0.0
        %1079 = vmatprep.subr.mxu0 0.0
        %1080 = vmatpush1.msra.mxu0 0.0
        %1081 = vmatprep.subr.mxu0 0.0
        %1082 = vmatpush1.msra.mxu0 0.0
        %1083 = vmatprep.subr.mxu0 0.0
        %1084 = vmatpush1.msra.mxu0 0.0
        %1085 = vmatprep.subr.mxu0 0.0
        %1086 = vmatpush1.msra.mxu0 0.0
        %1087 = vmatprep.subr.mxu0 0.0
        %1088 = vmatpush1.msra.mxu0 0.0
        %1089 = vmatprep.subr.mxu0 0.0
        %1090 = vmatpush1.msra.mxu0 0.0
        %1091 = vmatprep.subr.mxu0 0.0
        %1092 = vmatpush1.msra.mxu0 0.0
        %1093 = vmatprep.subr.mxu0 0.0
        %1094 = vmatpush1.msra.mxu0 0.0
        %1095 = vmatprep.subr.mxu0 0.0
        %1096 = vmatpush1.msra.mxu0 0.0
        %1097 = vmatprep.subr.mxu0 0.0
        %1098 = vmatpush1.msra.mxu0 0.0
        %1099 = vmatprep.mubr.f32.mxu0 0.0
        %1100 = vmatmul.mubr.f32.gmra.mrb[0].mxu0 %v716
        %v1101 = vpop.f32.mrb[0].mxu0
        %v1102 = vadd.f32 0.0, %v1101
        %v1103 = vpop.f32.mrb[0].mxu0
        %v1104 = vadd.f32 0.0, %v1103
        %1105 = vdwg.mxu0
        %v1106 = vadd.f32 %v1031, %v1102
        %v1107 = vadd.f32 %v1033, %v1104
        %1108 = vmatprep.subr.mxu0 %v692
        %1109 = vmatpush1.msra.mxu0 %v691
        %1110 = vmatprep.subr.mxu0 %v694
        %1111 = vmatpush1.msra.mxu0 %v693
        %1112 = vmatprep.subr.mxu0 %v696
        %1113 = vmatpush1.msra.mxu0 %v695
        %1114 = vmatprep.subr.mxu0 %v698
        %1115 = vmatpush1.msra.mxu0 %v697
        %1116 = vmatprep.subr.mxu0 %v700
        %1117 = vmatpush1.msra.mxu0 %v699
        %1118 = vmatprep.subr.mxu0 %v702
        %1119 = vmatpush1.msra.mxu0 %v701
        %1120 = vmatprep.subr.mxu0 %v704
        %1121 = vmatpush1.msra.mxu0 %v703
        %1122 = vmatprep.subr.mxu0 %v706
        %1123 = vmatpush1.msra.mxu0 %v705
        %1124 = vmatprep.subr.mxu0 %v708
        %1125 = vmatpush1.msra.mxu0 %v707
        %1126 = vmatprep.subr.mxu0 %v710
        %1127 = vmatpush1.msra.mxu0 %v709
        %1128 = vmatprep.subr.mxu0 %v712
        %1129 = vmatpush1.msra.mxu0 %v711
        %1130 = vmatprep.subr.mxu0 %v714
        %1131 = vmatpush1.msra.mxu0 %v713
        %1132 = vmatprep.subr.mxu0 0.0
        %1133 = vmatpush1.msra.mxu0 0.0
        %1134 = vmatprep.subr.mxu0 0.0
        %1135 = vmatpush1.msra.mxu0 0.0
        %1136 = vmatprep.subr.mxu0 0.0
        %1137 = vmatpush1.msra.mxu0 0.0
        %1138 = vmatprep.subr.mxu0 0.0
        %1139 = vmatpush1.msra.mxu0 0.0
        %1140 = vmatprep.subr.mxu0 0.0
        %1141 = vmatpush1.msra.mxu0 0.0
        %1142 = vmatprep.subr.mxu0 0.0
        %1143 = vmatpush1.msra.mxu0 0.0
        %1144 = vmatprep.subr.mxu0 0.0
        %1145 = vmatpush1.msra.mxu0 0.0
        %1146 = vmatprep.subr.mxu0 0.0
        %1147 = vmatpush1.msra.mxu0 0.0
        %1148 = vmatprep.subr.mxu0 0.0
        %1149 = vmatpush1.msra.mxu0 0.0
        %1150 = vmatprep.subr.mxu0 0.0
        %1151 = vmatpush1.msra.mxu0 0.0
        %1152 = vmatprep.subr.mxu0 0.0
        %1153 = vmatpush1.msra.mxu0 0.0
        %1154 = vmatprep.subr.mxu0 0.0
        %1155 = vmatpush1.msra.mxu0 0.0
        %1156 = vmatprep.subr.mxu0 0.0
        %1157 = vmatpush1.msra.mxu0 0.0
        %1158 = vmatprep.subr.mxu0 0.0
        %1159 = vmatpush1.msra.mxu0 0.0
        %1160 = vmatprep.subr.mxu0 0.0
        %1161 = vmatpush1.msra.mxu0 0.0
        %1162 = vmatprep.subr.mxu0 0.0
        %1163 = vmatpush1.msra.mxu0 0.0
        %1164 = vmatprep.subr.mxu0 0.0
        %1165 = vmatpush1.msra.mxu0 0.0
        %1166 = vmatprep.subr.mxu0 0.0
        %1167 = vmatpush1.msra.mxu0 0.0
        %1168 = vmatprep.subr.mxu0 0.0
        %1169 = vmatpush1.msra.mxu0 0.0
        %1170 = vmatprep.subr.mxu0 0.0
        %1171 = vmatpush1.msra.mxu0 0.0
        %1172 = vmatprep.mubr.f32.mxu0 0.0
        %1173 = vmatmul.mubr.f32.gmra.mrb[0].mxu0 %v818
        %v1174 = vpop.f32.mrb[0].mxu0
        %v1175 = vadd.f32 0.0, %v1174
        %v1176 = vpop.f32.mrb[0].mxu0
        %v1177 = vadd.f32 0.0, %v1176
        %1178 = vdwg.mxu0
        %v1179 = vadd.f32 %v1106, %v1175
        %v1180 = vadd.f32 %v1107, %v1177
        %v1181 = vld [vmem:[%s409 + $0x1] sm:$0x7f]
        %v1183 = vsel %vm436, %v1181, 0
        %1185 = vmatprep.subr.mxu0 %v794
        %1186 = vmatpush1.msra.mxu0 %v793
        %1187 = vmatprep.subr.mxu0 %v796
        %1188 = vmatpush1.msra.mxu0 %v795
        %1189 = vmatprep.subr.mxu0 %v798
        %1190 = vmatpush1.msra.mxu0 %v797
        %1191 = vmatprep.subr.mxu0 %v800
        %1192 = vmatpush1.msra.mxu0 %v799
        %1193 = vmatprep.subr.mxu0 %v802
        %1194 = vmatpush1.msra.mxu0 %v801
        %1195 = vmatprep.subr.mxu0 %v804
        %1196 = vmatpush1.msra.mxu0 %v803
        %1197 = vmatprep.subr.mxu0 %v806
        %1198 = vmatpush1.msra.mxu0 %v805
        %1199 = vmatprep.subr.mxu0 %v808
        %1200 = vmatpush1.msra.mxu0 %v807
        %1201 = vmatprep.subr.mxu0 %v810
        %1202 = vmatpush1.msra.mxu0 %v809
        %1203 = vmatprep.subr.mxu0 %v812
        %1204 = vmatpush1.msra.mxu0 %v811
        %1205 = vmatprep.subr.mxu0 %v814
        %1206 = vmatpush1.msra.mxu0 %v813
        %1207 = vmatprep.subr.mxu0 %v816
        %1208 = vmatpush1.msra.mxu0 %v815
        %1209 = vmatprep.subr.mxu0 0.0
        %1210 = vmatpush1.msra.mxu0 0.0
        %1211 = vmatprep.subr.mxu0 0.0
        %1212 = vmatpush1.msra.mxu0 0.0
        %1213 = vmatprep.subr.mxu0 0.0
        %1214 = vmatpush1.msra.mxu0 0.0
        %1215 = vmatprep.subr.mxu0 0.0
        %1216 = vmatpush1.msra.mxu0 0.0
        %1217 = vmatprep.subr.mxu0 0.0
        %1218 = vmatpush1.msra.mxu0 0.0
        %1219 = vmatprep.subr.mxu0 0.0
        %1220 = vmatpush1.msra.mxu0 0.0
        %1221 = vmatprep.subr.mxu0 0.0
        %1222 = vmatpush1.msra.mxu0 0.0
        %1223 = vmatprep.subr.mxu0 0.0
        %1224 = vmatpush1.msra.mxu0 0.0
        %1225 = vmatprep.subr.mxu0 0.0
        %1226 = vmatpush1.msra.mxu0 0.0
        %1227 = vmatprep.subr.mxu0 0.0
        %1228 = vmatpush1.msra.mxu0 0.0
        %1229 = vmatprep.subr.mxu0 0.0
        %1230 = vmatpush1.msra.mxu0 0.0
        %1231 = vmatprep.subr.mxu0 0.0
        %1232 = vmatpush1.msra.mxu0 0.0
        %1233 = vmatprep.subr.mxu0 0.0
        %1234 = vmatpush1.msra.mxu0 0.0
        %1235 = vmatprep.subr.mxu0 0.0
        %1236 = vmatpush1.msra.mxu0 0.0
        %1237 = vmatprep.subr.mxu0 0.0
        %1238 = vmatpush1.msra.mxu0 0.0
        %1239 = vmatprep.subr.mxu0 0.0
        %1240 = vmatpush1.msra.mxu0 0.0
        %1241 = vmatprep.subr.mxu0 0.0
        %1242 = vmatpush1.msra.mxu0 0.0
        %1243 = vmatprep.subr.mxu0 0.0
        %1244 = vmatpush1.msra.mxu0 0.0
        %1245 = vmatprep.subr.mxu0 0.0
        %1246 = vmatpush1.msra.mxu0 0.0
        %1247 = vmatprep.subr.mxu0 0.0
        %1248 = vmatpush1.msra.mxu0 0.0
        %1249 = vmatprep.mubr.f32.mxu0 0.0
        %1250 = vmatmul.mubr.f32.gmra.mrb[0].mxu0 %v1183
        %v1251 = vpop.f32.mrb[0].mxu0
        %v1252 = vadd.f32 0.0, %v1251
        %v1253 = vpop.f32.mrb[0].mxu0
        %v1254 = vadd.f32 0.0, %v1253
        %1255 = vdwg.mxu0
        %v1256 = vadd.f32 %v1179, %v1252
        %v1257 = vadd.f32 %v1180, %v1254
        %1258 = vmatprep.subr.mxu0 %v413
        %1259 = vmatpush1.msra.mxu0 %v412
        %1260 = vmatprep.subr.mxu0 %v415
        %1261 = vmatpush1.msra.mxu0 %v414
        %1262 = vmatprep.subr.mxu0 %v417
        %1263 = vmatpush1.msra.mxu0 %v416
        %1264 = vmatprep.subr.mxu0 %v419
        %1265 = vmatpush1.msra.mxu0 %v418
        %1266 = vmatprep.subr.mxu0 %v421
        %1267 = vmatpush1.msra.mxu0 %v420
        %1268 = vmatprep.subr.mxu0 %v423
        %1269 = vmatpush1.msra.mxu0 %v422
        %1270 = vmatprep.subr.mxu0 %v425
        %1271 = vmatpush1.msra.mxu0 %v424
        %1272 = vmatprep.subr.mxu0 %v427
        %1273 = vmatpush1.msra.mxu0 %v426
        %1274 = vmatprep.subr.mxu0 %v429
        %1275 = vmatpush1.msra.mxu0 %v428
        %1276 = vmatprep.subr.mxu0 %v431
        %1277 = vmatpush1.msra.mxu0 %v430
        %1278 = vmatprep.subr.mxu0 %v433
        %1279 = vmatpush1.msra.mxu0 %v432
        %1280 = vmatprep.subr.mxu0 %v435
        %1281 = vmatpush1.msra.mxu0 %v434
        %1282 = vmatprep.subr.mxu0 0.0
        %1283 = vmatpush1.msra.mxu0 0.0
        %1284 = vmatprep.subr.mxu0 0.0
        %1285 = vmatpush1.msra.mxu0 0.0
        %1286 = vmatprep.subr.mxu0 0.0
        %1287 = vmatpush1.msra.mxu0 0.0
        %1288 = vmatprep.subr.mxu0 0.0
        %1289 = vmatpush1.msra.mxu0 0.0
        %1290 = vmatprep.subr.mxu0 0.0
        %1291 = vmatpush1.msra.mxu0 0.0
        %1292 = vmatprep.subr.mxu0 0.0
        %1293 = vmatpush1.msra.mxu0 0.0
        %1294 = vmatprep.subr.mxu0 0.0
        %1295 = vmatpush1.msra.mxu0 0.0
        %1296 = vmatprep.subr.mxu0 0.0
        %1297 = vmatpush1.msra.mxu0 0.0
        %1298 = vmatprep.subr.mxu0 0.0
        %1299 = vmatpush1.msra.mxu0 0.0
        %1300 = vmatprep.subr.mxu0 0.0
        %1301 = vmatpush1.msra.mxu0 0.0
        %1302 = vmatprep.subr.mxu0 0.0
        %1303 = vmatpush1.msra.mxu0 0.0
        %1304 = vmatprep.subr.mxu0 0.0
        %1305 = vmatpush1.msra.mxu0 0.0
        %1306 = vmatprep.subr.mxu0 0.0
        %1307 = vmatpush1.msra.mxu0 0.0
        %1308 = vmatprep.subr.mxu0 0.0
        %1309 = vmatpush1.msra.mxu0 0.0
        %1310 = vmatprep.subr.mxu0 0.0
        %1311 = vmatpush1.msra.mxu0 0.0
        %1312 = vmatprep.subr.mxu0 0.0
        %1313 = vmatpush1.msra.mxu0 0.0
        %1314 = vmatprep.subr.mxu0 0.0
        %1315 = vmatpush1.msra.mxu0 0.0
        %1316 = vmatprep.subr.mxu0 0.0
        %1317 = vmatpush1.msra.mxu0 0.0
        %1318 = vmatprep.subr.mxu0 0.0
        %1319 = vmatpush1.msra.mxu0 0.0
        %1320 = vmatprep.subr.mxu0 0.0
        %1321 = vmatpush1.msra.mxu0 0.0
        %1322 = vmatprep.mubr.f32.mxu0 0.0
        %1323 = vmatmul.mubr.f32.gmra.mrb[0].mxu0 %v716
        %v1324 = vpop.f32.mrb[0].mxu0
        %v1325 = vadd.f32 0.0, %v1324
        %v1326 = vpop.f32.mrb[0].mxu0
        %v1327 = vadd.f32 0.0, %v1326
        %1328 = vdwg.mxu0
        %1329 = vmatprep.subr.mxu0 %v386
        %1330 = vmatpush1.msra.mxu0 %v385
        %1331 = vmatprep.subr.mxu0 %v388
        %1332 = vmatpush1.msra.mxu0 %v387
        %1333 = vmatprep.subr.mxu0 %v390
        %1334 = vmatpush1.msra.mxu0 %v389
        %1335 = vmatprep.subr.mxu0 %v392
        %1336 = vmatpush1.msra.mxu0 %v391
        %1337 = vmatprep.subr.mxu0 %v394
        %1338 = vmatpush1.msra.mxu0 %v393
        %1339 = vmatprep.subr.mxu0 %v396
        %1340 = vmatpush1.msra.mxu0 %v395
        %1341 = vmatprep.subr.mxu0 %v398
        %1342 = vmatpush1.msra.mxu0 %v397
        %1343 = vmatprep.subr.mxu0 %v400
        %1344 = vmatpush1.msra.mxu0 %v399
        %1345 = vmatprep.subr.mxu0 %v402
        %1346 = vmatpush1.msra.mxu0 %v401
        %1347 = vmatprep.subr.mxu0 %v404
        %1348 = vmatpush1.msra.mxu0 %v403
        %1349 = vmatprep.subr.mxu0 %v406
        %1350 = vmatpush1.msra.mxu0 %v405
        %1351 = vmatprep.subr.mxu0 %v408
        %1352 = vmatpush1.msra.mxu0 %v407
        %1353 = vmatprep.subr.mxu0 0.0
        %1354 = vmatpush1.msra.mxu0 0.0
        %1355 = vmatprep.subr.mxu0 0.0
        %1356 = vmatpush1.msra.mxu0 0.0
        %1357 = vmatprep.subr.mxu0 0.0
        %1358 = vmatpush1.msra.mxu0 0.0
        %1359 = vmatprep.subr.mxu0 0.0
        %1360 = vmatpush1.msra.mxu0 0.0
        %1361 = vmatprep.subr.mxu0 0.0
        %1362 = vmatpush1.msra.mxu0 0.0
        %1363 = vmatprep.subr.mxu0 0.0
        %1364 = vmatpush1.msra.mxu0 0.0
        %1365 = vmatprep.subr.mxu0 0.0
        %1366 = vmatpush1.msra.mxu0 0.0
        %1367 = vmatprep.subr.mxu0 0.0
        %1368 = vmatpush1.msra.mxu0 0.0
        %1369 = vmatprep.subr.mxu0 0.0
        %1370 = vmatpush1.msra.mxu0 0.0
        %1371 = vmatprep.subr.mxu0 0.0
        %1372 = vmatpush1.msra.mxu0 0.0
        %1373 = vmatprep.subr.mxu0 0.0
        %1374 = vmatpush1.msra.mxu0 0.0
        %1375 = vmatprep.subr.mxu0 0.0
        %1376 = vmatpush1.msra.mxu0 0.0
        %1377 = vmatprep.subr.mxu0 0.0
        %1378 = vmatpush1.msra.mxu0 0.0
        %1379 = vmatprep.subr.mxu0 0.0
        %1380 = vmatpush1.msra.mxu0 0.0
        %1381 = vmatprep.subr.mxu0 0.0
        %1382 = vmatpush1.msra.mxu0 0.0
        %1383 = vmatprep.subr.mxu0 0.0
        %1384 = vmatpush1.msra.mxu0 0.0
        %1385 = vmatprep.subr.mxu0 0.0
        %1386 = vmatpush1.msra.mxu0 0.0
        %1387 = vmatprep.subr.mxu0 0.0
        %1388 = vmatpush1.msra.mxu0 0.0
        %1389 = vmatprep.subr.mxu0 0.0
        %1390 = vmatpush1.msra.mxu0 0.0
        %1391 = vmatprep.subr.mxu0 0.0
        %1392 = vmatpush1.msra.mxu0 0.0
        %1393 = vmatprep.mubr.f32.mxu0 0.0
        %1394 = vmatmul.mubr.f32.gmra.mrb[0].mxu0 %v613
        %v1395 = vpop.f32.mrb[0].mxu0
        %v1396 = vadd.f32 %v1325, %v1395
        %v1397 = vpop.f32.mrb[0].mxu0
        %v1398 = vadd.f32 %v1327, %v1397
        %1399 = vdwg.mxu0
        %1400 = vmatprep.subr.mxu0 %v589
        %1401 = vmatpush1.msra.mxu0 %v588
        %1402 = vmatprep.subr.mxu0 %v591
        %1403 = vmatpush1.msra.mxu0 %v590
        %1404 = vmatprep.subr.mxu0 %v593
        %1405 = vmatpush1.msra.mxu0 %v592
        %1406 = vmatprep.subr.mxu0 %v595
        %1407 = vmatpush1.msra.mxu0 %v594
        %1408 = vmatprep.subr.mxu0 %v597
        %1409 = vmatpush1.msra.mxu0 %v596
        %1410 = vmatprep.subr.mxu0 %v599
        %1411 = vmatpush1.msra.mxu0 %v598
        %1412 = vmatprep.subr.mxu0 %v601
        %1413 = vmatpush1.msra.mxu0 %v600
        %1414 = vmatprep.subr.mxu0 %v603
        %1415 = vmatpush1.msra.mxu0 %v602
        %1416 = vmatprep.subr.mxu0 %v605
        %1417 = vmatpush1.msra.mxu0 %v604
        %1418 = vmatprep.subr.mxu0 %v607
        %1419 = vmatpush1.msra.mxu0 %v606
        %1420 = vmatprep.subr.mxu0 %v609
        %1421 = vmatpush1.msra.mxu0 %v608
        %1422 = vmatprep.subr.mxu0 %v611
        %1423 = vmatpush1.msra.mxu0 %v610
        %1424 = vmatprep.subr.mxu0 0.0
        %1425 = vmatpush1.msra.mxu0 0.0
        %1426 = vmatprep.subr.mxu0 0.0
        %1427 = vmatpush1.msra.mxu0 0.0
        %1428 = vmatprep.subr.mxu0 0.0
        %1429 = vmatpush1.msra.mxu0 0.0
        %1430 = vmatprep.subr.mxu0 0.0
        %1431 = vmatpush1.msra.mxu0 0.0
        %1432 = vmatprep.subr.mxu0 0.0
        %1433 = vmatpush1.msra.mxu0 0.0
        %1434 = vmatprep.subr.mxu0 0.0
        %1435 = vmatpush1.msra.mxu0 0.0
        %1436 = vmatprep.subr.mxu0 0.0
        %1437 = vmatpush1.msra.mxu0 0.0
        %1438 = vmatprep.subr.mxu0 0.0
        %1439 = vmatpush1.msra.mxu0 0.0
        %1440 = vmatprep.subr.mxu0 0.0
        %1441 = vmatpush1.msra.mxu0 0.0
        %1442 = vmatprep.subr.mxu0 0.0
        %1443 = vmatpush1.msra.mxu0 0.0
        %1444 = vmatprep.subr.mxu0 0.0
        %1445 = vmatpush1.msra.mxu0 0.0
        %1446 = vmatprep.subr.mxu0 0.0
        %1447 = vmatpush1.msra.mxu0 0.0
        %1448 = vmatprep.subr.mxu0 0.0
        %1449 = vmatpush1.msra.mxu0 0.0
        %1450 = vmatprep.subr.mxu0 0.0
        %1451 = vmatpush1.msra.mxu0 0.0
        %1452 = vmatprep.subr.mxu0 0.0
        %1453 = vmatpush1.msra.mxu0 0.0
        %1454 = vmatprep.subr.mxu0 0.0
        %1455 = vmatpush1.msra.mxu0 0.0
        %1456 = vmatprep.subr.mxu0 0.0
        %1457 = vmatpush1.msra.mxu0 0.0
        %1458 = vmatprep.subr.mxu0 0.0
        %1459 = vmatpush1.msra.mxu0 0.0
        %1460 = vmatprep.subr.mxu0 0.0
        %1461 = vmatpush1.msra.mxu0 0.0
        %1462 = vmatprep.subr.mxu0 0.0
        %1463 = vmatpush1.msra.mxu0 0.0
        %1464 = vmatprep.mubr.f32.mxu0 0.0
        %1465 = vmatmul.mubr.f32.gmra.mrb[0].mxu0 %v818
        %v1466 = vpop.f32.mrb[0].mxu0
        %v1467 = vadd.f32 0.0, %v1466
        %v1468 = vpop.f32.mrb[0].mxu0
        %v1469 = vadd.f32 0.0, %v1468
        %1470 = vdwg.mxu0
        %v1471 = vadd.f32 %v1396, %v1467
        %v1472 = vadd.f32 %v1398, %v1469
        %1473 = vmatprep.subr.mxu0 %v692
        %1474 = vmatpush1.msra.mxu0 %v691
        %1475 = vmatprep.subr.mxu0 %v694
        %1476 = vmatpush1.msra.mxu0 %v693
        %1477 = vmatprep.subr.mxu0 %v696
        %1478 = vmatpush1.msra.mxu0 %v695
        %1479 = vmatprep.subr.mxu0 %v698
        %1480 = vmatpush1.msra.mxu0 %v697
        %1481 = vmatprep.subr.mxu0 %v700
        %1482 = vmatpush1.msra.mxu0 %v699
        %1483 = vmatprep.subr.mxu0 %v702
        %1484 = vmatpush1.msra.mxu0 %v701
        %1485 = vmatprep.subr.mxu0 %v704
        %1486 = vmatpush1.msra.mxu0 %v703
        %1487 = vmatprep.subr.mxu0 %v706
        %1488 = vmatpush1.msra.mxu0 %v705
        %1489 = vmatprep.subr.mxu0 %v708
        %1490 = vmatpush1.msra.mxu0 %v707
        %1491 = vmatprep.subr.mxu0 %v710
        %1492 = vmatpush1.msra.mxu0 %v709
        %1493 = vmatprep.subr.mxu0 %v712
        %1494 = vmatpush1.msra.mxu0 %v711
        %1495 = vmatprep.subr.mxu0 %v714
        %1496 = vmatpush1.msra.mxu0 %v713
        %1497 = vmatprep.subr.mxu0 0.0
        %1498 = vmatpush1.msra.mxu0 0.0
        %1499 = vmatprep.subr.mxu0 0.0
        %1500 = vmatpush1.msra.mxu0 0.0
        %1501 = vmatprep.subr.mxu0 0.0
        %1502 = vmatpush1.msra.mxu0 0.0
        %1503 = vmatprep.subr.mxu0 0.0
        %1504 = vmatpush1.msra.mxu0 0.0
        %1505 = vmatprep.subr.mxu0 0.0
        %1506 = vmatpush1.msra.mxu0 0.0
        %1507 = vmatprep.subr.mxu0 0.0
        %1508 = vmatpush1.msra.mxu0 0.0
        %1509 = vmatprep.subr.mxu0 0.0
        %1510 = vmatpush1.msra.mxu0 0.0
        %1511 = vmatprep.subr.mxu0 0.0
        %1512 = vmatpush1.msra.mxu0 0.0
        %1513 = vmatprep.subr.mxu0 0.0
        %1514 = vmatpush1.msra.mxu0 0.0
        %1515 = vmatprep.subr.mxu0 0.0
        %1516 = vmatpush1.msra.mxu0 0.0
        %1517 = vmatprep.subr.mxu0 0.0
        %1518 = vmatpush1.msra.mxu0 0.0
        %1519 = vmatprep.subr.mxu0 0.0
        %1520 = vmatpush1.msra.mxu0 0.0
        %1521 = vmatprep.subr.mxu0 0.0
        %1522 = vmatpush1.msra.mxu0 0.0
        %1523 = vmatprep.subr.mxu0 0.0
        %1524 = vmatpush1.msra.mxu0 0.0
        %1525 = vmatprep.subr.mxu0 0.0
        %1526 = vmatpush1.msra.mxu0 0.0
        %1527 = vmatprep.subr.mxu0 0.0
        %1528 = vmatpush1.msra.mxu0 0.0
        %1529 = vmatprep.subr.mxu0 0.0
        %1530 = vmatpush1.msra.mxu0 0.0
        %1531 = vmatprep.subr.mxu0 0.0
        %1532 = vmatpush1.msra.mxu0 0.0
        %1533 = vmatprep.subr.mxu0 0.0
        %1534 = vmatpush1.msra.mxu0 0.0
        %1535 = vmatprep.subr.mxu0 0.0
        %1536 = vmatpush1.msra.mxu0 0.0
        %1537 = vmatprep.mubr.f32.mxu0 0.0
        %1538 = vmatmul.mubr.f32.gmra.mrb[0].mxu0 %v1183
        %v1539 = vpop.f32.mrb[0].mxu0
        %v1540 = vadd.f32 0.0, %v1539
        %v1541 = vpop.f32.mrb[0].mxu0
        %v1542 = vadd.f32 0.0, %v1541
        %1543 = vdwg.mxu0
        %v1544 = vadd.f32 %v1471, %v1540
        %v1545 = vadd.f32 %v1472, %v1542
        %v1546 = vld [vmem:[%s585 + $0x1] sm:$0x7f]
        %v1548 = vsel %vm436, %v1546, 0
        %1550 = vmatprep.subr.mxu0 %v794
        %1551 = vmatpush1.msra.mxu0 %v793
        %1552 = vmatprep.subr.mxu0 %v796
        %1553 = vmatpush1.msra.mxu0 %v795
        %1554 = vmatprep.subr.mxu0 %v798
        %1555 = vmatpush1.msra.mxu0 %v797
        %1556 = vmatprep.subr.mxu0 %v800
        %1557 = vmatpush1.msra.mxu0 %v799
        %1558 = vmatprep.subr.mxu0 %v802
        %1559 = vmatpush1.msra.mxu0 %v801
        %1560 = vmatprep.subr.mxu0 %v804
        %1561 = vmatpush1.msra.mxu0 %v803
        %1562 = vmatprep.subr.mxu0 %v806
        %1563 = vmatpush1.msra.mxu0 %v805
        %1564 = vmatprep.subr.mxu0 %v808
        %1565 = vmatpush1.msra.mxu0 %v807
        %1566 = vmatprep.subr.mxu0 %v810
        %1567 = vmatpush1.msra.mxu0 %v809
        %1568 = vmatprep.subr.mxu0 %v812
        %1569 = vmatpush1.msra.mxu0 %v811
        %1570 = vmatprep.subr.mxu0 %v814
        %1571 = vmatpush1.msra.mxu0 %v813
        %1572 = vmatprep.subr.mxu0 %v816
        %1573 = vmatpush1.msra.mxu0 %v815
        %1574 = vmatprep.subr.mxu0 0.0
        %1575 = vmatpush1.msra.mxu0 0.0
        %1576 = vmatprep.subr.mxu0 0.0
        %1577 = vmatpush1.msra.mxu0 0.0
        %1578 = vmatprep.subr.mxu0 0.0
        %1579 = vmatpush1.msra.mxu0 0.0
        %1580 = vmatprep.subr.mxu0 0.0
        %1581 = vmatpush1.msra.mxu0 0.0
        %1582 = vmatprep.subr.mxu0 0.0
        %1583 = vmatpush1.msra.mxu0 0.0
        %1584 = vmatprep.subr.mxu0 0.0
        %1585 = vmatpush1.msra.mxu0 0.0
        %1586 = vmatprep.subr.mxu0 0.0
        %1587 = vmatpush1.msra.mxu0 0.0
        %1588 = vmatprep.subr.mxu0 0.0
        %1589 = vmatpush1.msra.mxu0 0.0
        %1590 = vmatprep.subr.mxu0 0.0
        %1591 = vmatpush1.msra.mxu0 0.0
        %1592 = vmatprep.subr.mxu0 0.0
        %1593 = vmatpush1.msra.mxu0 0.0
        %1594 = vmatprep.subr.mxu0 0.0
        %1595 = vmatpush1.msra.mxu0 0.0
        %1596 = vmatprep.subr.mxu0 0.0
        %1597 = vmatpush1.msra.mxu0 0.0
        %1598 = vmatprep.subr.mxu0 0.0
        %1599 = vmatpush1.msra.mxu0 0.0
        %1600 = vmatprep.subr.mxu0 0.0
        %1601 = vmatpush1.msra.mxu0 0.0
        %1602 = vmatprep.subr.mxu0 0.0
        %1603 = vmatpush1.msra.mxu0 0.0
        %1604 = vmatprep.subr.mxu0 0.0
        %1605 = vmatpush1.msra.mxu0 0.0
        %1606 = vmatprep.subr.mxu0 0.0
        %1607 = vmatpush1.msra.mxu0 0.0
        %1608 = vmatprep.subr.mxu0 0.0
        %1609 = vmatpush1.msra.mxu0 0.0
        %1610 = vmatprep.subr.mxu0 0.0
        %1611 = vmatpush1.msra.mxu0 0.0
        %1612 = vmatprep.subr.mxu0 0.0
        %1613 = vmatpush1.msra.mxu0 0.0
        %1614 = vmatprep.mubr.f32.mxu0 0.0
        %1615 = vmatmul.mubr.f32.gmra.mrb[0].mxu0 %v1548
        %v1616 = vpop.f32.mrb[0].mxu0
        %v1617 = vadd.f32 0.0, %v1616
        %v1618 = vpop.f32.mrb[0].mxu0
        %v1619 = vadd.f32 0.0, %v1618
        %1620 = vdwg.mxu0
        %v1621 = vadd.f32 %v1544, %v1617
        %v1622 = vadd.f32 %v1545, %v1619
        %1623 = vmatprep.subr.mxu0 %v413
        %1624 = vmatpush1.msra.mxu0 %v412
        %1625 = vmatprep.subr.mxu0 %v415
        %1626 = vmatpush1.msra.mxu0 %v414
        %1627 = vmatprep.subr.mxu0 %v417
        %1628 = vmatpush1.msra.mxu0 %v416
        %1629 = vmatprep.subr.mxu0 %v419
        %1630 = vmatpush1.msra.mxu0 %v418
        %1631 = vmatprep.subr.mxu0 %v421
        %1632 = vmatpush1.msra.mxu0 %v420
        %1633 = vmatprep.subr.mxu0 %v423
        %1634 = vmatpush1.msra.mxu0 %v422
        %1635 = vmatprep.subr.mxu0 %v425
        %1636 = vmatpush1.msra.mxu0 %v424
        %1637 = vmatprep.subr.mxu0 %v427
        %1638 = vmatpush1.msra.mxu0 %v426
        %1639 = vmatprep.subr.mxu0 %v429
        %1640 = vmatpush1.msra.mxu0 %v428
        %1641 = vmatprep.subr.mxu0 %v431
        %1642 = vmatpush1.msra.mxu0 %v430
        %1643 = vmatprep.subr.mxu0 %v433
        %1644 = vmatpush1.msra.mxu0 %v432
        %1645 = vmatprep.subr.mxu0 %v435
        %1646 = vmatpush1.msra.mxu0 %v434
        %1647 = vmatprep.subr.mxu0 0.0
        %1648 = vmatpush1.msra.mxu0 0.0
        %1649 = vmatprep.subr.mxu0 0.0
        %1650 = vmatpush1.msra.mxu0 0.0
        %1651 = vmatprep.subr.mxu0 0.0
        %1652 = vmatpush1.msra.mxu0 0.0
        %1653 = vmatprep.subr.mxu0 0.0
        %1654 = vmatpush1.msra.mxu0 0.0
        %1655 = vmatprep.subr.mxu0 0.0
        %1656 = vmatpush1.msra.mxu0 0.0
        %1657 = vmatprep.subr.mxu0 0.0
        %1658 = vmatpush1.msra.mxu0 0.0
        %1659 = vmatprep.subr.mxu0 0.0
        %1660 = vmatpush1.msra.mxu0 0.0
        %1661 = vmatprep.subr.mxu0 0.0
        %1662 = vmatpush1.msra.mxu0 0.0
        %1663 = vmatprep.subr.mxu0 0.0
        %1664 = vmatpush1.msra.mxu0 0.0
        %1665 = vmatprep.subr.mxu0 0.0
        %1666 = vmatpush1.msra.mxu0 0.0
        %1667 = vmatprep.subr.mxu0 0.0
        %1668 = vmatpush1.msra.mxu0 0.0
        %1669 = vmatprep.subr.mxu0 0.0
        %1670 = vmatpush1.msra.mxu0 0.0
        %1671 = vmatprep.subr.mxu0 0.0
        %1672 = vmatpush1.msra.mxu0 0.0
        %1673 = vmatprep.subr.mxu0 0.0
        %1674 = vmatpush1.msra.mxu0 0.0
        %1675 = vmatprep.subr.mxu0 0.0
        %1676 = vmatpush1.msra.mxu0 0.0
        %1677 = vmatprep.subr.mxu0 0.0
        %1678 = vmatpush1.msra.mxu0 0.0
        %1679 = vmatprep.subr.mxu0 0.0
        %1680 = vmatpush1.msra.mxu0 0.0
        %1681 = vmatprep.subr.mxu0 0.0
        %1682 = vmatpush1.msra.mxu0 0.0
        %1683 = vmatprep.subr.mxu0 0.0
        %1684 = vmatpush1.msra.mxu0 0.0
        %1685 = vmatprep.subr.mxu0 0.0
        %1686 = vmatpush1.msra.mxu0 0.0
        %1687 = vmatprep.mubr.f32.mxu0 0.0
        %1688 = vmatmul.mubr.f32.gmra.mrb[0].mxu0 %v818
        %v1689 = vpop.f32.mrb[0].mxu0
        %v1690 = vadd.f32 0.0, %v1689
        %v1691 = vpop.f32.mrb[0].mxu0
        %v1692 = vadd.f32 0.0, %v1691
        %1693 = vdwg.mxu0
        %1694 = vmatprep.subr.mxu0 %v386
        %1695 = vmatpush1.msra.mxu0 %v385
        %1696 = vmatprep.subr.mxu0 %v388
        %1697 = vmatpush1.msra.mxu0 %v387
        %1698 = vmatprep.subr.mxu0 %v390
        %1699 = vmatpush1.msra.mxu0 %v389
        %1700 = vmatprep.subr.mxu0 %v392
        %1701 = vmatpush1.msra.mxu0 %v391
        %1702 = vmatprep.subr.mxu0 %v394
        %1703 = vmatpush1.msra.mxu0 %v393
        %1704 = vmatprep.subr.mxu0 %v396
        %1705 = vmatpush1.msra.mxu0 %v395
        %1706 = vmatprep.subr.mxu0 %v398
        %1707 = vmatpush1.msra.mxu0 %v397
        %1708 = vmatprep.subr.mxu0 %v400
        %1709 = vmatpush1.msra.mxu0 %v399
        %1710 = vmatprep.subr.mxu0 %v402
        %1711 = vmatpush1.msra.mxu0 %v401
        %1712 = vmatprep.subr.mxu0 %v404
        %1713 = vmatpush1.msra.mxu0 %v403
        %1714 = vmatprep.subr.mxu0 %v406
        %1715 = vmatpush1.msra.mxu0 %v405
        %1716 = vmatprep.subr.mxu0 %v408
        %1717 = vmatpush1.msra.mxu0 %v407
        %1718 = vmatprep.subr.mxu0 0.0
        %1719 = vmatpush1.msra.mxu0 0.0
        %1720 = vmatprep.subr.mxu0 0.0
        %1721 = vmatpush1.msra.mxu0 0.0
        %1722 = vmatprep.subr.mxu0 0.0
        %1723 = vmatpush1.msra.mxu0 0.0
        %1724 = vmatprep.subr.mxu0 0.0
        %1725 = vmatpush1.msra.mxu0 0.0
        %1726 = vmatprep.subr.mxu0 0.0
        %1727 = vmatpush1.msra.mxu0 0.0
        %1728 = vmatprep.subr.mxu0 0.0
        %1729 = vmatpush1.msra.mxu0 0.0
        %1730 = vmatprep.subr.mxu0 0.0
        %1731 = vmatpush1.msra.mxu0 0.0
        %1732 = vmatprep.subr.mxu0 0.0
        %1733 = vmatpush1.msra.mxu0 0.0
        %1734 = vmatprep.subr.mxu0 0.0
        %1735 = vmatpush1.msra.mxu0 0.0
        %1736 = vmatprep.subr.mxu0 0.0
        %1737 = vmatpush1.msra.mxu0 0.0
        %1738 = vmatprep.subr.mxu0 0.0
        %1739 = vmatpush1.msra.mxu0 0.0
        %1740 = vmatprep.subr.mxu0 0.0
        %1741 = vmatpush1.msra.mxu0 0.0
        %1742 = vmatprep.subr.mxu0 0.0
        %1743 = vmatpush1.msra.mxu0 0.0
        %1744 = vmatprep.subr.mxu0 0.0
        %1745 = vmatpush1.msra.mxu0 0.0
        %1746 = vmatprep.subr.mxu0 0.0
        %1747 = vmatpush1.msra.mxu0 0.0
        %1748 = vmatprep.subr.mxu0 0.0
        %1749 = vmatpush1.msra.mxu0 0.0
        %1750 = vmatprep.subr.mxu0 0.0
        %1751 = vmatpush1.msra.mxu0 0.0
        %1752 = vmatprep.subr.mxu0 0.0
        %1753 = vmatpush1.msra.mxu0 0.0
        %1754 = vmatprep.subr.mxu0 0.0
        %1755 = vmatpush1.msra.mxu0 0.0
        %1756 = vmatprep.subr.mxu0 0.0
        %1757 = vmatpush1.msra.mxu0 0.0
        %1758 = vmatprep.mubr.f32.mxu0 0.0
        %1759 = vmatmul.mubr.f32.gmra.mrb[0].mxu0 %v716
        %v1760 = vpop.f32.mrb[0].mxu0
        %v1761 = vadd.f32 %v1690, %v1760
        %v1762 = vpop.f32.mrb[0].mxu0
        %v1763 = vadd.f32 %v1692, %v1762
        %1764 = vdwg.mxu0
        %1765 = vmatprep.subr.mxu0 %v589
        %1766 = vmatpush1.msra.mxu0 %v588
        %1767 = vmatprep.subr.mxu0 %v591
        %1768 = vmatpush1.msra.mxu0 %v590
        %1769 = vmatprep.subr.mxu0 %v593
        %1770 = vmatpush1.msra.mxu0 %v592
        %1771 = vmatprep.subr.mxu0 %v595
        %1772 = vmatpush1.msra.mxu0 %v594
        %1773 = vmatprep.subr.mxu0 %v597
        %1774 = vmatpush1.msra.mxu0 %v596
        %1775 = vmatprep.subr.mxu0 %v599
        %1776 = vmatpush1.msra.mxu0 %v598
        %1777 = vmatprep.subr.mxu0 %v601
        %1778 = vmatpush1.msra.mxu0 %v600
        %1779 = vmatprep.subr.mxu0 %v603
        %1780 = vmatpush1.msra.mxu0 %v602
        %1781 = vmatprep.subr.mxu0 %v605
        %1782 = vmatpush1.msra.mxu0 %v604
        %1783 = vmatprep.subr.mxu0 %v607
        %1784 = vmatpush1.msra.mxu0 %v606
        %1785 = vmatprep.subr.mxu0 %v609
        %1786 = vmatpush1.msra.mxu0 %v608
        %1787 = vmatprep.subr.mxu0 %v611
        %1788 = vmatpush1.msra.mxu0 %v610
        %1789 = vmatprep.subr.mxu0 0.0
        %1790 = vmatpush1.msra.mxu0 0.0
        %1791 = vmatprep.subr.mxu0 0.0
        %1792 = vmatpush1.msra.mxu0 0.0
        %1793 = vmatprep.subr.mxu0 0.0
        %1794 = vmatpush1.msra.mxu0 0.0
        %1795 = vmatprep.subr.mxu0 0.0
        %1796 = vmatpush1.msra.mxu0 0.0
        %1797 = vmatprep.subr.mxu0 0.0
        %1798 = vmatpush1.msra.mxu0 0.0
        %1799 = vmatprep.subr.mxu0 0.0
        %1800 = vmatpush1.msra.mxu0 0.0
        %1801 = vmatprep.subr.mxu0 0.0
        %1802 = vmatpush1.msra.mxu0 0.0
        %1803 = vmatprep.subr.mxu0 0.0
        %1804 = vmatpush1.msra.mxu0 0.0
        %1805 = vmatprep.subr.mxu0 0.0
        %1806 = vmatpush1.msra.mxu0 0.0
        %1807 = vmatprep.subr.mxu0 0.0
        %1808 = vmatpush1.msra.mxu0 0.0
        %1809 = vmatprep.subr.mxu0 0.0
        %1810 = vmatpush1.msra.mxu0 0.0
        %1811 = vmatprep.subr.mxu0 0.0
        %1812 = vmatpush1.msra.mxu0 0.0
        %1813 = vmatprep.subr.mxu0 0.0
        %1814 = vmatpush1.msra.mxu0 0.0
        %1815 = vmatprep.subr.mxu0 0.0
        %1816 = vmatpush1.msra.mxu0 0.0
        %1817 = vmatprep.subr.mxu0 0.0
        %1818 = vmatpush1.msra.mxu0 0.0
        %1819 = vmatprep.subr.mxu0 0.0
        %1820 = vmatpush1.msra.mxu0 0.0
        %1821 = vmatprep.subr.mxu0 0.0
        %1822 = vmatpush1.msra.mxu0 0.0
        %1823 = vmatprep.subr.mxu0 0.0
        %1824 = vmatpush1.msra.mxu0 0.0
        %1825 = vmatprep.subr.mxu0 0.0
        %1826 = vmatpush1.msra.mxu0 0.0
        %1827 = vmatprep.subr.mxu0 0.0
        %1828 = vmatpush1.msra.mxu0 0.0
        %1829 = vmatprep.mubr.f32.mxu0 0.0
        %1830 = vmatmul.mubr.f32.gmra.mrb[0].mxu0 %v1183
        %v1831 = vpop.f32.mrb[0].mxu0
        %v1832 = vadd.f32 0.0, %v1831
        %v1833 = vpop.f32.mrb[0].mxu0
        %v1834 = vadd.f32 0.0, %v1833
        %1835 = vdwg.mxu0
        %v1836 = vadd.f32 %v1761, %v1832
        %v1837 = vadd.f32 %v1763, %v1834
        %1838 = vmatprep.subr.mxu0 %v692
        %1839 = vmatpush1.msra.mxu0 %v691
        %1840 = vmatprep.subr.mxu0 %v694
        %1841 = vmatpush1.msra.mxu0 %v693
        %1842 = vmatprep.subr.mxu0 %v696
        %1843 = vmatpush1.msra.mxu0 %v695
        %1844 = vmatprep.subr.mxu0 %v698
        %1845 = vmatpush1.msra.mxu0 %v697
        %1846 = vmatprep.subr.mxu0 %v700
        %1847 = vmatpush1.msra.mxu0 %v699
        %1848 = vmatprep.subr.mxu0 %v702
        %1849 = vmatpush1.msra.mxu0 %v701
        %1850 = vmatprep.subr.mxu0 %v704
        %1851 = vmatpush1.msra.mxu0 %v703
        %1852 = vmatprep.subr.mxu0 %v706
        %1853 = vmatpush1.msra.mxu0 %v705
        %1854 = vmatprep.subr.mxu0 %v708
        %1855 = vmatpush1.msra.mxu0 %v707
        %1856 = vmatprep.subr.mxu0 %v710
        %1857 = vmatpush1.msra.mxu0 %v709
        %1858 = vmatprep.subr.mxu0 %v712
        %1859 = vmatpush1.msra.mxu0 %v711
        %1860 = vmatprep.subr.mxu0 %v714
        %1861 = vmatpush1.msra.mxu0 %v713
        %1862 = vmatprep.subr.mxu0 0.0
        %1863 = vmatpush1.msra.mxu0 0.0
        %1864 = vmatprep.subr.mxu0 0.0
        %1865 = vmatpush1.msra.mxu0 0.0
        %1866 = vmatprep.subr.mxu0 0.0
        %1867 = vmatpush1.msra.mxu0 0.0
        %1868 = vmatprep.subr.mxu0 0.0
        %1869 = vmatpush1.msra.mxu0 0.0
        %1870 = vmatprep.subr.mxu0 0.0
        %1871 = vmatpush1.msra.mxu0 0.0
        %1872 = vmatprep.subr.mxu0 0.0
        %1873 = vmatpush1.msra.mxu0 0.0
        %1874 = vmatprep.subr.mxu0 0.0
        %1875 = vmatpush1.msra.mxu0 0.0
        %1876 = vmatprep.subr.mxu0 0.0
        %1877 = vmatpush1.msra.mxu0 0.0
        %1878 = vmatprep.subr.mxu0 0.0
        %1879 = vmatpush1.msra.mxu0 0.0
        %1880 = vmatprep.subr.mxu0 0.0
        %1881 = vmatpush1.msra.mxu0 0.0
        %1882 = vmatprep.subr.mxu0 0.0
        %1883 = vmatpush1.msra.mxu0 0.0
        %1884 = vmatprep.subr.mxu0 0.0
        %1885 = vmatpush1.msra.mxu0 0.0
        %1886 = vmatprep.subr.mxu0 0.0
        %1887 = vmatpush1.msra.mxu0 0.0
        %1888 = vmatprep.subr.mxu0 0.0
        %1889 = vmatpush1.msra.mxu0 0.0
        %1890 = vmatprep.subr.mxu0 0.0
        %1891 = vmatpush1.msra.mxu0 0.0
        %1892 = vmatprep.subr.mxu0 0.0
        %1893 = vmatpush1.msra.mxu0 0.0
        %1894 = vmatprep.subr.mxu0 0.0
        %1895 = vmatpush1.msra.mxu0 0.0
        %1896 = vmatprep.subr.mxu0 0.0
        %1897 = vmatpush1.msra.mxu0 0.0
        %1898 = vmatprep.subr.mxu0 0.0
        %1899 = vmatpush1.msra.mxu0 0.0
        %1900 = vmatprep.subr.mxu0 0.0
        %1901 = vmatpush1.msra.mxu0 0.0
        %1902 = vmatprep.mubr.f32.mxu0 0.0
        %1903 = vmatmul.mubr.f32.gmra.mrb[0].mxu0 %v1548
        %v1904 = vpop.f32.mrb[0].mxu0
        %v1905 = vadd.f32 0.0, %v1904
        %v1906 = vpop.f32.mrb[0].mxu0
        %v1907 = vadd.f32 0.0, %v1906
        %1908 = vdwg.mxu0
        %v1909 = vadd.f32 %v1836, %v1905
        %v1910 = vadd.f32 %v1837, %v1907
        %v1911 = vld [vmem:[%s688 + $0x1] sm:$0x7f]
        %v1913 = vsel %vm436, %v1911, 0
        %1915 = vmatprep.subr.mxu0 %v794
        %1916 = vmatpush1.msra.mxu0 %v793
        %1917 = vmatprep.subr.mxu0 %v796
        %1918 = vmatpush1.msra.mxu0 %v795
        %1919 = vmatprep.subr.mxu0 %v798
        %1920 = vmatpush1.msra.mxu0 %v797
        %1921 = vmatprep.subr.mxu0 %v800
        %1922 = vmatpush1.msra.mxu0 %v799
        %1923 = vmatprep.subr.mxu0 %v802
        %1924 = vmatpush1.msra.mxu0 %v801
        %1925 = vmatprep.subr.mxu0 %v804
        %1926 = vmatpush1.msra.mxu0 %v803
        %1927 = vmatprep.subr.mxu0 %v806
        %1928 = vmatpush1.msra.mxu0 %v805
        %1929 = vmatprep.subr.mxu0 %v808
        %1930 = vmatpush1.msra.mxu0 %v807
        %1931 = vmatprep.subr.mxu0 %v810
        %1932 = vmatpush1.msra.mxu0 %v809
        %1933 = vmatprep.subr.mxu0 %v812
        %1934 = vmatpush1.msra.mxu0 %v811
        %1935 = vmatprep.subr.mxu0 %v814
        %1936 = vmatpush1.msra.mxu0 %v813
        %1937 = vmatprep.subr.mxu0 %v816
        %1938 = vmatpush1.msra.mxu0 %v815
        %1939 = vmatprep.subr.mxu0 0.0
        %1940 = vmatpush1.msra.mxu0 0.0
        %1941 = vmatprep.subr.mxu0 0.0
        %1942 = vmatpush1.msra.mxu0 0.0
        %1943 = vmatprep.subr.mxu0 0.0
        %1944 = vmatpush1.msra.mxu0 0.0
        %1945 = vmatprep.subr.mxu0 0.0
        %1946 = vmatpush1.msra.mxu0 0.0
        %1947 = vmatprep.subr.mxu0 0.0
        %1948 = vmatpush1.msra.mxu0 0.0
        %1949 = vmatprep.subr.mxu0 0.0
        %1950 = vmatpush1.msra.mxu0 0.0
        %1951 = vmatprep.subr.mxu0 0.0
        %1952 = vmatpush1.msra.mxu0 0.0
        %1953 = vmatprep.subr.mxu0 0.0
        %1954 = vmatpush1.msra.mxu0 0.0
        %1955 = vmatprep.subr.mxu0 0.0
        %1956 = vmatpush1.msra.mxu0 0.0
        %1957 = vmatprep.subr.mxu0 0.0
        %1958 = vmatpush1.msra.mxu0 0.0
        %1959 = vmatprep.subr.mxu0 0.0
        %1960 = vmatpush1.msra.mxu0 0.0
        %1961 = vmatprep.subr.mxu0 0.0
        %1962 = vmatpush1.msra.mxu0 0.0
        %1963 = vmatprep.subr.mxu0 0.0
        %1964 = vmatpush1.msra.mxu0 0.0
        %1965 = vmatprep.subr.mxu0 0.0
        %1966 = vmatpush1.msra.mxu0 0.0
        %1967 = vmatprep.subr.mxu0 0.0
        %1968 = vmatpush1.msra.mxu0 0.0
        %1969 = vmatprep.subr.mxu0 0.0
        %1970 = vmatpush1.msra.mxu0 0.0
        %1971 = vmatprep.subr.mxu0 0.0
        %1972 = vmatpush1.msra.mxu0 0.0
        %1973 = vmatprep.subr.mxu0 0.0
        %1974 = vmatpush1.msra.mxu0 0.0
        %1975 = vmatprep.subr.mxu0 0.0
        %1976 = vmatpush1.msra.mxu0 0.0
        %1977 = vmatprep.subr.mxu0 0.0
        %1978 = vmatpush1.msra.mxu0 0.0
        %1979 = vmatprep.mubr.f32.mxu0 0.0
        %1980 = vmatmul.mubr.f32.gmra.mrb[0].mxu0 %v1913
        %v1981 = vpop.f32.mrb[0].mxu0
        %v1982 = vadd.f32 0.0, %v1981
        %v1983 = vpop.f32.mrb[0].mxu0
        %v1984 = vadd.f32 0.0, %v1983
        %1985 = vdwg.mxu0
        %v1986 = vadd.f32 %v1909, %v1982
        %v1987 = vadd.f32 %v1910, %v1984
        %v1988 = vmax.f32 %v891, %v1256
        %v1989 = vmax.f32 %v892, %v1257
        %v1990 = vmax.f32 %v1621, %v1986
        %v1991 = vmax.f32 %v1622, %v1987
        %v1992 = vld [vmem:[%s2] sm:$0x1]
        %v1993 = vmax.f32 %v1988, %v1989
        %v1995 = vlaneseq
        %v1996 = vshrl.u32 %v1995, 7
        %v1997 = vsub.s32 0, %v1996
        %v1998 = vrot.slane %v1992, %v1997
        %v2000 = vadd.f32 %v1993, %v1998
        %v2001 = vmax.f32 %v2000, 0.0
        %v2002 = vmax.f32 %v1990, %v1991
        %v2003 = vadd.f32 %v2002, %v1998
        %v2004 = vmax.f32 %v2003, 0.0
        %v2005 = vld [vmem:[%s3] sm:$0xff]
        %v2006 = vld [vmem:[%s3 + $0x8] sm:$0xff]
        %v2007 = vld [vmem:[%s3 + $0x10] sm:$0xff]
        %v2008 = vld [vmem:[%s3 + $0x18] sm:$0xff]
        %v2009 = vld [vmem:[%s3 + $0x20] sm:$0xff]
        %v2010 = vld [vmem:[%s3 + $0x28] sm:$0xff]
        %v2011 = vld [vmem:[%s3 + $0x30] sm:$0xff]
        %v2012 = vld [vmem:[%s3 + $0x38] sm:$0xff]
        %v2013 = vld [vmem:[%s3 + $0x40] sm:$0xff]
        %v2014 = vld [vmem:[%s3 + $0x48] sm:$0xff]
        %v2015 = vld [vmem:[%s3 + $0x50] sm:$0xff]
        %v2016 = vld [vmem:[%s3 + $0x58] sm:$0xff]
        %v2017 = vld [vmem:[%s3 + $0x60] sm:$0xff]
        %v2018 = vld [vmem:[%s3 + $0x68] sm:$0xff]
        %v2019 = vld [vmem:[%s3 + $0x70] sm:$0xff]
        %v2020 = vld [vmem:[%s3 + $0x78] sm:$0xff]
        %v2021 = vld [vmem:[%s3 + $0x80] sm:$0xff]
        %v2022 = vld [vmem:[%s3 + $0x88] sm:$0xff]
        %v2023 = vld [vmem:[%s3 + $0x90] sm:$0xff]
        %v2024 = vld [vmem:[%s3 + $0x98] sm:$0xff]
        %v2025 = vld [vmem:[%s3 + $0xa0] sm:$0xff]
        %v2026 = vld [vmem:[%s3 + $0xa8] sm:$0xff]
        %v2027 = vld [vmem:[%s3 + $0xb0] sm:$0xff]
        %v2028 = vld [vmem:[%s3 + $0xb8] sm:$0xff]
        %v2029 = vld [vmem:[%s3 + $0xc0] sm:$0xff]
        %v2030 = vld [vmem:[%s3 + $0xc8] sm:$0xff]
        %v2031 = vld [vmem:[%s3 + $0xd0] sm:$0xff]
        %v2032 = vld [vmem:[%s3 + $0xd8] sm:$0xff]
        %v2033 = vld [vmem:[%s3 + $0xe0] sm:$0xff]
        %v2034 = vld [vmem:[%s3 + $0xe8] sm:$0xff]
        %v2035 = vld [vmem:[%s3 + $0xf0] sm:$0xff]
        %v2036 = vld [vmem:[%s3 + $0xf8] sm:$0xff]
        %s2037 = scalar_lea.vmem %s3, 256
        %v2038 = vld [vmem:[%s2037] sm:$0xff]
        %v2039 = vld [vmem:[%s2037 + $0x8] sm:$0xff]
        %v2040 = vld [vmem:[%s2037 + $0x10] sm:$0xff]
        %v2041 = vld [vmem:[%s2037 + $0x18] sm:$0xff]
        %v2042 = vld [vmem:[%s2037 + $0x20] sm:$0xff]
        %v2043 = vld [vmem:[%s2037 + $0x28] sm:$0xff]
        %v2044 = vld [vmem:[%s2037 + $0x30] sm:$0xff]
        %v2045 = vld [vmem:[%s2037 + $0x38] sm:$0xff]
        %v2046 = vld [vmem:[%s2037 + $0x40] sm:$0xff]
        %v2047 = vld [vmem:[%s2037 + $0x48] sm:$0xff]
        %v2048 = vld [vmem:[%s2037 + $0x50] sm:$0xff]
        %v2049 = vld [vmem:[%s2037 + $0x58] sm:$0xff]
        %v2050 = vld [vmem:[%s2037 + $0x60] sm:$0xff]
        %v2051 = vld [vmem:[%s2037 + $0x68] sm:$0xff]
        %v2052 = vld [vmem:[%s2037 + $0x70] sm:$0xff]
        %v2053 = vld [vmem:[%s2037 + $0x78] sm:$0xff]
        %v2054 = vld [vmem:[%s2037 + $0x80] sm:$0xff]
        %v2055 = vld [vmem:[%s2037 + $0x88] sm:$0xff]
        %v2056 = vld [vmem:[%s2037 + $0x90] sm:$0xff]
        %v2057 = vld [vmem:[%s2037 + $0x98] sm:$0xff]
        %v2058 = vld [vmem:[%s2037 + $0xa0] sm:$0xff]
        %v2059 = vld [vmem:[%s2037 + $0xa8] sm:$0xff]
        %v2060 = vld [vmem:[%s2037 + $0xb0] sm:$0xff]
        %v2061 = vld [vmem:[%s2037 + $0xb8] sm:$0xff]
        %v2062 = vld [vmem:[%s2037 + $0xc0] sm:$0xff]
        %v2063 = vld [vmem:[%s2037 + $0xc8] sm:$0xff]
        %v2064 = vld [vmem:[%s2037 + $0xd0] sm:$0xff]
        %v2065 = vld [vmem:[%s2037 + $0xd8] sm:$0xff]
        %v2066 = vld [vmem:[%s2037 + $0xe0] sm:$0xff]
        %v2067 = vld [vmem:[%s2037 + $0xe8] sm:$0xff]
        %v2068 = vld [vmem:[%s2037 + $0xf0] sm:$0xff]
        %v2069 = vld [vmem:[%s2037 + $0xf8] sm:$0xff]
        %2070 = vmatprep.subr.mxu0 %v2039
        %2071 = vmatpush1.msra.mxu0 %v2038
        %2072 = vmatprep.subr.mxu0 %v2041
        %2073 = vmatpush1.msra.mxu0 %v2040
        %2074 = vmatprep.subr.mxu0 %v2043
        %2075 = vmatpush1.msra.mxu0 %v2042
        %2076 = vmatprep.subr.mxu0 %v2045
        %2077 = vmatpush1.msra.mxu0 %v2044
        %2078 = vmatprep.subr.mxu0 %v2047
        %2079 = vmatpush1.msra.mxu0 %v2046
        %2080 = vmatprep.subr.mxu0 %v2049
        %2081 = vmatpush1.msra.mxu0 %v2048
        %2082 = vmatprep.subr.mxu0 %v2051
        %2083 = vmatpush1.msra.mxu0 %v2050
        %2084 = vmatprep.subr.mxu0 %v2053
        %2085 = vmatpush1.msra.mxu0 %v2052
        %2086 = vmatprep.subr.mxu0 %v2055
        %2087 = vmatpush1.msra.mxu0 %v2054
        %2088 = vmatprep.subr.mxu0 %v2057
        %2089 = vmatpush1.msra.mxu0 %v2056
        %2090 = vmatprep.subr.mxu0 %v2059
        %2091 = vmatpush1.msra.mxu0 %v2058
        %2092 = vmatprep.subr.mxu0 %v2061
        %2093 = vmatpush1.msra.mxu0 %v2060
        %2094 = vmatprep.subr.mxu0 %v2063
        %2095 = vmatpush1.msra.mxu0 %v2062
        %2096 = vmatprep.subr.mxu0 %v2065
        %2097 = vmatpush1.msra.mxu0 %v2064
        %2098 = vmatprep.subr.mxu0 %v2067
        %2099 = vmatpush1.msra.mxu0 %v2066
        %2100 = vmatprep.subr.mxu0 %v2069
        %2101 = vmatpush1.msra.mxu0 %v2068
        %2102 = vmatprep.subr.mxu0 0.0
        %2103 = vmatpush1.msra.mxu0 0.0
        %2104 = vmatprep.subr.mxu0 0.0
        %2105 = vmatpush1.msra.mxu0 0.0
        %2106 = vmatprep.subr.mxu0 0.0
        %2107 = vmatpush1.msra.mxu0 0.0
        %2108 = vmatprep.subr.mxu0 0.0
        %2109 = vmatpush1.msra.mxu0 0.0
        %2110 = vmatprep.subr.mxu0 0.0
        %2111 = vmatpush1.msra.mxu0 0.0
        %2112 = vmatprep.subr.mxu0 0.0
        %2113 = vmatpush1.msra.mxu0 0.0
        %2114 = vmatprep.subr.mxu0 0.0
        %2115 = vmatpush1.msra.mxu0 0.0
        %2116 = vmatprep.subr.mxu0 0.0
        %2117 = vmatpush1.msra.mxu0 0.0
        %2118 = vmatprep.subr.mxu0 0.0
        %2119 = vmatpush1.msra.mxu0 0.0
        %2120 = vmatprep.subr.mxu0 0.0
        %2121 = vmatpush1.msra.mxu0 0.0
        %2122 = vmatprep.subr.mxu0 0.0
        %2123 = vmatpush1.msra.mxu0 0.0
        %2124 = vmatprep.subr.mxu0 0.0
        %2125 = vmatpush1.msra.mxu0 0.0
        %2126 = vmatprep.subr.mxu0 0.0
        %2127 = vmatpush1.msra.mxu0 0.0
        %2128 = vmatprep.subr.mxu0 0.0
        %2129 = vmatpush1.msra.mxu0 0.0
        %2130 = vmatprep.subr.mxu0 0.0
        %2131 = vmatpush1.msra.mxu0 0.0
        %2132 = vmatprep.subr.mxu0 0.0
        %2133 = vmatpush1.msra.mxu0 0.0
        %2134 = vmatprep.mubr.f32.mxu0 0.0
        %2135 = vmatmul.mubr.f32.gmra.mrb[0].mxu0 %v2004
        %v2136 = vpop.f32.mrb[0].mxu0
        %v2137 = vadd.f32 0.0, %v2136
        %v2138 = vpop.f32.mrb[0].mxu0
        %v2139 = vadd.f32 0.0, %v2138
        %2140 = vdwg.mxu0
        %2141 = vmatprep.subr.mxu0 %v2006
        %2142 = vmatpush1.msra.mxu0 %v2005
        %2143 = vmatprep.subr.mxu0 %v2008
        %2144 = vmatpush1.msra.mxu0 %v2007
        %2145 = vmatprep.subr.mxu0 %v2010
        %2146 = vmatpush1.msra.mxu0 %v2009
        %2147 = vmatprep.subr.mxu0 %v2012
        %2148 = vmatpush1.msra.mxu0 %v2011
        %2149 = vmatprep.subr.mxu0 %v2014
        %2150 = vmatpush1.msra.mxu0 %v2013
        %2151 = vmatprep.subr.mxu0 %v2016
        %2152 = vmatpush1.msra.mxu0 %v2015
        %2153 = vmatprep.subr.mxu0 %v2018
        %2154 = vmatpush1.msra.mxu0 %v2017
        %2155 = vmatprep.subr.mxu0 %v2020
        %2156 = vmatpush1.msra.mxu0 %v2019
        %2157 = vmatprep.subr.mxu0 %v2022
        %2158 = vmatpush1.msra.mxu0 %v2021
        %2159 = vmatprep.subr.mxu0 %v2024
        %2160 = vmatpush1.msra.mxu0 %v2023
        %2161 = vmatprep.subr.mxu0 %v2026
        %2162 = vmatpush1.msra.mxu0 %v2025
        %2163 = vmatprep.subr.mxu0 %v2028
        %2164 = vmatpush1.msra.mxu0 %v2027
        %2165 = vmatprep.subr.mxu0 %v2030
        %2166 = vmatpush1.msra.mxu0 %v2029
        %2167 = vmatprep.subr.mxu0 %v2032
        %2168 = vmatpush1.msra.mxu0 %v2031
        %2169 = vmatprep.subr.mxu0 %v2034
        %2170 = vmatpush1.msra.mxu0 %v2033
        %2171 = vmatprep.subr.mxu0 %v2036
        %2172 = vmatpush1.msra.mxu0 %v2035
        %2173 = vmatprep.subr.mxu0 0.0
        %2174 = vmatpush1.msra.mxu0 0.0
        %2175 = vmatprep.subr.mxu0 0.0
        %2176 = vmatpush1.msra.mxu0 0.0
        %2177 = vmatprep.subr.mxu0 0.0
        %2178 = vmatpush1.msra.mxu0 0.0
        %2179 = vmatprep.subr.mxu0 0.0
        %2180 = vmatpush1.msra.mxu0 0.0
        %2181 = vmatprep.subr.mxu0 0.0
        %2182 = vmatpush1.msra.mxu0 0.0
        %2183 = vmatprep.subr.mxu0 0.0
        %2184 = vmatpush1.msra.mxu0 0.0
        %2185 = vmatprep.subr.mxu0 0.0
        %2186 = vmatpush1.msra.mxu0 0.0
        %2187 = vmatprep.subr.mxu0 0.0
        %2188 = vmatpush1.msra.mxu0 0.0
        %2189 = vmatprep.subr.mxu0 0.0
        %2190 = vmatpush1.msra.mxu0 0.0
        %2191 = vmatprep.subr.mxu0 0.0
        %2192 = vmatpush1.msra.mxu0 0.0
        %2193 = vmatprep.subr.mxu0 0.0
        %2194 = vmatpush1.msra.mxu0 0.0
        %2195 = vmatprep.subr.mxu0 0.0
        %2196 = vmatpush1.msra.mxu0 0.0
        %2197 = vmatprep.subr.mxu0 0.0
        %2198 = vmatpush1.msra.mxu0 0.0
        %2199 = vmatprep.subr.mxu0 0.0
        %2200 = vmatpush1.msra.mxu0 0.0
        %2201 = vmatprep.subr.mxu0 0.0
        %2202 = vmatpush1.msra.mxu0 0.0
        %2203 = vmatprep.subr.mxu0 0.0
        %2204 = vmatpush1.msra.mxu0 0.0
        %2205 = vmatprep.mubr.f32.mxu0 0.0
        %2206 = vmatmul.mubr.f32.gmra.mrb[0].mxu0 %v2001
        %v2207 = vpop.f32.mrb[0].mxu0
        %v2208 = vadd.f32 %v2137, %v2207
        %v2209 = vpop.f32.mrb[0].mxu0
        %v2210 = vadd.f32 %v2139, %v2209
        %2211 = vdwg.mxu0
        %s2212 = scalar_lea.vmem %s3, 512
        %v2213 = vld [vmem:[%s2212] sm:$0xff]
        %v2214 = vld [vmem:[%s2212 + $0x8] sm:$0xff]
        %v2215 = vld [vmem:[%s2212 + $0x10] sm:$0xff]
        %v2216 = vld [vmem:[%s2212 + $0x18] sm:$0xff]
        %v2217 = vld [vmem:[%s2212 + $0x20] sm:$0xff]
        %v2218 = vld [vmem:[%s2212 + $0x28] sm:$0xff]
        %v2219 = vld [vmem:[%s2212 + $0x30] sm:$0xff]
        %v2220 = vld [vmem:[%s2212 + $0x38] sm:$0xff]
        %v2221 = vld [vmem:[%s2212 + $0x40] sm:$0xff]
        %v2222 = vld [vmem:[%s2212 + $0x48] sm:$0xff]
        %v2223 = vld [vmem:[%s2212 + $0x50] sm:$0xff]
        %v2224 = vld [vmem:[%s2212 + $0x58] sm:$0xff]
        %v2225 = vld [vmem:[%s2212 + $0x60] sm:$0xff]
        %v2226 = vld [vmem:[%s2212 + $0x68] sm:$0xff]
        %v2227 = vld [vmem:[%s2212 + $0x70] sm:$0xff]
        %v2228 = vld [vmem:[%s2212 + $0x78] sm:$0xff]
        %v2229 = vld [vmem:[%s2212 + $0x80] sm:$0xff]
        %v2230 = vld [vmem:[%s2212 + $0x88] sm:$0xff]
        %v2231 = vld [vmem:[%s2212 + $0x90] sm:$0xff]
        %v2232 = vld [vmem:[%s2212 + $0x98] sm:$0xff]
        %v2233 = vld [vmem:[%s2212 + $0xa0] sm:$0xff]
        %v2234 = vld [vmem:[%s2212 + $0xa8] sm:$0xff]
        %v2235 = vld [vmem:[%s2212 + $0xb0] sm:$0xff]
        %v2236 = vld [vmem:[%s2212 + $0xb8] sm:$0xff]
        %v2237 = vld [vmem:[%s2212 + $0xc0] sm:$0xff]
        %v2238 = vld [vmem:[%s2212 + $0xc8] sm:$0xff]
        %v2239 = vld [vmem:[%s2212 + $0xd0] sm:$0xff]
        %v2240 = vld [vmem:[%s2212 + $0xd8] sm:$0xff]
        %v2241 = vld [vmem:[%s2212 + $0xe0] sm:$0xff]
        %v2242 = vld [vmem:[%s2212 + $0xe8] sm:$0xff]
        %v2243 = vld [vmem:[%s2212 + $0xf0] sm:$0xff]
        %v2244 = vld [vmem:[%s2212 + $0xf8] sm:$0xff]
        %v2246 = vrot.slane %v2001, 1
        %2248 = vmatprep.subr.mxu0 %v2214
        %2249 = vmatpush1.msra.mxu0 %v2213
        %2250 = vmatprep.subr.mxu0 %v2216
        %2251 = vmatpush1.msra.mxu0 %v2215
        %2252 = vmatprep.subr.mxu0 %v2218
        %2253 = vmatpush1.msra.mxu0 %v2217
        %2254 = vmatprep.subr.mxu0 %v2220
        %2255 = vmatpush1.msra.mxu0 %v2219
        %2256 = vmatprep.subr.mxu0 %v2222
        %2257 = vmatpush1.msra.mxu0 %v2221
        %2258 = vmatprep.subr.mxu0 %v2224
        %2259 = vmatpush1.msra.mxu0 %v2223
        %2260 = vmatprep.subr.mxu0 %v2226
        %2261 = vmatpush1.msra.mxu0 %v2225
        %2262 = vmatprep.subr.mxu0 %v2228
        %2263 = vmatpush1.msra.mxu0 %v2227
        %2264 = vmatprep.subr.mxu0 %v2230
        %2265 = vmatpush1.msra.mxu0 %v2229
        %2266 = vmatprep.subr.mxu0 %v2232
        %2267 = vmatpush1.msra.mxu0 %v2231
        %2268 = vmatprep.subr.mxu0 %v2234
        %2269 = vmatpush1.msra.mxu0 %v2233
        %2270 = vmatprep.subr.mxu0 %v2236
        %2271 = vmatpush1.msra.mxu0 %v2235
        %2272 = vmatprep.subr.mxu0 %v2238
        %2273 = vmatpush1.msra.mxu0 %v2237
        %2274 = vmatprep.subr.mxu0 %v2240
        %2275 = vmatpush1.msra.mxu0 %v2239
        %2276 = vmatprep.subr.mxu0 %v2242
        %2277 = vmatpush1.msra.mxu0 %v2241
        %2278 = vmatprep.subr.mxu0 %v2244
        %2279 = vmatpush1.msra.mxu0 %v2243
        %2280 = vmatprep.subr.mxu0 0.0
        %2281 = vmatpush1.msra.mxu0 0.0
        %2282 = vmatprep.subr.mxu0 0.0
        %2283 = vmatpush1.msra.mxu0 0.0
        %2284 = vmatprep.subr.mxu0 0.0
        %2285 = vmatpush1.msra.mxu0 0.0
        %2286 = vmatprep.subr.mxu0 0.0
        %2287 = vmatpush1.msra.mxu0 0.0
        %2288 = vmatprep.subr.mxu0 0.0
        %2289 = vmatpush1.msra.mxu0 0.0
        %2290 = vmatprep.subr.mxu0 0.0
        %2291 = vmatpush1.msra.mxu0 0.0
        %2292 = vmatprep.subr.mxu0 0.0
        %2293 = vmatpush1.msra.mxu0 0.0
        %2294 = vmatprep.subr.mxu0 0.0
        %2295 = vmatpush1.msra.mxu0 0.0
        %2296 = vmatprep.subr.mxu0 0.0
        %2297 = vmatpush1.msra.mxu0 0.0
        %2298 = vmatprep.subr.mxu0 0.0
        %2299 = vmatpush1.msra.mxu0 0.0
        %2300 = vmatprep.subr.mxu0 0.0
        %2301 = vmatpush1.msra.mxu0 0.0
        %2302 = vmatprep.subr.mxu0 0.0
        %2303 = vmatpush1.msra.mxu0 0.0
        %2304 = vmatprep.subr.mxu0 0.0
        %2305 = vmatpush1.msra.mxu0 0.0
        %2306 = vmatprep.subr.mxu0 0.0
        %2307 = vmatpush1.msra.mxu0 0.0
        %2308 = vmatprep.subr.mxu0 0.0
        %2309 = vmatpush1.msra.mxu0 0.0
        %2310 = vmatprep.subr.mxu0 0.0
        %2311 = vmatpush1.msra.mxu0 0.0
        %2312 = vmatprep.mubr.f32.mxu0 0.0
        %2313 = vmatmul.mubr.f32.gmra.mrb[0].mxu0 %v2246
        %v2314 = vpop.f32.mrb[0].mxu0
        %v2315 = vadd.f32 0.0, %v2314
        %v2316 = vpop.f32.mrb[0].mxu0
        %v2317 = vadd.f32 0.0, %v2316
        %2318 = vdwg.mxu0
        %v2319 = vadd.f32 %v2208, %v2315
        %v2320 = vadd.f32 %v2210, %v2317
        %s2321 = scalar_lea.vmem %s3, 768
        %v2322 = vld [vmem:[%s2321] sm:$0xff]
        %v2323 = vld [vmem:[%s2321 + $0x8] sm:$0xff]
        %v2324 = vld [vmem:[%s2321 + $0x10] sm:$0xff]
        %v2325 = vld [vmem:[%s2321 + $0x18] sm:$0xff]
        %v2326 = vld [vmem:[%s2321 + $0x20] sm:$0xff]
        %v2327 = vld [vmem:[%s2321 + $0x28] sm:$0xff]
        %v2328 = vld [vmem:[%s2321 + $0x30] sm:$0xff]
        %v2329 = vld [vmem:[%s2321 + $0x38] sm:$0xff]
        %v2330 = vld [vmem:[%s2321 + $0x40] sm:$0xff]
        %v2331 = vld [vmem:[%s2321 + $0x48] sm:$0xff]
        %v2332 = vld [vmem:[%s2321 + $0x50] sm:$0xff]
        %v2333 = vld [vmem:[%s2321 + $0x58] sm:$0xff]
        %v2334 = vld [vmem:[%s2321 + $0x60] sm:$0xff]
        %v2335 = vld [vmem:[%s2321 + $0x68] sm:$0xff]
        %v2336 = vld [vmem:[%s2321 + $0x70] sm:$0xff]
        %v2337 = vld [vmem:[%s2321 + $0x78] sm:$0xff]
        %v2338 = vld [vmem:[%s2321 + $0x80] sm:$0xff]
        %v2339 = vld [vmem:[%s2321 + $0x88] sm:$0xff]
        %v2340 = vld [vmem:[%s2321 + $0x90] sm:$0xff]
        %v2341 = vld [vmem:[%s2321 + $0x98] sm:$0xff]
        %v2342 = vld [vmem:[%s2321 + $0xa0] sm:$0xff]
        %v2343 = vld [vmem:[%s2321 + $0xa8] sm:$0xff]
        %v2344 = vld [vmem:[%s2321 + $0xb0] sm:$0xff]
        %v2345 = vld [vmem:[%s2321 + $0xb8] sm:$0xff]
        %v2346 = vld [vmem:[%s2321 + $0xc0] sm:$0xff]
        %v2347 = vld [vmem:[%s2321 + $0xc8] sm:$0xff]
        %v2348 = vld [vmem:[%s2321 + $0xd0] sm:$0xff]
        %v2349 = vld [vmem:[%s2321 + $0xd8] sm:$0xff]
        %v2350 = vld [vmem:[%s2321 + $0xe0] sm:$0xff]
        %v2351 = vld [vmem:[%s2321 + $0xe8] sm:$0xff]
        %v2352 = vld [vmem:[%s2321 + $0xf0] sm:$0xff]
        %v2353 = vld [vmem:[%s2321 + $0xf8] sm:$0xff]
        %v2355 = vrot.slane %v2004, 1
        %2357 = vmatprep.subr.mxu0 %v2323
        %2358 = vmatpush1.msra.mxu0 %v2322
        %2359 = vmatprep.subr.mxu0 %v2325
        %2360 = vmatpush1.msra.mxu0 %v2324
        %2361 = vmatprep.subr.mxu0 %v2327
        %2362 = vmatpush1.msra.mxu0 %v2326
        %2363 = vmatprep.subr.mxu0 %v2329
        %2364 = vmatpush1.msra.mxu0 %v2328
        %2365 = vmatprep.subr.mxu0 %v2331
        %2366 = vmatpush1.msra.mxu0 %v2330
        %2367 = vmatprep.subr.mxu0 %v2333
        %2368 = vmatpush1.msra.mxu0 %v2332
        %2369 = vmatprep.subr.mxu0 %v2335
        %2370 = vmatpush1.msra.mxu0 %v2334
        %2371 = vmatprep.subr.mxu0 %v2337
        %2372 = vmatpush1.msra.mxu0 %v2336
        %2373 = vmatprep.subr.mxu0 %v2339
        %2374 = vmatpush1.msra.mxu0 %v2338
        %2375 = vmatprep.subr.mxu0 %v2341
        %2376 = vmatpush1.msra.mxu0 %v2340
        %2377 = vmatprep.subr.mxu0 %v2343
        %2378 = vmatpush1.msra.mxu0 %v2342
        %2379 = vmatprep.subr.mxu0 %v2345
        %2380 = vmatpush1.msra.mxu0 %v2344
        %2381 = vmatprep.subr.mxu0 %v2347
        %2382 = vmatpush1.msra.mxu0 %v2346
        %2383 = vmatprep.subr.mxu0 %v2349
        %2384 = vmatpush1.msra.mxu0 %v2348
        %2385 = vmatprep.subr.mxu0 %v2351
        %2386 = vmatpush1.msra.mxu0 %v2350
        %2387 = vmatprep.subr.mxu0 %v2353
        %2388 = vmatpush1.msra.mxu0 %v2352
        %2389 = vmatprep.subr.mxu0 0.0
        %2390 = vmatpush1.msra.mxu0 0.0
        %2391 = vmatprep.subr.mxu0 0.0
        %2392 = vmatpush1.msra.mxu0 0.0
        %2393 = vmatprep.subr.mxu0 0.0
        %2394 = vmatpush1.msra.mxu0 0.0
        %2395 = vmatprep.subr.mxu0 0.0
        %2396 = vmatpush1.msra.mxu0 0.0
        %2397 = vmatprep.subr.mxu0 0.0
        %2398 = vmatpush1.msra.mxu0 0.0
        %2399 = vmatprep.subr.mxu0 0.0
        %2400 = vmatpush1.msra.mxu0 0.0
        %2401 = vmatprep.subr.mxu0 0.0
        %2402 = vmatpush1.msra.mxu0 0.0
        %2403 = vmatprep.subr.mxu0 0.0
        %2404 = vmatpush1.msra.mxu0 0.0
        %2405 = vmatprep.subr.mxu0 0.0
        %2406 = vmatpush1.msra.mxu0 0.0
        %2407 = vmatprep.subr.mxu0 0.0
        %2408 = vmatpush1.msra.mxu0 0.0
        %2409 = vmatprep.subr.mxu0 0.0
        %2410 = vmatpush1.msra.mxu0 0.0
        %2411 = vmatprep.subr.mxu0 0.0
        %2412 = vmatpush1.msra.mxu0 0.0
        %2413 = vmatprep.subr.mxu0 0.0
        %2414 = vmatpush1.msra.mxu0 0.0
        %2415 = vmatprep.subr.mxu0 0.0
        %2416 = vmatpush1.msra.mxu0 0.0
        %2417 = vmatprep.subr.mxu0 0.0
        %2418 = vmatpush1.msra.mxu0 0.0
        %2419 = vmatprep.subr.mxu0 0.0
        %2420 = vmatpush1.msra.mxu0 0.0
        %2421 = vmatprep.mubr.f32.mxu0 0.0
        %2422 = vmatmul.mubr.f32.gmra.mrb[0].mxu0 %v2355
        %v2423 = vpop.f32.mrb[0].mxu0
        %v2424 = vadd.f32 0.0, %v2423
        %v2425 = vpop.f32.mrb[0].mxu0
        %v2426 = vadd.f32 0.0, %v2425
        %2427 = vdwg.mxu0
        %v2428 = vadd.f32 %v2319, %v2424
        %v2429 = vadd.f32 %v2320, %v2426
        %s2430 = scalar_lea.vmem %s3, 1024
        %v2431 = vld [vmem:[%s2430] sm:$0xff]
        %v2432 = vld [vmem:[%s2430 + $0x8] sm:$0xff]
        %v2433 = vld [vmem:[%s2430 + $0x10] sm:$0xff]
        %v2434 = vld [vmem:[%s2430 + $0x18] sm:$0xff]
        %v2435 = vld [vmem:[%s2430 + $0x20] sm:$0xff]
        %v2436 = vld [vmem:[%s2430 + $0x28] sm:$0xff]
        %v2437 = vld [vmem:[%s2430 + $0x30] sm:$0xff]
        %v2438 = vld [vmem:[%s2430 + $0x38] sm:$0xff]
        %v2439 = vld [vmem:[%s2430 + $0x40] sm:$0xff]
        %v2440 = vld [vmem:[%s2430 + $0x48] sm:$0xff]
        %v2441 = vld [vmem:[%s2430 + $0x50] sm:$0xff]
        %v2442 = vld [vmem:[%s2430 + $0x58] sm:$0xff]
        %v2443 = vld [vmem:[%s2430 + $0x60] sm:$0xff]
        %v2444 = vld [vmem:[%s2430 + $0x68] sm:$0xff]
        %v2445 = vld [vmem:[%s2430 + $0x70] sm:$0xff]
        %v2446 = vld [vmem:[%s2430 + $0x78] sm:$0xff]
        %v2447 = vld [vmem:[%s2430 + $0x80] sm:$0xff]
        %v2448 = vld [vmem:[%s2430 + $0x88] sm:$0xff]
        %v2449 = vld [vmem:[%s2430 + $0x90] sm:$0xff]
        %v2450 = vld [vmem:[%s2430 + $0x98] sm:$0xff]
        %v2451 = vld [vmem:[%s2430 + $0xa0] sm:$0xff]
        %v2452 = vld [vmem:[%s2430 + $0xa8] sm:$0xff]
        %v2453 = vld [vmem:[%s2430 + $0xb0] sm:$0xff]
        %v2454 = vld [vmem:[%s2430 + $0xb8] sm:$0xff]
        %v2455 = vld [vmem:[%s2430 + $0xc0] sm:$0xff]
        %v2456 = vld [vmem:[%s2430 + $0xc8] sm:$0xff]
        %v2457 = vld [vmem:[%s2430 + $0xd0] sm:$0xff]
        %v2458 = vld [vmem:[%s2430 + $0xd8] sm:$0xff]
        %v2459 = vld [vmem:[%s2430 + $0xe0] sm:$0xff]
        %v2460 = vld [vmem:[%s2430 + $0xe8] sm:$0xff]
        %v2461 = vld [vmem:[%s2430 + $0xf0] sm:$0xff]
        %v2462 = vld [vmem:[%s2430 + $0xf8] sm:$0xff]
        %v2463 = vrot.slane %v2001, 2
        %2465 = vmatprep.subr.mxu0 %v2432
        %2466 = vmatpush1.msra.mxu0 %v2431
        %2467 = vmatprep.subr.mxu0 %v2434
        %2468 = vmatpush1.msra.mxu0 %v2433
        %2469 = vmatprep.subr.mxu0 %v2436
        %2470 = vmatpush1.msra.mxu0 %v2435
        %2471 = vmatprep.subr.mxu0 %v2438
        %2472 = vmatpush1.msra.mxu0 %v2437
        %2473 = vmatprep.subr.mxu0 %v2440
        %2474 = vmatpush1.msra.mxu0 %v2439
        %2475 = vmatprep.subr.mxu0 %v2442
        %2476 = vmatpush1.msra.mxu0 %v2441
        %2477 = vmatprep.subr.mxu0 %v2444
        %2478 = vmatpush1.msra.mxu0 %v2443
        %2479 = vmatprep.subr.mxu0 %v2446
        %2480 = vmatpush1.msra.mxu0 %v2445
        %2481 = vmatprep.subr.mxu0 %v2448
        %2482 = vmatpush1.msra.mxu0 %v2447
        %2483 = vmatprep.subr.mxu0 %v2450
        %2484 = vmatpush1.msra.mxu0 %v2449
        %2485 = vmatprep.subr.mxu0 %v2452
        %2486 = vmatpush1.msra.mxu0 %v2451
        %2487 = vmatprep.subr.mxu0 %v2454
        %2488 = vmatpush1.msra.mxu0 %v2453
        %2489 = vmatprep.subr.mxu0 %v2456
        %2490 = vmatpush1.msra.mxu0 %v2455
        %2491 = vmatprep.subr.mxu0 %v2458
        %2492 = vmatpush1.msra.mxu0 %v2457
        %2493 = vmatprep.subr.mxu0 %v2460
        %2494 = vmatpush1.msra.mxu0 %v2459
        %2495 = vmatprep.subr.mxu0 %v2462
        %2496 = vmatpush1.msra.mxu0 %v2461
        %2497 = vmatprep.subr.mxu0 0.0
        %2498 = vmatpush1.msra.mxu0 0.0
        %2499 = vmatprep.subr.mxu0 0.0
        %2500 = vmatpush1.msra.mxu0 0.0
        %2501 = vmatprep.subr.mxu0 0.0
        %2502 = vmatpush1.msra.mxu0 0.0
        %2503 = vmatprep.subr.mxu0 0.0
        %2504 = vmatpush1.msra.mxu0 0.0
        %2505 = vmatprep.subr.mxu0 0.0
        %2506 = vmatpush1.msra.mxu0 0.0
        %2507 = vmatprep.subr.mxu0 0.0
        %2508 = vmatpush1.msra.mxu0 0.0
        %2509 = vmatprep.subr.mxu0 0.0
        %2510 = vmatpush1.msra.mxu0 0.0
        %2511 = vmatprep.subr.mxu0 0.0
        %2512 = vmatpush1.msra.mxu0 0.0
        %2513 = vmatprep.subr.mxu0 0.0
        %2514 = vmatpush1.msra.mxu0 0.0
        %2515 = vmatprep.subr.mxu0 0.0
        %2516 = vmatpush1.msra.mxu0 0.0
        %2517 = vmatprep.subr.mxu0 0.0
        %2518 = vmatpush1.msra.mxu0 0.0
        %2519 = vmatprep.subr.mxu0 0.0
        %2520 = vmatpush1.msra.mxu0 0.0
        %2521 = vmatprep.subr.mxu0 0.0
        %2522 = vmatpush1.msra.mxu0 0.0
        %2523 = vmatprep.subr.mxu0 0.0
        %2524 = vmatpush1.msra.mxu0 0.0
        %2525 = vmatprep.subr.mxu0 0.0
        %2526 = vmatpush1.msra.mxu0 0.0
        %2527 = vmatprep.subr.mxu0 0.0
        %2528 = vmatpush1.msra.mxu0 0.0
        %2529 = vmatprep.mubr.f32.mxu0 0.0
        %2530 = vmatmul.mubr.f32.gmra.mrb[0].mxu0 %v2463
        %v2531 = vpop.f32.mrb[0].mxu0
        %v2532 = vadd.f32 0.0, %v2531
        %v2533 = vpop.f32.mrb[0].mxu0
        %v2534 = vadd.f32 0.0, %v2533
        %2535 = vdwg.mxu0
        %v2536 = vadd.f32 %v2428, %v2532
        %v2537 = vadd.f32 %v2429, %v2534
        %2538 = vmatprep.subr.mxu0 %v2039
        %2539 = vmatpush1.msra.mxu0 %v2038
        %2540 = vmatprep.subr.mxu0 %v2041
        %2541 = vmatpush1.msra.mxu0 %v2040
        %2542 = vmatprep.subr.mxu0 %v2043
        %2543 = vmatpush1.msra.mxu0 %v2042
        %2544 = vmatprep.subr.mxu0 %v2045
        %2545 = vmatpush1.msra.mxu0 %v2044
        %2546 = vmatprep.subr.mxu0 %v2047
        %2547 = vmatpush1.msra.mxu0 %v2046
        %2548 = vmatprep.subr.mxu0 %v2049
        %2549 = vmatpush1.msra.mxu0 %v2048
        %2550 = vmatprep.subr.mxu0 %v2051
        %2551 = vmatpush1.msra.mxu0 %v2050
        %2552 = vmatprep.subr.mxu0 %v2053
        %2553 = vmatpush1.msra.mxu0 %v2052
        %2554 = vmatprep.subr.mxu0 %v2055
        %2555 = vmatpush1.msra.mxu0 %v2054
        %2556 = vmatprep.subr.mxu0 %v2057
        %2557 = vmatpush1.msra.mxu0 %v2056
        %2558 = vmatprep.subr.mxu0 %v2059
        %2559 = vmatpush1.msra.mxu0 %v2058
        %2560 = vmatprep.subr.mxu0 %v2061
        %2561 = vmatpush1.msra.mxu0 %v2060
        %2562 = vmatprep.subr.mxu0 %v2063
        %2563 = vmatpush1.msra.mxu0 %v2062
        %2564 = vmatprep.subr.mxu0 %v2065
        %2565 = vmatpush1.msra.mxu0 %v2064
        %2566 = vmatprep.subr.mxu0 %v2067
        %2567 = vmatpush1.msra.mxu0 %v2066
        %2568 = vmatprep.subr.mxu0 %v2069
        %2569 = vmatpush1.msra.mxu0 %v2068
        %2570 = vmatprep.subr.mxu0 0.0
        %2571 = vmatpush1.msra.mxu0 0.0
        %2572 = vmatprep.subr.mxu0 0.0
        %2573 = vmatpush1.msra.mxu0 0.0
        %2574 = vmatprep.subr.mxu0 0.0
        %2575 = vmatpush1.msra.mxu0 0.0
        %2576 = vmatprep.subr.mxu0 0.0
        %2577 = vmatpush1.msra.mxu0 0.0
        %2578 = vmatprep.subr.mxu0 0.0
        %2579 = vmatpush1.msra.mxu0 0.0
        %2580 = vmatprep.subr.mxu0 0.0
        %2581 = vmatpush1.msra.mxu0 0.0
        %2582 = vmatprep.subr.mxu0 0.0
        %2583 = vmatpush1.msra.mxu0 0.0
        %2584 = vmatprep.subr.mxu0 0.0
        %2585 = vmatpush1.msra.mxu0 0.0
        %2586 = vmatprep.subr.mxu0 0.0
        %2587 = vmatpush1.msra.mxu0 0.0
        %2588 = vmatprep.subr.mxu0 0.0
        %2589 = vmatpush1.msra.mxu0 0.0
        %2590 = vmatprep.subr.mxu0 0.0
        %2591 = vmatpush1.msra.mxu0 0.0
        %2592 = vmatprep.subr.mxu0 0.0
        %2593 = vmatpush1.msra.mxu0 0.0
        %2594 = vmatprep.subr.mxu0 0.0
        %2595 = vmatpush1.msra.mxu0 0.0
        %2596 = vmatprep.subr.mxu0 0.0
        %2597 = vmatpush1.msra.mxu0 0.0
        %2598 = vmatprep.subr.mxu0 0.0
        %2599 = vmatpush1.msra.mxu0 0.0
        %2600 = vmatprep.subr.mxu0 0.0
        %2601 = vmatpush1.msra.mxu0 0.0
        %2602 = vmatprep.mubr.f32.mxu0 0.0
        %2603 = vmatmul.mubr.f32.gmra.mrb[0].mxu0 %v2246
        %v2604 = vpop.f32.mrb[0].mxu0
        %v2605 = vadd.f32 0.0, %v2604
        %v2606 = vpop.f32.mrb[0].mxu0
        %v2607 = vadd.f32 0.0, %v2606
        %2608 = vdwg.mxu0
        %2609 = vmatprep.subr.mxu0 %v2006
        %2610 = vmatpush1.msra.mxu0 %v2005
        %2611 = vmatprep.subr.mxu0 %v2008
        %2612 = vmatpush1.msra.mxu0 %v2007
        %2613 = vmatprep.subr.mxu0 %v2010
        %2614 = vmatpush1.msra.mxu0 %v2009
        %2615 = vmatprep.subr.mxu0 %v2012
        %2616 = vmatpush1.msra.mxu0 %v2011
        %2617 = vmatprep.subr.mxu0 %v2014
        %2618 = vmatpush1.msra.mxu0 %v2013
        %2619 = vmatprep.subr.mxu0 %v2016
        %2620 = vmatpush1.msra.mxu0 %v2015
        %2621 = vmatprep.subr.mxu0 %v2018
        %2622 = vmatpush1.msra.mxu0 %v2017
        %2623 = vmatprep.subr.mxu0 %v2020
        %2624 = vmatpush1.msra.mxu0 %v2019
        %2625 = vmatprep.subr.mxu0 %v2022
        %2626 = vmatpush1.msra.mxu0 %v2021
        %2627 = vmatprep.subr.mxu0 %v2024
        %2628 = vmatpush1.msra.mxu0 %v2023
        %2629 = vmatprep.subr.mxu0 %v2026
        %2630 = vmatpush1.msra.mxu0 %v2025
        %2631 = vmatprep.subr.mxu0 %v2028
        %2632 = vmatpush1.msra.mxu0 %v2027
        %2633 = vmatprep.subr.mxu0 %v2030
        %2634 = vmatpush1.msra.mxu0 %v2029
        %2635 = vmatprep.subr.mxu0 %v2032
        %2636 = vmatpush1.msra.mxu0 %v2031
        %2637 = vmatprep.subr.mxu0 %v2034
        %2638 = vmatpush1.msra.mxu0 %v2033
        %2639 = vmatprep.subr.mxu0 %v2036
        %2640 = vmatpush1.msra.mxu0 %v2035
        %2641 = vmatprep.subr.mxu0 0.0
        %2642 = vmatpush1.msra.mxu0 0.0
        %2643 = vmatprep.subr.mxu0 0.0
        %2644 = vmatpush1.msra.mxu0 0.0
        %2645 = vmatprep.subr.mxu0 0.0
        %2646 = vmatpush1.msra.mxu0 0.0
        %2647 = vmatprep.subr.mxu0 0.0
        %2648 = vmatpush1.msra.mxu0 0.0
        %2649 = vmatprep.subr.mxu0 0.0
        %2650 = vmatpush1.msra.mxu0 0.0
        %2651 = vmatprep.subr.mxu0 0.0
        %2652 = vmatpush1.msra.mxu0 0.0
        %2653 = vmatprep.subr.mxu0 0.0
        %2654 = vmatpush1.msra.mxu0 0.0
        %2655 = vmatprep.subr.mxu0 0.0
        %2656 = vmatpush1.msra.mxu0 0.0
        %2657 = vmatprep.subr.mxu0 0.0
        %2658 = vmatpush1.msra.mxu0 0.0
        %2659 = vmatprep.subr.mxu0 0.0
        %2660 = vmatpush1.msra.mxu0 0.0
        %2661 = vmatprep.subr.mxu0 0.0
        %2662 = vmatpush1.msra.mxu0 0.0
        %2663 = vmatprep.subr.mxu0 0.0
        %2664 = vmatpush1.msra.mxu0 0.0
        %2665 = vmatprep.subr.mxu0 0.0
        %2666 = vmatpush1.msra.mxu0 0.0
        %2667 = vmatprep.subr.mxu0 0.0
        %2668 = vmatpush1.msra.mxu0 0.0
        %2669 = vmatprep.subr.mxu0 0.0
        %2670 = vmatpush1.msra.mxu0 0.0
        %2671 = vmatprep.subr.mxu0 0.0
        %2672 = vmatpush1.msra.mxu0 0.0
        %2673 = vmatprep.mubr.f32.mxu0 0.0
        %2674 = vmatmul.mubr.f32.gmra.mrb[0].mxu0 %v2004
        %v2675 = vpop.f32.mrb[0].mxu0
        %v2676 = vadd.f32 %v2605, %v2675
        %v2677 = vpop.f32.mrb[0].mxu0
        %v2678 = vadd.f32 %v2607, %v2677
        %2679 = vdwg.mxu0
        %2680 = vmatprep.subr.mxu0 %v2214
        %2681 = vmatpush1.msra.mxu0 %v2213
        %2682 = vmatprep.subr.mxu0 %v2216
        %2683 = vmatpush1.msra.mxu0 %v2215
        %2684 = vmatprep.subr.mxu0 %v2218
        %2685 = vmatpush1.msra.mxu0 %v2217
        %2686 = vmatprep.subr.mxu0 %v2220
        %2687 = vmatpush1.msra.mxu0 %v2219
        %2688 = vmatprep.subr.mxu0 %v2222
        %2689 = vmatpush1.msra.mxu0 %v2221
        %2690 = vmatprep.subr.mxu0 %v2224
        %2691 = vmatpush1.msra.mxu0 %v2223
        %2692 = vmatprep.subr.mxu0 %v2226
        %2693 = vmatpush1.msra.mxu0 %v2225
        %2694 = vmatprep.subr.mxu0 %v2228
        %2695 = vmatpush1.msra.mxu0 %v2227
        %2696 = vmatprep.subr.mxu0 %v2230
        %2697 = vmatpush1.msra.mxu0 %v2229
        %2698 = vmatprep.subr.mxu0 %v2232
        %2699 = vmatpush1.msra.mxu0 %v2231
        %2700 = vmatprep.subr.mxu0 %v2234
        %2701 = vmatpush1.msra.mxu0 %v2233
        %2702 = vmatprep.subr.mxu0 %v2236
        %2703 = vmatpush1.msra.mxu0 %v2235
        %2704 = vmatprep.subr.mxu0 %v2238
        %2705 = vmatpush1.msra.mxu0 %v2237
        %2706 = vmatprep.subr.mxu0 %v2240
        %2707 = vmatpush1.msra.mxu0 %v2239
        %2708 = vmatprep.subr.mxu0 %v2242
        %2709 = vmatpush1.msra.mxu0 %v2241
        %2710 = vmatprep.subr.mxu0 %v2244
        %2711 = vmatpush1.msra.mxu0 %v2243
        %2712 = vmatprep.subr.mxu0 0.0
        %2713 = vmatpush1.msra.mxu0 0.0
        %2714 = vmatprep.subr.mxu0 0.0
        %2715 = vmatpush1.msra.mxu0 0.0
        %2716 = vmatprep.subr.mxu0 0.0
        %2717 = vmatpush1.msra.mxu0 0.0
        %2718 = vmatprep.subr.mxu0 0.0
        %2719 = vmatpush1.msra.mxu0 0.0
        %2720 = vmatprep.subr.mxu0 0.0
        %2721 = vmatpush1.msra.mxu0 0.0
        %2722 = vmatprep.subr.mxu0 0.0
        %2723 = vmatpush1.msra.mxu0 0.0
        %2724 = vmatprep.subr.mxu0 0.0
        %2725 = vmatpush1.msra.mxu0 0.0
        %2726 = vmatprep.subr.mxu0 0.0
        %2727 = vmatpush1.msra.mxu0 0.0
        %2728 = vmatprep.subr.mxu0 0.0
        %2729 = vmatpush1.msra.mxu0 0.0
        %2730 = vmatprep.subr.mxu0 0.0
        %2731 = vmatpush1.msra.mxu0 0.0
        %2732 = vmatprep.subr.mxu0 0.0
        %2733 = vmatpush1.msra.mxu0 0.0
        %2734 = vmatprep.subr.mxu0 0.0
        %2735 = vmatpush1.msra.mxu0 0.0
        %2736 = vmatprep.subr.mxu0 0.0
        %2737 = vmatpush1.msra.mxu0 0.0
        %2738 = vmatprep.subr.mxu0 0.0
        %2739 = vmatpush1.msra.mxu0 0.0
        %2740 = vmatprep.subr.mxu0 0.0
        %2741 = vmatpush1.msra.mxu0 0.0
        %2742 = vmatprep.subr.mxu0 0.0
        %2743 = vmatpush1.msra.mxu0 0.0
        %2744 = vmatprep.mubr.f32.mxu0 0.0
        %2745 = vmatmul.mubr.f32.gmra.mrb[0].mxu0 %v2355
        %v2746 = vpop.f32.mrb[0].mxu0
        %v2747 = vadd.f32 0.0, %v2746
        %v2748 = vpop.f32.mrb[0].mxu0
        %v2749 = vadd.f32 0.0, %v2748
        %2750 = vdwg.mxu0
        %v2751 = vadd.f32 %v2676, %v2747
        %v2752 = vadd.f32 %v2678, %v2749
        %2753 = vmatprep.subr.mxu0 %v2323
        %2754 = vmatpush1.msra.mxu0 %v2322
        %2755 = vmatprep.subr.mxu0 %v2325
        %2756 = vmatpush1.msra.mxu0 %v2324
        %2757 = vmatprep.subr.mxu0 %v2327
        %2758 = vmatpush1.msra.mxu0 %v2326
        %2759 = vmatprep.subr.mxu0 %v2329
        %2760 = vmatpush1.msra.mxu0 %v2328
        %2761 = vmatprep.subr.mxu0 %v2331
        %2762 = vmatpush1.msra.mxu0 %v2330
        %2763 = vmatprep.subr.mxu0 %v2333
        %2764 = vmatpush1.msra.mxu0 %v2332
        %2765 = vmatprep.subr.mxu0 %v2335
        %2766 = vmatpush1.msra.mxu0 %v2334
        %2767 = vmatprep.subr.mxu0 %v2337
        %2768 = vmatpush1.msra.mxu0 %v2336
        %2769 = vmatprep.subr.mxu0 %v2339
        %2770 = vmatpush1.msra.mxu0 %v2338
        %2771 = vmatprep.subr.mxu0 %v2341
        %2772 = vmatpush1.msra.mxu0 %v2340
        %2773 = vmatprep.subr.mxu0 %v2343
        %2774 = vmatpush1.msra.mxu0 %v2342
        %2775 = vmatprep.subr.mxu0 %v2345
        %2776 = vmatpush1.msra.mxu0 %v2344
        %2777 = vmatprep.subr.mxu0 %v2347
        %2778 = vmatpush1.msra.mxu0 %v2346
        %2779 = vmatprep.subr.mxu0 %v2349
        %2780 = vmatpush1.msra.mxu0 %v2348
        %2781 = vmatprep.subr.mxu0 %v2351
        %2782 = vmatpush1.msra.mxu0 %v2350
        %2783 = vmatprep.subr.mxu0 %v2353
        %2784 = vmatpush1.msra.mxu0 %v2352
        %2785 = vmatprep.subr.mxu0 0.0
        %2786 = vmatpush1.msra.mxu0 0.0
        %2787 = vmatprep.subr.mxu0 0.0
        %2788 = vmatpush1.msra.mxu0 0.0
        %2789 = vmatprep.subr.mxu0 0.0
        %2790 = vmatpush1.msra.mxu0 0.0
        %2791 = vmatprep.subr.mxu0 0.0
        %2792 = vmatpush1.msra.mxu0 0.0
        %2793 = vmatprep.subr.mxu0 0.0
        %2794 = vmatpush1.msra.mxu0 0.0
        %2795 = vmatprep.subr.mxu0 0.0
        %2796 = vmatpush1.msra.mxu0 0.0
        %2797 = vmatprep.subr.mxu0 0.0
        %2798 = vmatpush1.msra.mxu0 0.0
        %2799 = vmatprep.subr.mxu0 0.0
        %2800 = vmatpush1.msra.mxu0 0.0
        %2801 = vmatprep.subr.mxu0 0.0
        %2802 = vmatpush1.msra.mxu0 0.0
        %2803 = vmatprep.subr.mxu0 0.0
        %2804 = vmatpush1.msra.mxu0 0.0
        %2805 = vmatprep.subr.mxu0 0.0
        %2806 = vmatpush1.msra.mxu0 0.0
        %2807 = vmatprep.subr.mxu0 0.0
        %2808 = vmatpush1.msra.mxu0 0.0
        %2809 = vmatprep.subr.mxu0 0.0
        %2810 = vmatpush1.msra.mxu0 0.0
        %2811 = vmatprep.subr.mxu0 0.0
        %2812 = vmatpush1.msra.mxu0 0.0
        %2813 = vmatprep.subr.mxu0 0.0
        %2814 = vmatpush1.msra.mxu0 0.0
        %2815 = vmatprep.subr.mxu0 0.0
        %2816 = vmatpush1.msra.mxu0 0.0
        %2817 = vmatprep.mubr.f32.mxu0 0.0
        %2818 = vmatmul.mubr.f32.gmra.mrb[0].mxu0 %v2463
        %v2819 = vpop.f32.mrb[0].mxu0
        %v2820 = vadd.f32 0.0, %v2819
        %v2821 = vpop.f32.mrb[0].mxu0
        %v2822 = vadd.f32 0.0, %v2821
        %2823 = vdwg.mxu0
        %v2824 = vadd.f32 %v2751, %v2820
        %v2825 = vadd.f32 %v2752, %v2822
        %v2826 = vrot.slane %v2004, 2
        %2828 = vmatprep.subr.mxu0 %v2432
        %2829 = vmatpush1.msra.mxu0 %v2431
        %2830 = vmatprep.subr.mxu0 %v2434
        %2831 = vmatpush1.msra.mxu0 %v2433
        %2832 = vmatprep.subr.mxu0 %v2436
        %2833 = vmatpush1.msra.mxu0 %v2435
        %2834 = vmatprep.subr.mxu0 %v2438
        %2835 = vmatpush1.msra.mxu0 %v2437
        %2836 = vmatprep.subr.mxu0 %v2440
        %2837 = vmatpush1.msra.mxu0 %v2439
        %2838 = vmatprep.subr.mxu0 %v2442
        %2839 = vmatpush1.msra.mxu0 %v2441
        %2840 = vmatprep.subr.mxu0 %v2444
        %2841 = vmatpush1.msra.mxu0 %v2443
        %2842 = vmatprep.subr.mxu0 %v2446
        %2843 = vmatpush1.msra.mxu0 %v2445
        %2844 = vmatprep.subr.mxu0 %v2448
        %2845 = vmatpush1.msra.mxu0 %v2447
        %2846 = vmatprep.subr.mxu0 %v2450
        %2847 = vmatpush1.msra.mxu0 %v2449
        %2848 = vmatprep.subr.mxu0 %v2452
        %2849 = vmatpush1.msra.mxu0 %v2451
        %2850 = vmatprep.subr.mxu0 %v2454
        %2851 = vmatpush1.msra.mxu0 %v2453
        %2852 = vmatprep.subr.mxu0 %v2456
        %2853 = vmatpush1.msra.mxu0 %v2455
        %2854 = vmatprep.subr.mxu0 %v2458
        %2855 = vmatpush1.msra.mxu0 %v2457
        %2856 = vmatprep.subr.mxu0 %v2460
        %2857 = vmatpush1.msra.mxu0 %v2459
        %2858 = vmatprep.subr.mxu0 %v2462
        %2859 = vmatpush1.msra.mxu0 %v2461
        %2860 = vmatprep.subr.mxu0 0.0
        %2861 = vmatpush1.msra.mxu0 0.0
        %2862 = vmatprep.subr.mxu0 0.0
        %2863 = vmatpush1.msra.mxu0 0.0
        %2864 = vmatprep.subr.mxu0 0.0
        %2865 = vmatpush1.msra.mxu0 0.0
        %2866 = vmatprep.subr.mxu0 0.0
        %2867 = vmatpush1.msra.mxu0 0.0
        %2868 = vmatprep.subr.mxu0 0.0
        %2869 = vmatpush1.msra.mxu0 0.0
        %2870 = vmatprep.subr.mxu0 0.0
        %2871 = vmatpush1.msra.mxu0 0.0
        %2872 = vmatprep.subr.mxu0 0.0
        %2873 = vmatpush1.msra.mxu0 0.0
        %2874 = vmatprep.subr.mxu0 0.0
        %2875 = vmatpush1.msra.mxu0 0.0
        %2876 = vmatprep.subr.mxu0 0.0
        %2877 = vmatpush1.msra.mxu0 0.0
        %2878 = vmatprep.subr.mxu0 0.0
        %2879 = vmatpush1.msra.mxu0 0.0
        %2880 = vmatprep.subr.mxu0 0.0
        %2881 = vmatpush1.msra.mxu0 0.0
        %2882 = vmatprep.subr.mxu0 0.0
        %2883 = vmatpush1.msra.mxu0 0.0
        %2884 = vmatprep.subr.mxu0 0.0
        %2885 = vmatpush1.msra.mxu0 0.0
        %2886 = vmatprep.subr.mxu0 0.0
        %2887 = vmatpush1.msra.mxu0 0.0
        %2888 = vmatprep.subr.mxu0 0.0
        %2889 = vmatpush1.msra.mxu0 0.0
        %2890 = vmatprep.subr.mxu0 0.0
        %2891 = vmatpush1.msra.mxu0 0.0
        %2892 = vmatprep.mubr.f32.mxu0 0.0
        %2893 = vmatmul.mubr.f32.gmra.mrb[0].mxu0 %v2826
        %v2894 = vpop.f32.mrb[0].mxu0
        %v2895 = vadd.f32 0.0, %v2894
        %v2896 = vpop.f32.mrb[0].mxu0
        %v2897 = vadd.f32 0.0, %v2896
        %2898 = vdwg.mxu0
        %v2899 = vadd.f32 %v2824, %v2895
        %v2900 = vadd.f32 %v2825, %v2897
        %v2901 = vmax.f32 %v2536, %v2899
        %v2902 = vmax.f32 %v2537, %v2900
        %v2903 = vmax.f32 %v2901, %v2902
        %v2904 = vld [vmem:[%s4] sm:$0x1]
        %v2906 = vlaneseq
        %v2907 = vshrl.u32 %v2906, 7
        %v2908 = vsub.s32 0, %v2907
        %v2909 = vrot.slane %v2904, %v2908
        %v2911 = vadd.f32 %v2903, %v2909
        %v2912 = vmax.f32 %v2911, 0.0
        %v2913 = vld [vmem:[%s5] sm:$0xff]
        %v2914 = vld [vmem:[%s5 + $0x8] sm:$0xff]
        %v2915 = vld [vmem:[%s5 + $0x10] sm:$0xff]
        %v2916 = vld [vmem:[%s5 + $0x18] sm:$0xff]
        %v2917 = vld [vmem:[%s5 + $0x20] sm:$0xff]
        %v2918 = vld [vmem:[%s5 + $0x28] sm:$0xff]
        %v2919 = vld [vmem:[%s5 + $0x30] sm:$0xff]
        %v2920 = vld [vmem:[%s5 + $0x38] sm:$0xff]
        %v2921 = vld [vmem:[%s5 + $0x40] sm:$0xff]
        %v2922 = vld [vmem:[%s5 + $0x48] sm:$0xff]
        %v2923 = vld [vmem:[%s5 + $0x50] sm:$0xff]
        %v2924 = vld [vmem:[%s5 + $0x58] sm:$0xff]
        %v2925 = vld [vmem:[%s5 + $0x60] sm:$0xff]
        %v2926 = vld [vmem:[%s5 + $0x68] sm:$0xff]
        %v2927 = vld [vmem:[%s5 + $0x70] sm:$0xff]
        %v2928 = vld [vmem:[%s5 + $0x78] sm:$0xff]
        %s2929 = scalar_lea.vmem %s5, 128
        %v2930 = vld [vmem:[%s2929] sm:$0xff]
        %v2931 = vld [vmem:[%s2929 + $0x8] sm:$0xff]
        %v2932 = vld [vmem:[%s2929 + $0x10] sm:$0xff]
        %v2933 = vld [vmem:[%s2929 + $0x18] sm:$0xff]
        %v2934 = vld [vmem:[%s2929 + $0x20] sm:$0xff]
        %v2935 = vld [vmem:[%s2929 + $0x28] sm:$0xff]
        %v2936 = vld [vmem:[%s2929 + $0x30] sm:$0xff]
        %v2937 = vld [vmem:[%s2929 + $0x38] sm:$0xff]
        %v2938 = vld [vmem:[%s2929 + $0x40] sm:$0xff]
        %v2939 = vld [vmem:[%s2929 + $0x48] sm:$0xff]
        %v2940 = vld [vmem:[%s2929 + $0x50] sm:$0xff]
        %v2941 = vld [vmem:[%s2929 + $0x58] sm:$0xff]
        %v2942 = vld [vmem:[%s2929 + $0x60] sm:$0xff]
        %v2943 = vld [vmem:[%s2929 + $0x68] sm:$0xff]
        %v2944 = vld [vmem:[%s2929 + $0x70] sm:$0xff]
        %v2945 = vld [vmem:[%s2929 + $0x78] sm:$0xff]
        %v2947 = vrot.slane %v2912, 1
        %2949 = vmatprep.subr.mxu0 0.0
        %2950 = vmatpush1.msra.mxu0 %v2930
        %2951 = vmatprep.subr.mxu0 0.0
        %2952 = vmatpush1.msra.mxu0 %v2931
        %2953 = vmatprep.subr.mxu0 0.0
        %2954 = vmatpush1.msra.mxu0 %v2932
        %2955 = vmatprep.subr.mxu0 0.0
        %2956 = vmatpush1.msra.mxu0 %v2933
        %2957 = vmatprep.subr.mxu0 0.0
        %2958 = vmatpush1.msra.mxu0 %v2934
        %2959 = vmatprep.subr.mxu0 0.0
        %2960 = vmatpush1.msra.mxu0 %v2935
        %2961 = vmatprep.subr.mxu0 0.0
        %2962 = vmatpush1.msra.mxu0 %v2936
        %2963 = vmatprep.subr.mxu0 0.0
        %2964 = vmatpush1.msra.mxu0 %v2937
        %2965 = vmatprep.subr.mxu0 0.0
        %2966 = vmatpush1.msra.mxu0 %v2938
        %2967 = vmatprep.subr.mxu0 0.0
        %2968 = vmatpush1.msra.mxu0 %v2939
        %2969 = vmatprep.subr.mxu0 0.0
        %2970 = vmatpush1.msra.mxu0 %v2940
        %2971 = vmatprep.subr.mxu0 0.0
        %2972 = vmatpush1.msra.mxu0 %v2941
        %2973 = vmatprep.subr.mxu0 0.0
        %2974 = vmatpush1.msra.mxu0 %v2942
        %2975 = vmatprep.subr.mxu0 0.0
        %2976 = vmatpush1.msra.mxu0 %v2943
        %2977 = vmatprep.subr.mxu0 0.0
        %2978 = vmatpush1.msra.mxu0 %v2944
        %2979 = vmatprep.subr.mxu0 0.0
        %2980 = vmatpush1.msra.mxu0 %v2945
        %2981 = vmatprep.subr.mxu0 0.0
        %2982 = vmatpush1.msra.mxu0 0.0
        %2983 = vmatprep.subr.mxu0 0.0
        %2984 = vmatpush1.msra.mxu0 0.0
        %2985 = vmatprep.subr.mxu0 0.0
        %2986 = vmatpush1.msra.mxu0 0.0
        %2987 = vmatprep.subr.mxu0 0.0
        %2988 = vmatpush1.msra.mxu0 0.0
        %2989 = vmatprep.subr.mxu0 0.0
        %2990 = vmatpush1.msra.mxu0 0.0
        %2991 = vmatprep.subr.mxu0 0.0
        %2992 = vmatpush1.msra.mxu0 0.0
        %2993 = vmatprep.subr.mxu0 0.0
        %2994 = vmatpush1.msra.mxu0 0.0
        %2995 = vmatprep.subr.mxu0 0.0
        %2996 = vmatpush1.msra.mxu0 0.0
        %2997 = vmatprep.subr.mxu0 0.0
        %2998 = vmatpush1.msra.mxu0 0.0
        %2999 = vmatprep.subr.mxu0 0.0
        %3000 = vmatpush1.msra.mxu0 0.0
        %3001 = vmatprep.subr.mxu0 0.0
        %3002 = vmatpush1.msra.mxu0 0.0
        %3003 = vmatprep.subr.mxu0 0.0
        %3004 = vmatpush1.msra.mxu0 0.0
        %3005 = vmatprep.subr.mxu0 0.0
        %3006 = vmatpush1.msra.mxu0 0.0
        %3007 = vmatprep.subr.mxu0 0.0
        %3008 = vmatpush1.msra.mxu0 0.0
        %3009 = vmatprep.subr.mxu0 0.0
        %3010 = vmatpush1.msra.mxu0 0.0
        %3011 = vmatprep.subr.mxu0 0.0
        %3012 = vmatpush1.msra.mxu0 0.0
        %3013 = vmatprep.mubr.f32.mxu0 0.0
        %3014 = vmatmul.mubr.f32.gmra.mrb[0].mxu0 %v2947
        %v3015 = vpop.f32.mrb[0].mxu0
        %v3016 = vadd.f32 0.0, %v3015
        %v3017 = vpop.f32.mrb[0].mxu0
        %3018 = vdwg.mxu0
        %3019 = vmatprep.subr.mxu0 0.0
        %3020 = vmatpush1.msra.mxu0 %v2913
        %3021 = vmatprep.subr.mxu0 0.0
        %3022 = vmatpush1.msra.mxu0 %v2914
        %3023 = vmatprep.subr.mxu0 0.0
        %3024 = vmatpush1.msra.mxu0 %v2915
        %3025 = vmatprep.subr.mxu0 0.0
        %3026 = vmatpush1.msra.mxu0 %v2916
        %3027 = vmatprep.subr.mxu0 0.0
        %3028 = vmatpush1.msra.mxu0 %v2917
        %3029 = vmatprep.subr.mxu0 0.0
        %3030 = vmatpush1.msra.mxu0 %v2918
        %3031 = vmatprep.subr.mxu0 0.0
        %3032 = vmatpush1.msra.mxu0 %v2919
        %3033 = vmatprep.subr.mxu0 0.0
        %3034 = vmatpush1.msra.mxu0 %v2920
        %3035 = vmatprep.subr.mxu0 0.0
        %3036 = vmatpush1.msra.mxu0 %v2921
        %3037 = vmatprep.subr.mxu0 0.0
        %3038 = vmatpush1.msra.mxu0 %v2922
        %3039 = vmatprep.subr.mxu0 0.0
        %3040 = vmatpush1.msra.mxu0 %v2923
        %3041 = vmatprep.subr.mxu0 0.0
        %3042 = vmatpush1.msra.mxu0 %v2924
        %3043 = vmatprep.subr.mxu0 0.0
        %3044 = vmatpush1.msra.mxu0 %v2925
        %3045 = vmatprep.subr.mxu0 0.0
        %3046 = vmatpush1.msra.mxu0 %v2926
        %3047 = vmatprep.subr.mxu0 0.0
        %3048 = vmatpush1.msra.mxu0 %v2927
        %3049 = vmatprep.subr.mxu0 0.0
        %3050 = vmatpush1.msra.mxu0 %v2928
        %3051 = vmatprep.subr.mxu0 0.0
        %3052 = vmatpush1.msra.mxu0 0.0
        %3053 = vmatprep.subr.mxu0 0.0
        %3054 = vmatpush1.msra.mxu0 0.0
        %3055 = vmatprep.subr.mxu0 0.0
        %3056 = vmatpush1.msra.mxu0 0.0
        %3057 = vmatprep.subr.mxu0 0.0
        %3058 = vmatpush1.msra.mxu0 0.0
        %3059 = vmatprep.subr.mxu0 0.0
        %3060 = vmatpush1.msra.mxu0 0.0
        %3061 = vmatprep.subr.mxu0 0.0
        %3062 = vmatpush1.msra.mxu0 0.0
        %3063 = vmatprep.subr.mxu0 0.0
        %3064 = vmatpush1.msra.mxu0 0.0
        %3065 = vmatprep.subr.mxu0 0.0
        %3066 = vmatpush1.msra.mxu0 0.0
        %3067 = vmatprep.subr.mxu0 0.0
        %3068 = vmatpush1.msra.mxu0 0.0
        %3069 = vmatprep.subr.mxu0 0.0
        %3070 = vmatpush1.msra.mxu0 0.0
        %3071 = vmatprep.subr.mxu0 0.0
        %3072 = vmatpush1.msra.mxu0 0.0
        %3073 = vmatprep.subr.mxu0 0.0
        %3074 = vmatpush1.msra.mxu0 0.0
        %3075 = vmatprep.subr.mxu0 0.0
        %3076 = vmatpush1.msra.mxu0 0.0
        %3077 = vmatprep.subr.mxu0 0.0
        %3078 = vmatpush1.msra.mxu0 0.0
        %3079 = vmatprep.subr.mxu0 0.0
        %3080 = vmatpush1.msra.mxu0 0.0
        %3081 = vmatprep.subr.mxu0 0.0
        %3082 = vmatpush1.msra.mxu0 0.0
        %3083 = vmatprep.mubr.f32.mxu0 0.0
        %3084 = vmatmul.mubr.f32.gmra.mrb[0].mxu0 %v2912
        %v3085 = vpop.f32.mrb[0].mxu0
        %v3086 = vadd.f32 %v3016, %v3085
        %v3087 = vpop.f32.mrb[0].mxu0
        %3088 = vdwg.mxu0
        %s3089 = scalar_lea.vmem %s5, 256
        %v3090 = vld [vmem:[%s3089] sm:$0xff]
        %v3091 = vld [vmem:[%s3089 + $0x8] sm:$0xff]
        %v3092 = vld [vmem:[%s3089 + $0x10] sm:$0xff]
        %v3093 = vld [vmem:[%s3089 + $0x18] sm:$0xff]
        %v3094 = vld [vmem:[%s3089 + $0x20] sm:$0xff]
        %v3095 = vld [vmem:[%s3089 + $0x28] sm:$0xff]
        %v3096 = vld [vmem:[%s3089 + $0x30] sm:$0xff]
        %v3097 = vld [vmem:[%s3089 + $0x38] sm:$0xff]
        %v3098 = vld [vmem:[%s3089 + $0x40] sm:$0xff]
        %v3099 = vld [vmem:[%s3089 + $0x48] sm:$0xff]
        %v3100 = vld [vmem:[%s3089 + $0x50] sm:$0xff]
        %v3101 = vld [vmem:[%s3089 + $0x58] sm:$0xff]
        %v3102 = vld [vmem:[%s3089 + $0x60] sm:$0xff]
        %v3103 = vld [vmem:[%s3089 + $0x68] sm:$0xff]
        %v3104 = vld [vmem:[%s3089 + $0x70] sm:$0xff]
        %v3105 = vld [vmem:[%s3089 + $0x78] sm:$0xff]
        %v3106 = vrot.slane %v2912, 2
        %3108 = vmatprep.subr.mxu0 0.0
        %3109 = vmatpush1.msra.mxu0 %v3090
        %3110 = vmatprep.subr.mxu0 0.0
        %3111 = vmatpush1.msra.mxu0 %v3091
        %3112 = vmatprep.subr.mxu0 0.0
        %3113 = vmatpush1.msra.mxu0 %v3092
        %3114 = vmatprep.subr.mxu0 0.0
        %3115 = vmatpush1.msra.mxu0 %v3093
        %3116 = vmatprep.subr.mxu0 0.0
        %3117 = vmatpush1.msra.mxu0 %v3094
        %3118 = vmatprep.subr.mxu0 0.0
        %3119 = vmatpush1.msra.mxu0 %v3095
        %3120 = vmatprep.subr.mxu0 0.0
        %3121 = vmatpush1.msra.mxu0 %v3096
        %3122 = vmatprep.subr.mxu0 0.0
        %3123 = vmatpush1.msra.mxu0 %v3097
        %3124 = vmatprep.subr.mxu0 0.0
        %3125 = vmatpush1.msra.mxu0 %v3098
        %3126 = vmatprep.subr.mxu0 0.0
        %3127 = vmatpush1.msra.mxu0 %v3099
        %3128 = vmatprep.subr.mxu0 0.0
        %3129 = vmatpush1.msra.mxu0 %v3100
        %3130 = vmatprep.subr.mxu0 0.0
        %3131 = vmatpush1.msra.mxu0 %v3101
        %3132 = vmatprep.subr.mxu0 0.0
        %3133 = vmatpush1.msra.mxu0 %v3102
        %3134 = vmatprep.subr.mxu0 0.0
        %3135 = vmatpush1.msra.mxu0 %v3103
        %3136 = vmatprep.subr.mxu0 0.0
        %3137 = vmatpush1.msra.mxu0 %v3104
        %3138 = vmatprep.subr.mxu0 0.0
        %3139 = vmatpush1.msra.mxu0 %v3105
        %3140 = vmatprep.subr.mxu0 0.0
        %3141 = vmatpush1.msra.mxu0 0.0
        %3142 = vmatprep.subr.mxu0 0.0
        %3143 = vmatpush1.msra.mxu0 0.0
        %3144 = vmatprep.subr.mxu0 0.0
        %3145 = vmatpush1.msra.mxu0 0.0
        %3146 = vmatprep.subr.mxu0 0.0
        %3147 = vmatpush1.msra.mxu0 0.0
        %3148 = vmatprep.subr.mxu0 0.0
        %3149 = vmatpush1.msra.mxu0 0.0
        %3150 = vmatprep.subr.mxu0 0.0
        %3151 = vmatpush1.msra.mxu0 0.0
        %3152 = vmatprep.subr.mxu0 0.0
        %3153 = vmatpush1.msra.mxu0 0.0
        %3154 = vmatprep.subr.mxu0 0.0
        %3155 = vmatpush1.msra.mxu0 0.0
        %3156 = vmatprep.subr.mxu0 0.0
        %3157 = vmatpush1.msra.mxu0 0.0
        %3158 = vmatprep.subr.mxu0 0.0
        %3159 = vmatpush1.msra.mxu0 0.0
        %3160 = vmatprep.subr.mxu0 0.0
        %3161 = vmatpush1.msra.mxu0 0.0
        %3162 = vmatprep.subr.mxu0 0.0
        %3163 = vmatpush1.msra.mxu0 0.0
        %3164 = vmatprep.subr.mxu0 0.0
        %3165 = vmatpush1.msra.mxu0 0.0
        %3166 = vmatprep.subr.mxu0 0.0
        %3167 = vmatpush1.msra.mxu0 0.0
        %3168 = vmatprep.subr.mxu0 0.0
        %3169 = vmatpush1.msra.mxu0 0.0
        %3170 = vmatprep.subr.mxu0 0.0
        %3171 = vmatpush1.msra.mxu0 0.0
        %3172 = vmatprep.mubr.f32.mxu0 0.0
        %3173 = vmatmul.mubr.f32.gmra.mrb[0].mxu0 %v3106
        %v3174 = vpop.f32.mrb[0].mxu0
        %v3175 = vadd.f32 0.0, %v3174
        %v3176 = vpop.f32.mrb[0].mxu0
        %3177 = vdwg.mxu0
        %v3178 = vadd.f32 %v3086, %v3175
        %s3179 = scalar_lea.vmem %s5, 384
        %v3180 = vld [vmem:[%s3179] sm:$0xff]
        %v3181 = vld [vmem:[%s3179 + $0x8] sm:$0xff]
        %v3182 = vld [vmem:[%s3179 + $0x10] sm:$0xff]
        %v3183 = vld [vmem:[%s3179 + $0x18] sm:$0xff]
        %v3184 = vld [vmem:[%s3179 + $0x20] sm:$0xff]
        %v3185 = vld [vmem:[%s3179 + $0x28] sm:$0xff]
        %v3186 = vld [vmem:[%s3179 + $0x30] sm:$0xff]
        %v3187 = vld [vmem:[%s3179 + $0x38] sm:$0xff]
        %v3188 = vld [vmem:[%s3179 + $0x40] sm:$0xff]
        %v3189 = vld [vmem:[%s3179 + $0x48] sm:$0xff]
        %v3190 = vld [vmem:[%s3179 + $0x50] sm:$0xff]
        %v3191 = vld [vmem:[%s3179 + $0x58] sm:$0xff]
        %v3192 = vld [vmem:[%s3179 + $0x60] sm:$0xff]
        %v3193 = vld [vmem:[%s3179 + $0x68] sm:$0xff]
        %v3194 = vld [vmem:[%s3179 + $0x70] sm:$0xff]
        %v3195 = vld [vmem:[%s3179 + $0x78] sm:$0xff]
        %v3196 = vrot.slane %v2912, 3
        %3198 = vmatprep.subr.mxu0 0.0
        %3199 = vmatpush1.msra.mxu0 %v3180
        %3200 = vmatprep.subr.mxu0 0.0
        %3201 = vmatpush1.msra.mxu0 %v3181
        %3202 = vmatprep.subr.mxu0 0.0
        %3203 = vmatpush1.msra.mxu0 %v3182
        %3204 = vmatprep.subr.mxu0 0.0
        %3205 = vmatpush1.msra.mxu0 %v3183
        %3206 = vmatprep.subr.mxu0 0.0
        %3207 = vmatpush1.msra.mxu0 %v3184
        %3208 = vmatprep.subr.mxu0 0.0
        %3209 = vmatpush1.msra.mxu0 %v3185
        %3210 = vmatprep.subr.mxu0 0.0
        %3211 = vmatpush1.msra.mxu0 %v3186
        %3212 = vmatprep.subr.mxu0 0.0
        %3213 = vmatpush1.msra.mxu0 %v3187
        %3214 = vmatprep.subr.mxu0 0.0
        %3215 = vmatpush1.msra.mxu0 %v3188
        %3216 = vmatprep.subr.mxu0 0.0
        %3217 = vmatpush1.msra.mxu0 %v3189
        %3218 = vmatprep.subr.mxu0 0.0
        %3219 = vmatpush1.msra.mxu0 %v3190
        %3220 = vmatprep.subr.mxu0 0.0
        %3221 = vmatpush1.msra.mxu0 %v3191
        %3222 = vmatprep.subr.mxu0 0.0
        %3223 = vmatpush1.msra.mxu0 %v3192
        %3224 = vmatprep.subr.mxu0 0.0
        %3225 = vmatpush1.msra.mxu0 %v3193
        %3226 = vmatprep.subr.mxu0 0.0
        %3227 = vmatpush1.msra.mxu0 %v3194
        %3228 = vmatprep.subr.mxu0 0.0
        %3229 = vmatpush1.msra.mxu0 %v3195
        %3230 = vmatprep.subr.mxu0 0.0
        %3231 = vmatpush1.msra.mxu0 0.0
        %3232 = vmatprep.subr.mxu0 0.0
        %3233 = vmatpush1.msra.mxu0 0.0
        %3234 = vmatprep.subr.mxu0 0.0
        %3235 = vmatpush1.msra.mxu0 0.0
        %3236 = vmatprep.subr.mxu0 0.0
        %3237 = vmatpush1.msra.mxu0 0.0
        %3238 = vmatprep.subr.mxu0 0.0
        %3239 = vmatpush1.msra.mxu0 0.0
        %3240 = vmatprep.subr.mxu0 0.0
        %3241 = vmatpush1.msra.mxu0 0.0
        %3242 = vmatprep.subr.mxu0 0.0
        %3243 = vmatpush1.msra.mxu0 0.0
        %3244 = vmatprep.subr.mxu0 0.0
        %3245 = vmatpush1.msra.mxu0 0.0
        %3246 = vmatprep.subr.mxu0 0.0
        %3247 = vmatpush1.msra.mxu0 0.0
        %3248 = vmatprep.subr.mxu0 0.0
        %3249 = vmatpush1.msra.mxu0 0.0
        %3250 = vmatprep.subr.mxu0 0.0
        %3251 = vmatpush1.msra.mxu0 0.0
        %3252 = vmatprep.subr.mxu0 0.0
        %3253 = vmatpush1.msra.mxu0 0.0
        %3254 = vmatprep.subr.mxu0 0.0
        %3255 = vmatpush1.msra.mxu0 0.0
        %3256 = vmatprep.subr.mxu0 0.0
        %3257 = vmatpush1.msra.mxu0 0.0
        %3258 = vmatprep.subr.mxu0 0.0
        %3259 = vmatpush1.msra.mxu0 0.0
        %3260 = vmatprep.subr.mxu0 0.0
        %3261 = vmatpush1.msra.mxu0 0.0
        %3262 = vmatprep.mubr.f32.mxu0 0.0
        %3263 = vmatmul.mubr.f32.gmra.mrb[0].mxu0 %v3196
        %v3264 = vpop.f32.mrb[0].mxu0
        %v3265 = vadd.f32 0.0, %v3264
        %v3266 = vpop.f32.mrb[0].mxu0
        %3267 = vdwg.mxu0
        %v3268 = vadd.f32 %v3178, %v3265
        %s3269 = scalar_lea.vmem %s5, 512
        %v3270 = vld [vmem:[%s3269] sm:$0xff]
        %v3271 = vld [vmem:[%s3269 + $0x8] sm:$0xff]
        %v3272 = vld [vmem:[%s3269 + $0x10] sm:$0xff]
        %v3273 = vld [vmem:[%s3269 + $0x18] sm:$0xff]
        %v3274 = vld [vmem:[%s3269 + $0x20] sm:$0xff]
        %v3275 = vld [vmem:[%s3269 + $0x28] sm:$0xff]
        %v3276 = vld [vmem:[%s3269 + $0x30] sm:$0xff]
        %v3277 = vld [vmem:[%s3269 + $0x38] sm:$0xff]
        %v3278 = vld [vmem:[%s3269 + $0x40] sm:$0xff]
        %v3279 = vld [vmem:[%s3269 + $0x48] sm:$0xff]
        %v3280 = vld [vmem:[%s3269 + $0x50] sm:$0xff]
        %v3281 = vld [vmem:[%s3269 + $0x58] sm:$0xff]
        %v3282 = vld [vmem:[%s3269 + $0x60] sm:$0xff]
        %v3283 = vld [vmem:[%s3269 + $0x68] sm:$0xff]
        %v3284 = vld [vmem:[%s3269 + $0x70] sm:$0xff]
        %v3285 = vld [vmem:[%s3269 + $0x78] sm:$0xff]
        %v3286 = vrot.slane %v2912, 4
        %3288 = vmatprep.subr.mxu0 0.0
        %3289 = vmatpush1.msra.mxu0 %v3270
        %3290 = vmatprep.subr.mxu0 0.0
        %3291 = vmatpush1.msra.mxu0 %v3271
        %3292 = vmatprep.subr.mxu0 0.0
        %3293 = vmatpush1.msra.mxu0 %v3272
        %3294 = vmatprep.subr.mxu0 0.0
        %3295 = vmatpush1.msra.mxu0 %v3273
        %3296 = vmatprep.subr.mxu0 0.0
        %3297 = vmatpush1.msra.mxu0 %v3274
        %3298 = vmatprep.subr.mxu0 0.0
        %3299 = vmatpush1.msra.mxu0 %v3275
        %3300 = vmatprep.subr.mxu0 0.0
        %3301 = vmatpush1.msra.mxu0 %v3276
        %3302 = vmatprep.subr.mxu0 0.0
        %3303 = vmatpush1.msra.mxu0 %v3277
        %3304 = vmatprep.subr.mxu0 0.0
        %3305 = vmatpush1.msra.mxu0 %v3278
        %3306 = vmatprep.subr.mxu0 0.0
        %3307 = vmatpush1.msra.mxu0 %v3279
        %3308 = vmatprep.subr.mxu0 0.0
        %3309 = vmatpush1.msra.mxu0 %v3280
        %3310 = vmatprep.subr.mxu0 0.0
        %3311 = vmatpush1.msra.mxu0 %v3281
        %3312 = vmatprep.subr.mxu0 0.0
        %3313 = vmatpush1.msra.mxu0 %v3282
        %3314 = vmatprep.subr.mxu0 0.0
        %3315 = vmatpush1.msra.mxu0 %v3283
        %3316 = vmatprep.subr.mxu0 0.0
        %3317 = vmatpush1.msra.mxu0 %v3284
        %3318 = vmatprep.subr.mxu0 0.0
        %3319 = vmatpush1.msra.mxu0 %v3285
        %3320 = vmatprep.subr.mxu0 0.0
        %3321 = vmatpush1.msra.mxu0 0.0
        %3322 = vmatprep.subr.mxu0 0.0
        %3323 = vmatpush1.msra.mxu0 0.0
        %3324 = vmatprep.subr.mxu0 0.0
        %3325 = vmatpush1.msra.mxu0 0.0
        %3326 = vmatprep.subr.mxu0 0.0
        %3327 = vmatpush1.msra.mxu0 0.0
        %3328 = vmatprep.subr.mxu0 0.0
        %3329 = vmatpush1.msra.mxu0 0.0
        %3330 = vmatprep.subr.mxu0 0.0
        %3331 = vmatpush1.msra.mxu0 0.0
        %3332 = vmatprep.subr.mxu0 0.0
        %3333 = vmatpush1.msra.mxu0 0.0
        %3334 = vmatprep.subr.mxu0 0.0
        %3335 = vmatpush1.msra.mxu0 0.0
        %3336 = vmatprep.subr.mxu0 0.0
        %3337 = vmatpush1.msra.mxu0 0.0
        %3338 = vmatprep.subr.mxu0 0.0
        %3339 = vmatpush1.msra.mxu0 0.0
        %3340 = vmatprep.subr.mxu0 0.0
        %3341 = vmatpush1.msra.mxu0 0.0
        %3342 = vmatprep.subr.mxu0 0.0
        %3343 = vmatpush1.msra.mxu0 0.0
        %3344 = vmatprep.subr.mxu0 0.0
        %3345 = vmatpush1.msra.mxu0 0.0
        %3346 = vmatprep.subr.mxu0 0.0
        %3347 = vmatpush1.msra.mxu0 0.0
        %3348 = vmatprep.subr.mxu0 0.0
        %3349 = vmatpush1.msra.mxu0 0.0
        %3350 = vmatprep.subr.mxu0 0.0
        %3351 = vmatpush1.msra.mxu0 0.0
        %3352 = vmatprep.mubr.f32.mxu0 0.0
        %3353 = vmatmul.mubr.f32.gmra.mrb[0].mxu0 %v3286
        %v3354 = vpop.f32.mrb[0].mxu0
        %v3355 = vadd.f32 0.0, %v3354
        %v3356 = vpop.f32.mrb[0].mxu0
        %3357 = vdwg.mxu0
        %v3358 = vadd.f32 %v3268, %v3355
        %v3359 = vld [vmem:[%s6] sm:$0x1]
        %v3360 = vadd.f32 %v3358, %v3359
        %v3361 = vmax.f32 %v3360, 0.0
        %v3362 = vld [vmem:[%s7] sm:$0xff]
        %v3363 = vld [vmem:[%s7 + $0x8] sm:$0xff]
        %v3364 = vld [vmem:[%s7 + $0x10] sm:$0xff]
        %v3365 = vld [vmem:[%s7 + $0x18] sm:$0xff]
        %v3366 = vld [vmem:[%s7 + $0x20] sm:$0xff]
        %v3367 = vld [vmem:[%s7 + $0x28] sm:$0xff]
        %v3368 = vld [vmem:[%s7 + $0x30] sm:$0xff]
        %v3369 = vld [vmem:[%s7 + $0x38] sm:$0xff]
        %v3370 = vld [vmem:[%s7 + $0x40] sm:$0xff]
        %v3371 = vld [vmem:[%s7 + $0x48] sm:$0xff]
        %v3372 = vld [vmem:[%s7 + $0x50] sm:$0xff]
        %v3373 = vld [vmem:[%s7 + $0x58] sm:$0xff]
        %v3374 = vld [vmem:[%s7 + $0x60] sm:$0xff]
        %v3375 = vld [vmem:[%s7 + $0x68] sm:$0xff]
        %v3376 = vld [vmem:[%s7 + $0x70] sm:$0xff]
        %v3377 = vld [vmem:[%s7 + $0x78] sm:$0xff]
        %v3378 = vld [vmem:[%s8] sm:$0x1]
        %3379 = vmatprep.subr.mxu0 0.0
        %3380 = vmatpush1.msra.mxu0 %v3362
        %3381 = vmatprep.subr.mxu0 0.0
        %3382 = vmatpush1.msra.mxu0 %v3363
        %3383 = vmatprep.subr.mxu0 0.0
        %3384 = vmatpush1.msra.mxu0 %v3364
        %3385 = vmatprep.subr.mxu0 0.0
        %3386 = vmatpush1.msra.mxu0 %v3365
        %3387 = vmatprep.subr.mxu0 0.0
        %3388 = vmatpush1.msra.mxu0 %v3366
        %3389 = vmatprep.subr.mxu0 0.0
        %3390 = vmatpush1.msra.mxu0 %v3367
        %3391 = vmatprep.subr.mxu0 0.0
        %3392 = vmatpush1.msra.mxu0 %v3368
        %3393 = vmatprep.subr.mxu0 0.0
        %3394 = vmatpush1.msra.mxu0 %v3369
        %3395 = vmatprep.subr.mxu0 0.0
        %3396 = vmatpush1.msra.mxu0 %v3370
        %3397 = vmatprep.subr.mxu0 0.0
        %3398 = vmatpush1.msra.mxu0 %v3371
        %3399 = vmatprep.subr.mxu0 0.0
        %3400 = vmatpush1.msra.mxu0 %v3372
        %3401 = vmatprep.subr.mxu0 0.0
        %3402 = vmatpush1.msra.mxu0 %v3373
        %3403 = vmatprep.subr.mxu0 0.0
        %3404 = vmatpush1.msra.mxu0 %v3374
        %3405 = vmatprep.subr.mxu0 0.0
        %3406 = vmatpush1.msra.mxu0 %v3375
        %3407 = vmatprep.subr.mxu0 0.0
        %3408 = vmatpush1.msra.mxu0 %v3376
        %3409 = vmatprep.subr.mxu0 0.0
        %3410 = vmatpush1.msra.mxu0 %v3377
        %3411 = vmatprep.subr.mxu0 0.0
        %3412 = vmatpush1.msra.mxu0 0.0
        %3413 = vmatprep.subr.mxu0 0.0
        %3414 = vmatpush1.msra.mxu0 0.0
        %3415 = vmatprep.subr.mxu0 0.0
        %3416 = vmatpush1.msra.mxu0 0.0
        %3417 = vmatprep.subr.mxu0 0.0
        %3418 = vmatpush1.msra.mxu0 0.0
        %3419 = vmatprep.subr.mxu0 0.0
        %3420 = vmatpush1.msra.mxu0 0.0
        %3421 = vmatprep.subr.mxu0 0.0
        %3422 = vmatpush1.msra.mxu0 0.0
        %3423 = vmatprep.subr.mxu0 0.0
        %3424 = vmatpush1.msra.mxu0 0.0
        %3425 = vmatprep.subr.mxu0 0.0
        %3426 = vmatpush1.msra.mxu0 0.0
        %3427 = vmatprep.subr.mxu0 0.0
        %3428 = vmatpush1.msra.mxu0 0.0
        %3429 = vmatprep.subr.mxu0 0.0
        %3430 = vmatpush1.msra.mxu0 0.0
        %3431 = vmatprep.subr.mxu0 0.0
        %3432 = vmatpush1.msra.mxu0 0.0
        %3433 = vmatprep.subr.mxu0 0.0
        %3434 = vmatpush1.msra.mxu0 0.0
        %3435 = vmatprep.subr.mxu0 0.0
        %3436 = vmatpush1.msra.mxu0 0.0
        %3437 = vmatprep.subr.mxu0 0.0
        %3438 = vmatpush1.msra.mxu0 0.0
        %3439 = vmatprep.subr.mxu0 0.0
        %3440 = vmatpush1.msra.mxu0 0.0
        %3441 = vmatprep.subr.mxu0 0.0
        %3442 = vmatpush1.msra.mxu0 0.0
        %3443 = vmatprep.mubr.f32.mxu0 0.0
        %3444 = vmatmul.mubr.f32.gmra.mrb[0].mxu0 %v3361
        %v3445 = vpop.f32.mrb[0].mxu0
        %v3446 = vadd.f32 %v3378, %v3445
        %v3447 = vpop.f32.mrb[0].mxu0
        %3448 = vdwg.mxu0
        %v3449 = vmax.f32 %v3446, 0.0
        %v3450 = vld [vmem:[%s9] sm:$0xff]
        %v3451 = vld [vmem:[%s9 + $0x8] sm:$0xff]
        %v3452 = vld [vmem:[%s9 + $0x10] sm:$0xff]
        %v3453 = vld [vmem:[%s9 + $0x18] sm:$0xff]
        %v3454 = vld [vmem:[%s9 + $0x20] sm:$0xff]
        %v3455 = vld [vmem:[%s9 + $0x28] sm:$0xff]
        %v3456 = vld [vmem:[%s9 + $0x30] sm:$0xff]
        %v3457 = vld [vmem:[%s9 + $0x38] sm:$0xff]
        %v3458 = vld [vmem:[%s9 + $0x40] sm:$0xff]
        %v3459 = vld [vmem:[%s9 + $0x48] sm:$0xff]
        %v3460 = vld [vmem:[%s9 + $0x50] sm:$0xff]
        %v3461 = vld [vmem:[%s9 + $0x58] sm:$0xff]
        %v3462 = vld [vmem:[%s9 + $0x60] sm:$0xff]
        %v3463 = vld [vmem:[%s9 + $0x68] sm:$0xff]
        %v3464 = vld [vmem:[%s9 + $0x70] sm:$0xff]
        %v3465 = vld [vmem:[%s9 + $0x78] sm:$0xff]
        %v3466 = vld [vmem:[%s10] sm:$0x1]
        %3467 = vmatprep.subr.mxu0 0.0
        %3468 = vmatpush1.msra.mxu0 %v3450
        %3469 = vmatprep.subr.mxu0 0.0
        %3470 = vmatpush1.msra.mxu0 %v3451
        %3471 = vmatprep.subr.mxu0 0.0
        %3472 = vmatpush1.msra.mxu0 %v3452
        %3473 = vmatprep.subr.mxu0 0.0
        %3474 = vmatpush1.msra.mxu0 %v3453
        %3475 = vmatprep.subr.mxu0 0.0
        %3476 = vmatpush1.msra.mxu0 %v3454
        %3477 = vmatprep.subr.mxu0 0.0
        %3478 = vmatpush1.msra.mxu0 %v3455
        %3479 = vmatprep.subr.mxu0 0.0
        %3480 = vmatpush1.msra.mxu0 %v3456
        %3481 = vmatprep.subr.mxu0 0.0
        %3482 = vmatpush1.msra.mxu0 %v3457
        %3483 = vmatprep.subr.mxu0 0.0
        %3484 = vmatpush1.msra.mxu0 %v3458
        %3485 = vmatprep.subr.mxu0 0.0
        %3486 = vmatpush1.msra.mxu0 %v3459
        %3487 = vmatprep.subr.mxu0 0.0
        %3488 = vmatpush1.msra.mxu0 %v3460
        %3489 = vmatprep.subr.mxu0 0.0
        %3490 = vmatpush1.msra.mxu0 %v3461
        %3491 = vmatprep.subr.mxu0 0.0
        %3492 = vmatpush1.msra.mxu0 %v3462
        %3493 = vmatprep.subr.mxu0 0.0
        %3494 = vmatpush1.msra.mxu0 %v3463
        %3495 = vmatprep.subr.mxu0 0.0
        %3496 = vmatpush1.msra.mxu0 %v3464
        %3497 = vmatprep.subr.mxu0 0.0
        %3498 = vmatpush1.msra.mxu0 %v3465
        %3499 = vmatprep.subr.mxu0 0.0
        %3500 = vmatpush1.msra.mxu0 0.0
        %3501 = vmatprep.subr.mxu0 0.0
        %3502 = vmatpush1.msra.mxu0 0.0
        %3503 = vmatprep.subr.mxu0 0.0
        %3504 = vmatpush1.msra.mxu0 0.0
        %3505 = vmatprep.subr.mxu0 0.0
        %3506 = vmatpush1.msra.mxu0 0.0
        %3507 = vmatprep.subr.mxu0 0.0
        %3508 = vmatpush1.msra.mxu0 0.0
        %3509 = vmatprep.subr.mxu0 0.0
        %3510 = vmatpush1.msra.mxu0 0.0
        %3511 = vmatprep.subr.mxu0 0.0
        %3512 = vmatpush1.msra.mxu0 0.0
        %3513 = vmatprep.subr.mxu0 0.0
        %3514 = vmatpush1.msra.mxu0 0.0
        %3515 = vmatprep.subr.mxu0 0.0
        %3516 = vmatpush1.msra.mxu0 0.0
        %3517 = vmatprep.subr.mxu0 0.0
        %3518 = vmatpush1.msra.mxu0 0.0
        %3519 = vmatprep.subr.mxu0 0.0
        %3520 = vmatpush1.msra.mxu0 0.0
        %3521 = vmatprep.subr.mxu0 0.0
        %3522 = vmatpush1.msra.mxu0 0.0
        %3523 = vmatprep.subr.mxu0 0.0
        %3524 = vmatpush1.msra.mxu0 0.0
        %3525 = vmatprep.subr.mxu0 0.0
        %3526 = vmatpush1.msra.mxu0 0.0
        %3527 = vmatprep.subr.mxu0 0.0
        %3528 = vmatpush1.msra.mxu0 0.0
        %3529 = vmatprep.subr.mxu0 0.0
        %3530 = vmatpush1.msra.mxu0 0.0
        %3531 = vmatprep.mubr.f32.mxu0 0.0
        %3532 = vmatmul.mubr.f32.gmra.mrb[0].mxu0 %v3449
        %v3533 = vpop.f32.mrb[0].mxu0
        %v3534 = vadd.f32 %v3466, %v3533
        %v3535 = vpop.f32.mrb[0].mxu0
        %3536 = vdwg.mxu0
        %3537 = vst [vmem:[%s378] sm:$0x1] %v3534
        %s3538 = sand.u32 %s269, 1
        %s3539 = scalar_lea.sflag [#allocation3], %s3538
        %s3540 = sand.u32 %s269, 1
        %s3541 = scalar_lea.vmem [#allocation2], %s3540
        // Predicated region
        $region65: #{net_forward.1} parent=63 // pred_check
          %p3542 = pneg %p279
        $region66: #{net_forward.1} parent=63 // pred_check_branch
          %3544 = sbr.rel (%p3542) target = $region68
        $region67: #{net_forward.1} parent=63 // pred_region
          %s3546 = ssub.s32 16, 16
          %3547 = vsyncadd %s3539, %s3546
          %s3548 = smul.addr %s25, 16
          %s3549 = scalar_lea.hbm %s11, %s3548
          %s3551 = sshll.u32 %s3541, 4
          %s3552 = int_to_ptr.vmem [resolvable:$true] %s3551
          %3554 = dma.vmem_to_hbm [thread:$0]  %s3552, 16, %s3549, %s3539
        $region68: #{net_forward.1} parent=63 // pred_fallthru
          _
      $region64: #{net_forward.1} parent=5 // pred_fallthru
        _
      %p3555 = scmp.le.s32.totalorder 2, %s20
      // Predicated region
      $region69: #{net_forward.1} parent=5 // pred_check
        %p3556 = pneg %p3555
      $region70: #{net_forward.1} parent=5 // pred_check_branch
        %3558 = sbr.rel (%p3556) target = $region72
      $region71: #{net_forward.1} parent=5 // pred_region
        %s3559 = ssub.s32 %s20, 2
        // Predicated region
        $region73: #{net_forward.1} parent=71 // pred_check
          %p3560 = pneg %p285
        $region74: #{net_forward.1} parent=71 // pred_check_branch
          %3562 = sbr.rel (%p3560) target = $region76
        $region75: #{net_forward.1} parent=71 // pred_region
          %s3563 = sand.u32 %s270, 1
          %s3564 = scalar_lea.sflag [#allocation3], %s3563
          %s3565 = sand.u32 %s270, 1
          %s3566 = scalar_lea.vmem [#allocation2], %s3565
          %3567 = dma.done %s3564, 16
        $region76: #{net_forward.1} parent=71 // pred_fallthru
          _
      $region72: #{net_forward.1} parent=5 // pred_fallthru
        _
    $region6: #{net_forward.1} parent=1 // loop_footer
      %s24 = sadd.s32 1, %s20
    $region7: #{net_forward.1} parent=1 // loop_footer_branch
      %19 = sbr.rel target = $region3
    $region8: #{net_forward.1} parent=1 // loop_exit
      _
    %3568 = vsyncpa [#allocation3], 1
    %s3569 = scalar_lea.sflag [#allocation3], 1
    %3570 = vsyncpa %s3569, 1

</llo_original>
